<compile_context>
chip_gen: v6e
topology: v6e:2x2x1
jax: 0.10.0
libtpu: 0.0.40
codegen_flags: <defaults>
</compile_context>

<pallas_src>
import functools

import jax
import jax.numpy as jnp
from jax import lax
from jax.experimental import pallas as pl
from jax.experimental.pallas import tpu as pltpu

EPS = 1e-5  # PyTorch InstanceNorm3d default


# --------------------------------------------------------------------------- #
# Fused kernel: depthwise 3x3x3 conv + InstanceNorm3d + ReLU + 1x1x1 mix
#               + sigmoid + residual gate.  grid = (N,)
# --------------------------------------------------------------------------- #
def _hf_fused_kernel(w1_ref, b1_ref, g_ref, be_ref, w2_ref, b2_ref,
                     m_ref, x_ref, o_ref, t_sc, *, W):
    # w1_ref: (27*C,) SMEM, tap-major  ((kd*3+kh)*3+kw)*C + c
    # b1/g/be/b2: (C,) SMEM;  w2_ref: (C*C,) SMEM, [c_in*C + c_out]
    # m_ref:  (12, D, HW) VMEM 0/1 masks: [0..8] = HW-offset masks (kh*3+kw),
    #                                     [9..11] = D-offset masks (kd)
    # x_ref/o_ref: (1, C, D, HW) VMEM (lane-dense, HW multiple of 128)
    # t_sc:   (C, D, HW) VMEM scratch holding ReLU(norm(conv)).
    C = b1_ref.shape[0]
    D, HW = x_ref.shape[2], x_ref.shape[3]
    inv_cnt = 1.0 / float(D * HW)

    # Boundary masks, loaded once (resident across the whole step).
    hw_masks = [m_ref[j] for j in range(9)]          # (D, HW) each
    d_masks = [m_ref[9 + kd] for kd in range(3)]     # (D, HW) each

    # ---- Stage 1: depthwise conv + InstanceNorm + ReLU, per channel --------
    for c in range(C):
        xc = x_ref[0, c]                              # (D, HW), lane-dense

        # 9 HW-shifted, boundary-masked variants (zero halo in H and W).
        # Lane rolls go to the XLU slot -> overlap the VALU tap accumulation.
        yhw = []
        for kh in range(3):
            for kw in range(3):
                dh, dw = kh - 1, kw - 1
                delta = dh * W + dw
                y = xc if delta == 0 else pltpu.roll(xc, shift=(-delta) % HW, axis=1)
                if delta != 0:
                    y = y * hw_masks[kh * 3 + kw]
                yhw.append(y)

        # 27 taps: sublane roll for the D offset + D-boundary mask + weight.
        acc = None
        for kd in range(3):
            dd = kd - 1
            for j in range(9):
                wt = w1_ref[(kd * 9 + j) * C + c]     # SMEM scalar
                src = yhw[j]
                if dd != 0:
                    src = pltpu.roll(src, shift=(-dd) % D, axis=0) * d_masks[kd]
                term = src * wt
                acc = term if acc is None else acc + term
        acc = acc + b1_ref[c]

        # InstanceNorm3d: single-pass stats in f32, biased var, clamped >= 0.
        s1 = jnp.sum(acc, axis=0, keepdims=True)
        s1 = jnp.sum(s1, axis=1, keepdims=True)               # (1, 1)
        s2 = jnp.sum(acc * acc, axis=0, keepdims=True)
        s2 = jnp.sum(s2, axis=1, keepdims=True)                # (1, 1)
        mean = s1 * inv_cnt
        var = jnp.maximum(s2 * inv_cnt - mean * mean, 0.0)
        scale = lax.rsqrt(var + EPS) * g_ref[c]
        shift = be_ref[c] - mean * scale
        t_sc[c] = jnp.maximum(acc * scale + shift, 0.0)

    # ---- Stage 2: 1x1x1 channel mix + sigmoid + residual gate --------------
    # Hoist the t loads out of the output-channel loop (C loads, not C^2).
    # TODO(synk): for C >= ~16 use an MXU jnp.dot over a (C, D*HW) view.
    ts = [t_sc[ci] for ci in range(C)]
    for co in range(C):
        mix = ts[0] * w2_ref[co]
        for ci in range(1, C):
            mix = mix + ts[ci] * w2_ref[ci * C + co]
        mix = mix + b2_ref[co]
        gate = 1.0 / (1.0 + jnp.exp(-mix))
        o_ref[0, co] = x_ref[0, co] * gate            # residual gate, resident x


# --------------------------------------------------------------------------- #
# Wrapper
# --------------------------------------------------------------------------- #
def _build_masks(D, H, W):
    """(12, D, H*W) f32 0/1 masks: 9 HW-offset masks then 3 D-offset masks."""
    HW = H * W
    h = jnp.arange(H).reshape(H, 1)
    w = jnp.arange(W).reshape(1, W)
    ms = []
    for dh in (-1, 0, 1):
        for dw in (-1, 0, 1):
            m = (h + dh >= 0) & (h + dh < H) & (w + dw >= 0) & (w + dw < W)
            ms.append(jnp.broadcast_to(m.reshape(1, HW), (D, HW)))
    d = jnp.arange(D).reshape(D, 1)
    for dd in (-1, 0, 1):
        m = (d + dd >= 0) & (d + dd < D)
        ms.append(jnp.broadcast_to(m, (D, HW)))
    return jnp.stack(ms).astype(jnp.float32)


def _vmem_limit(C, D, HW):
    blk = C * D * HW * 4
    mask = 12 * D * HW * 4
    need = 2 * (2 * blk + mask) + blk   # double-buffered in/out + masks + scratch
    # Cap below v7x's 64 MiB physical VMEM; keep a sane floor for pipelining.
    return int(min(48 * 2 ** 20, max(16 * 2 ** 20, 4 * need)))


@jax.jit
def hf_refinement_res(x_ncdhw, params):
    """Pallas implementation. x_ncdhw: (N, C, D, H, W) float32 -> same shape."""
    w1, b1, gamma, beta, w2, b2 = params
    N, C, D, H, W = x_ncdhw.shape
    HW = H * W

    # Trailing-dim reshape to the lane-dense (N, C, D, H*W) view (no HBM pass).
    x = x_ncdhw.astype(jnp.float32).reshape(N, C, D, HW)
    masks = _build_masks(D, H, W)

    smem = pl.BlockSpec(memory_space=pltpu.MemorySpace.SMEM)
    blk = pl.BlockSpec((1, C, D, HW), lambda n: (n, 0, 0, 0))
    mblk = pl.BlockSpec((12, D, HW), lambda n: (0, 0, 0))

    out = pl.pallas_call(
        functools.partial(_hf_fused_kernel, W=W),
        out_shape=jax.ShapeDtypeStruct((N, C, D, HW), jnp.float32),
        grid=(N,),
        in_specs=[smem, smem, smem, smem, smem, smem, mblk, blk],
        out_specs=blk,
        scratch_shapes=[pltpu.VMEM((C, D, HW), jnp.float32)],
        compiler_params=pltpu.CompilerParams(
            dimension_semantics=("parallel",),
            vmem_limit_bytes=_vmem_limit(C, D, HW)),
    )(w1.reshape(-1), b1, gamma, beta, w2.reshape(-1), b2, masks, x)

    return out.reshape(N, C, D, H, W)


# --------------------------------------------------------------------------- #
# Deterministic parameters + pure-JAX reference
# --------------------------------------------------------------------------- #
def init_params(key, C):
    """Synthetic parameters (shapes follow the PyTorch module)."""
    k1, k2, k3, k4 = jax.random.split(key, 4)
    # conv1.weight: torch (C, 1, 3, 3, 3) -> stored (27, C), tap-major
    w1 = jax.random.uniform(k1, (27, C), jnp.float32, -1.0, 1.0) / jnp.sqrt(27.0)
    b1 = jax.random.uniform(k2, (C,), jnp.float32, -1.0, 1.0) / jnp.sqrt(27.0)
    # InstanceNorm3d affine init: weight=1, bias=0 (PyTorch default)
    gamma = jnp.ones((C,), jnp.float32)
    beta = jnp.zeros((C,), jnp.float32)
    # conv2.weight: torch (C_out, C_in, 1, 1, 1) -> stored transposed (C_in, C_out)
    w2 = jax.random.uniform(k3, (C, C), jnp.float32, -1.0, 1.0) / jnp.sqrt(float(C))
    b2 = jax.random.uniform(k4, (C,), jnp.float32, -1.0, 1.0) / jnp.sqrt(float(C))
    return w1, b1, gamma, beta, w2, b2


def ref_forward(x_ncdhw, params):
    """Pure-JAX (XLA) reference matching the PyTorch forward semantics."""
    w1, b1, gamma, beta, w2, b2 = params
    N, C, D, H, W = x_ncdhw.shape
    x = jnp.transpose(x_ncdhw, (0, 2, 3, 4, 1)).astype(jnp.float32)   # NDHWC
    rhs = w1.reshape(3, 3, 3, 1, C)                                    # DHWIO depthwise
    y = lax.conv_general_dilated(
        x, rhs, window_strides=(1, 1, 1), padding="SAME",
        dimension_numbers=("NDHWC", "DHWIO", "NDHWC"),
        feature_group_count=C,
        precision=lax.Precision.HIGHEST) + b1.reshape(1, 1, 1, 1, C)
    mean = jnp.mean(y, axis=(1, 2, 3), keepdims=True)
    var = jnp.var(y, axis=(1, 2, 3), keepdims=True)
    y = (y - mean) / jnp.sqrt(var + EPS)
    y = y * gamma.reshape(1, 1, 1, 1, C) + beta.reshape(1, 1, 1, 1, C)
    y = jnp.maximum(y, 0.0)
    y = jnp.einsum("ndhwi,io->ndhwo", y, w2,
                   precision=lax.Precision.HIGHEST) + b2.reshape(1, 1, 1, 1, C)
    y = jax.nn.sigmoid(y)
    out = x * y
    return jnp.transpose(out, (0, 4, 1, 2, 3))


if __name__ == "__main__":
    key = jax.random.PRNGKey(0)
    kx, kp = jax.random.split(key)

    N, C, D, H, W = 2, 4, 8, 16, 16
    x = jax.random.normal(kx, (N, C, D, H, W), jnp.float32)
    params = init_params(kp, C)

    out = jax.block_until_ready(hf_refinement_res(x, params))

    ref = ref_forward(x, params)
    assert out.shape == x.shape and out.dtype == jnp.float32
    max_err = float(jnp.max(jnp.abs(out - ref)))
    assert jnp.allclose(out, ref, atol=2e-3, rtol=2e-3), f"max_err={max_err}"

    print("KERNEL_OK")
</pallas_src>

<mosaic_0001>
module attributes {stable_mosaic.version = 11 : i64} {
  func.func @_hf_fused_kernel(%arg0: i32, %arg1: memref<108xf32, #tpu.memory_space<smem>>, %arg2: memref<4xf32, #tpu.memory_space<smem>>, %arg3: memref<4xf32, #tpu.memory_space<smem>>, %arg4: memref<4xf32, #tpu.memory_space<smem>>, %arg5: memref<16xf32, #tpu.memory_space<smem>>, %arg6: memref<4xf32, #tpu.memory_space<smem>>, %arg7: memref<12x8x256xf32, #tpu.memory_space<vmem>>, %arg8: memref<1x4x8x256xf32, #tpu.memory_space<vmem>>, %arg9: memref<1x4x8x256xf32, #tpu.memory_space<vmem>>, %arg10: memref<4x8x256xf32, #tpu.memory_space<vmem>>) attributes {dimension_semantics = [#tpu.dimension_semantics<parallel>], iteration_bounds = array<i64: 2>, scalar_prefetch = 0 : i64, scratch_operands = 1 : i64, tpu.core_type = #tpu.core_type<tc>, window_params = [{transform_indices = @transform_0, window_bounds = array<i64: 108>}, {transform_indices = @transform_1, window_bounds = array<i64: 4>}, {transform_indices = @transform_2, window_bounds = array<i64: 4>}, {transform_indices = @transform_3, window_bounds = array<i64: 4>}, {transform_indices = @transform_4, window_bounds = array<i64: 16>}, {transform_indices = @transform_5, window_bounds = array<i64: 4>}, {pipeline_mode = #tpu.pipeline_mode<synchronous>, transform_indices = @transform_6, window_bounds = array<i64: 12, 8, 256>}, {transform_indices = @transform_7, window_bounds = array<i64: 1, 4, 8, 256>}, {transform_indices = @transform_8, window_bounds = array<i64: 1, 4, 8, 256>}]} {
    %c0 = arith.constant 0 : index
    %c0_0 = arith.constant 0 : index
    %c0_1 = arith.constant 0 : index
    %0 = vector.load %arg7[%c0, %c0_0, %c0_1] : memref<12x8x256xf32, #tpu.memory_space<vmem>>, vector<1x8x256xf32>
    %1 = vector.shape_cast %0 : vector<1x8x256xf32> to vector<8x256xf32>
    %c1 = arith.constant 1 : index
    %c0_2 = arith.constant 0 : index
    %c0_3 = arith.constant 0 : index
    %2 = vector.load %arg7[%c1, %c0_2, %c0_3] : memref<12x8x256xf32, #tpu.memory_space<vmem>>, vector<1x8x256xf32>
    %3 = vector.shape_cast %2 : vector<1x8x256xf32> to vector<8x256xf32>
    %c2 = arith.constant 2 : index
    %c0_4 = arith.constant 0 : index
    %c0_5 = arith.constant 0 : index
    %4 = vector.load %arg7[%c2, %c0_4, %c0_5] : memref<12x8x256xf32, #tpu.memory_space<vmem>>, vector<1x8x256xf32>
    %5 = vector.shape_cast %4 : vector<1x8x256xf32> to vector<8x256xf32>
    %c3 = arith.constant 3 : index
    %c0_6 = arith.constant 0 : index
    %c0_7 = arith.constant 0 : index
    %6 = vector.load %arg7[%c3, %c0_6, %c0_7] : memref<12x8x256xf32, #tpu.memory_space<vmem>>, vector<1x8x256xf32>
    %7 = vector.shape_cast %6 : vector<1x8x256xf32> to vector<8x256xf32>
    %c5 = arith.constant 5 : index
    %c0_8 = arith.constant 0 : index
    %c0_9 = arith.constant 0 : index
    %8 = vector.load %arg7[%c5, %c0_8, %c0_9] : memref<12x8x256xf32, #tpu.memory_space<vmem>>, vector<1x8x256xf32>
    %9 = vector.shape_cast %8 : vector<1x8x256xf32> to vector<8x256xf32>
    %c6 = arith.constant 6 : index
    %c0_10 = arith.constant 0 : index
    %c0_11 = arith.constant 0 : index
    %10 = vector.load %arg7[%c6, %c0_10, %c0_11] : memref<12x8x256xf32, #tpu.memory_space<vmem>>, vector<1x8x256xf32>
    %11 = vector.shape_cast %10 : vector<1x8x256xf32> to vector<8x256xf32>
    %c7 = arith.constant 7 : index
    %c0_12 = arith.constant 0 : index
    %c0_13 = arith.constant 0 : index
    %12 = vector.load %arg7[%c7, %c0_12, %c0_13] : memref<12x8x256xf32, #tpu.memory_space<vmem>>, vector<1x8x256xf32>
    %13 = vector.shape_cast %12 : vector<1x8x256xf32> to vector<8x256xf32>
    %c8 = arith.constant 8 : index
    %c0_14 = arith.constant 0 : index
    %c0_15 = arith.constant 0 : index
    %14 = vector.load %arg7[%c8, %c0_14, %c0_15] : memref<12x8x256xf32, #tpu.memory_space<vmem>>, vector<1x8x256xf32>
    %15 = vector.shape_cast %14 : vector<1x8x256xf32> to vector<8x256xf32>
    %c9 = arith.constant 9 : index
    %c0_16 = arith.constant 0 : index
    %c0_17 = arith.constant 0 : index
    %16 = vector.load %arg7[%c9, %c0_16, %c0_17] : memref<12x8x256xf32, #tpu.memory_space<vmem>>, vector<1x8x256xf32>
    %17 = vector.shape_cast %16 : vector<1x8x256xf32> to vector<8x256xf32>
    %c11 = arith.constant 11 : index
    %c0_18 = arith.constant 0 : index
    %c0_19 = arith.constant 0 : index
    %18 = vector.load %arg7[%c11, %c0_18, %c0_19] : memref<12x8x256xf32, #tpu.memory_space<vmem>>, vector<1x8x256xf32>
    %19 = vector.shape_cast %18 : vector<1x8x256xf32> to vector<8x256xf32>
    %c0_20 = arith.constant 0 : index
    %c0_21 = arith.constant 0 : index
    %c0_22 = arith.constant 0 : index
    %c0_23 = arith.constant 0 : index
    %20 = vector.load %arg8[%c0_20, %c0_21, %c0_22, %c0_23] : memref<1x4x8x256xf32, #tpu.memory_space<vmem>>, vector<1x1x8x256xf32>
    %21 = vector.shape_cast %20 : vector<1x1x8x256xf32> to vector<8x256xf32>
    %c17_i32 = arith.constant 17 : i32
    %22 = tpu.dynamic_rotate %21 by %c17_i32 dim 1 : vector<8x256xf32>, i32 -> vector<8x256xf32>
    %23 = arith.mulf %22, %1 : vector<8x256xf32>
    %c16_i32 = arith.constant 16 : i32
    %24 = tpu.dynamic_rotate %21 by %c16_i32 dim 1 : vector<8x256xf32>, i32 -> vector<8x256xf32>
    %25 = arith.mulf %24, %3 : vector<8x256xf32>
    %c15_i32 = arith.constant 15 : i32
    %26 = tpu.dynamic_rotate %21 by %c15_i32 dim 1 : vector<8x256xf32>, i32 -> vector<8x256xf32>
    %27 = arith.mulf %26, %5 : vector<8x256xf32>
    %c1_i32 = arith.constant 1 : i32
    %28 = tpu.dynamic_rotate %21 by %c1_i32 dim 1 : vector<8x256xf32>, i32 -> vector<8x256xf32>
    %29 = arith.mulf %28, %7 : vector<8x256xf32>
    %c255_i32 = arith.constant 255 : i32
    %30 = tpu.dynamic_rotate %21 by %c255_i32 dim 1 : vector<8x256xf32>, i32 -> vector<8x256xf32>
    %31 = arith.mulf %30, %9 : vector<8x256xf32>
    %c241_i32 = arith.constant 241 : i32
    %32 = tpu.dynamic_rotate %21 by %c241_i32 dim 1 : vector<8x256xf32>, i32 -> vector<8x256xf32>
    %33 = arith.mulf %32, %11 : vector<8x256xf32>
    %c240_i32 = arith.constant 240 : i32
    %34 = tpu.dynamic_rotate %21 by %c240_i32 dim 1 : vector<8x256xf32>, i32 -> vector<8x256xf32>
    %35 = arith.mulf %34, %13 : vector<8x256xf32>
    %c239_i32 = arith.constant 239 : i32
    %36 = tpu.dynamic_rotate %21 by %c239_i32 dim 1 : vector<8x256xf32>, i32 -> vector<8x256xf32>
    %37 = arith.mulf %36, %15 : vector<8x256xf32>
    %c0_24 = arith.constant 0 : index
    %38 = memref.load %arg1[%c0_24] : memref<108xf32, #tpu.memory_space<smem>>
    %c1_i32_25 = arith.constant 1 : i32
    %39 = tpu.dynamic_rotate %23 by %c1_i32_25 dim 0 : vector<8x256xf32>, i32 -> vector<8x256xf32>
    %40 = arith.mulf %39, %17 : vector<8x256xf32>
    %41 = vector.broadcast %38 : f32 to vector<8x256xf32>
    %42 = arith.mulf %40, %41 : vector<8x256xf32>
    %c4 = arith.constant 4 : index
    %43 = memref.load %arg1[%c4] : memref<108xf32, #tpu.memory_space<smem>>
    %c1_i32_26 = arith.constant 1 : i32
    %44 = tpu.dynamic_rotate %25 by %c1_i32_26 dim 0 : vector<8x256xf32>, i32 -> vector<8x256xf32>
    %45 = arith.mulf %44, %17 : vector<8x256xf32>
    %46 = vector.broadcast %43 : f32 to vector<8x256xf32>
    %47 = arith.mulf %45, %46 : vector<8x256xf32>
    %48 = arith.addf %42, %47 : vector<8x256xf32>
    %c8_27 = arith.constant 8 : index
    %49 = memref.load %arg1[%c8_27] : memref<108xf32, #tpu.memory_space<smem>>
    %c1_i32_28 = arith.constant 1 : i32
    %50 = tpu.dynamic_rotate %27 by %c1_i32_28 dim 0 : vector<8x256xf32>, i32 -> vector<8x256xf32>
    %51 = arith.mulf %50, %17 : vector<8x256xf32>
    %52 = vector.broadcast %49 : f32 to vector<8x256xf32>
    %53 = arith.mulf %51, %52 : vector<8x256xf32>
    %54 = arith.addf %48, %53 : vector<8x256xf32>
    %c12 = arith.constant 12 : index
    %55 = memref.load %arg1[%c12] : memref<108xf32, #tpu.memory_space<smem>>
    %c1_i32_29 = arith.constant 1 : i32
    %56 = tpu.dynamic_rotate %29 by %c1_i32_29 dim 0 : vector<8x256xf32>, i32 -> vector<8x256xf32>
    %57 = arith.mulf %56, %17 : vector<8x256xf32>
    %58 = vector.broadcast %55 : f32 to vector<8x256xf32>
    %59 = arith.mulf %57, %58 : vector<8x256xf32>
    %60 = arith.addf %54, %59 : vector<8x256xf32>
    %c16 = arith.constant 16 : index
    %61 = memref.load %arg1[%c16] : memref<108xf32, #tpu.memory_space<smem>>
    %c1_i32_30 = arith.constant 1 : i32
    %62 = tpu.dynamic_rotate %21 by %c1_i32_30 dim 0 : vector<8x256xf32>, i32 -> vector<8x256xf32>
    %63 = arith.mulf %62, %17 : vector<8x256xf32>
    %64 = vector.broadcast %61 : f32 to vector<8x256xf32>
    %65 = arith.mulf %63, %64 : vector<8x256xf32>
    %66 = arith.addf %60, %65 : vector<8x256xf32>
    %c20 = arith.constant 20 : index
    %67 = memref.load %arg1[%c20] : memref<108xf32, #tpu.memory_space<smem>>
    %c1_i32_31 = arith.constant 1 : i32
    %68 = tpu.dynamic_rotate %31 by %c1_i32_31 dim 0 : vector<8x256xf32>, i32 -> vector<8x256xf32>
    %69 = arith.mulf %68, %17 : vector<8x256xf32>
    %70 = vector.broadcast %67 : f32 to vector<8x256xf32>
    %71 = arith.mulf %69, %70 : vector<8x256xf32>
    %72 = arith.addf %66, %71 : vector<8x256xf32>
    %c24 = arith.constant 24 : index
    %73 = memref.load %arg1[%c24] : memref<108xf32, #tpu.memory_space<smem>>
    %c1_i32_32 = arith.constant 1 : i32
    %74 = tpu.dynamic_rotate %33 by %c1_i32_32 dim 0 : vector<8x256xf32>, i32 -> vector<8x256xf32>
    %75 = arith.mulf %74, %17 : vector<8x256xf32>
    %76 = vector.broadcast %73 : f32 to vector<8x256xf32>
    %77 = arith.mulf %75, %76 : vector<8x256xf32>
    %78 = arith.addf %72, %77 : vector<8x256xf32>
    %c28 = arith.constant 28 : index
    %79 = memref.load %arg1[%c28] : memref<108xf32, #tpu.memory_space<smem>>
    %c1_i32_33 = arith.constant 1 : i32
    %80 = tpu.dynamic_rotate %35 by %c1_i32_33 dim 0 : vector<8x256xf32>, i32 -> vector<8x256xf32>
    %81 = arith.mulf %80, %17 : vector<8x256xf32>
    %82 = vector.broadcast %79 : f32 to vector<8x256xf32>
    %83 = arith.mulf %81, %82 : vector<8x256xf32>
    %84 = arith.addf %78, %83 : vector<8x256xf32>
    %c32 = arith.constant 32 : index
    %85 = memref.load %arg1[%c32] : memref<108xf32, #tpu.memory_space<smem>>
    %c1_i32_34 = arith.constant 1 : i32
    %86 = tpu.dynamic_rotate %37 by %c1_i32_34 dim 0 : vector<8x256xf32>, i32 -> vector<8x256xf32>
    %87 = arith.mulf %86, %17 : vector<8x256xf32>
    %88 = vector.broadcast %85 : f32 to vector<8x256xf32>
    %89 = arith.mulf %87, %88 : vector<8x256xf32>
    %90 = arith.addf %84, %89 : vector<8x256xf32>
    %c36 = arith.constant 36 : index
    %91 = memref.load %arg1[%c36] : memref<108xf32, #tpu.memory_space<smem>>
    %92 = vector.broadcast %91 : f32 to vector<8x256xf32>
    %93 = arith.mulf %23, %92 : vector<8x256xf32>
    %94 = arith.addf %90, %93 : vector<8x256xf32>
    %c40 = arith.constant 40 : index
    %95 = memref.load %arg1[%c40] : memref<108xf32, #tpu.memory_space<smem>>
    %96 = vector.broadcast %95 : f32 to vector<8x256xf32>
    %97 = arith.mulf %25, %96 : vector<8x256xf32>
    %98 = arith.addf %94, %97 : vector<8x256xf32>
    %c44 = arith.constant 44 : index
    %99 = memref.load %arg1[%c44] : memref<108xf32, #tpu.memory_space<smem>>
    %100 = vector.broadcast %99 : f32 to vector<8x256xf32>
    %101 = arith.mulf %27, %100 : vector<8x256xf32>
    %102 = arith.addf %98, %101 : vector<8x256xf32>
    %c48 = arith.constant 48 : index
    %103 = memref.load %arg1[%c48] : memref<108xf32, #tpu.memory_space<smem>>
    %104 = vector.broadcast %103 : f32 to vector<8x256xf32>
    %105 = arith.mulf %29, %104 : vector<8x256xf32>
    %106 = arith.addf %102, %105 : vector<8x256xf32>
    %c52 = arith.constant 52 : index
    %107 = memref.load %arg1[%c52] : memref<108xf32, #tpu.memory_space<smem>>
    %108 = vector.broadcast %107 : f32 to vector<8x256xf32>
    %109 = arith.mulf %21, %108 : vector<8x256xf32>
    %110 = arith.addf %106, %109 : vector<8x256xf32>
    %c56 = arith.constant 56 : index
    %111 = memref.load %arg1[%c56] : memref<108xf32, #tpu.memory_space<smem>>
    %112 = vector.broadcast %111 : f32 to vector<8x256xf32>
    %113 = arith.mulf %31, %112 : vector<8x256xf32>
    %114 = arith.addf %110, %113 : vector<8x256xf32>
    %c60 = arith.constant 60 : index
    %115 = memref.load %arg1[%c60] : memref<108xf32, #tpu.memory_space<smem>>
    %116 = vector.broadcast %115 : f32 to vector<8x256xf32>
    %117 = arith.mulf %33, %116 : vector<8x256xf32>
    %118 = arith.addf %114, %117 : vector<8x256xf32>
    %c64 = arith.constant 64 : index
    %119 = memref.load %arg1[%c64] : memref<108xf32, #tpu.memory_space<smem>>
    %120 = vector.broadcast %119 : f32 to vector<8x256xf32>
    %121 = arith.mulf %35, %120 : vector<8x256xf32>
    %122 = arith.addf %118, %121 : vector<8x256xf32>
    %c68 = arith.constant 68 : index
    %123 = memref.load %arg1[%c68] : memref<108xf32, #tpu.memory_space<smem>>
    %124 = vector.broadcast %123 : f32 to vector<8x256xf32>
    %125 = arith.mulf %37, %124 : vector<8x256xf32>
    %126 = arith.addf %122, %125 : vector<8x256xf32>
    %c72 = arith.constant 72 : index
    %127 = memref.load %arg1[%c72] : memref<108xf32, #tpu.memory_space<smem>>
    %c7_i32 = arith.constant 7 : i32
    %128 = tpu.dynamic_rotate %23 by %c7_i32 dim 0 : vector<8x256xf32>, i32 -> vector<8x256xf32>
    %129 = arith.mulf %128, %19 : vector<8x256xf32>
    %130 = vector.broadcast %127 : f32 to vector<8x256xf32>
    %131 = arith.mulf %129, %130 : vector<8x256xf32>
    %132 = arith.addf %126, %131 : vector<8x256xf32>
    %c76 = arith.constant 76 : index
    %133 = memref.load %arg1[%c76] : memref<108xf32, #tpu.memory_space<smem>>
    %c7_i32_35 = arith.constant 7 : i32
    %134 = tpu.dynamic_rotate %25 by %c7_i32_35 dim 0 : vector<8x256xf32>, i32 -> vector<8x256xf32>
    %135 = arith.mulf %134, %19 : vector<8x256xf32>
    %136 = vector.broadcast %133 : f32 to vector<8x256xf32>
    %137 = arith.mulf %135, %136 : vector<8x256xf32>
    %138 = arith.addf %132, %137 : vector<8x256xf32>
    %c80 = arith.constant 80 : index
    %139 = memref.load %arg1[%c80] : memref<108xf32, #tpu.memory_space<smem>>
    %c7_i32_36 = arith.constant 7 : i32
    %140 = tpu.dynamic_rotate %27 by %c7_i32_36 dim 0 : vector<8x256xf32>, i32 -> vector<8x256xf32>
    %141 = arith.mulf %140, %19 : vector<8x256xf32>
    %142 = vector.broadcast %139 : f32 to vector<8x256xf32>
    %143 = arith.mulf %141, %142 : vector<8x256xf32>
    %144 = arith.addf %138, %143 : vector<8x256xf32>
    %c84 = arith.constant 84 : index
    %145 = memref.load %arg1[%c84] : memref<108xf32, #tpu.memory_space<smem>>
    %c7_i32_37 = arith.constant 7 : i32
    %146 = tpu.dynamic_rotate %29 by %c7_i32_37 dim 0 : vector<8x256xf32>, i32 -> vector<8x256xf32>
    %147 = arith.mulf %146, %19 : vector<8x256xf32>
    %148 = vector.broadcast %145 : f32 to vector<8x256xf32>
    %149 = arith.mulf %147, %148 : vector<8x256xf32>
    %150 = arith.addf %144, %149 : vector<8x256xf32>
    %c88 = arith.constant 88 : index
    %151 = memref.load %arg1[%c88] : memref<108xf32, #tpu.memory_space<smem>>
    %c7_i32_38 = arith.constant 7 : i32
    %152 = tpu.dynamic_rotate %21 by %c7_i32_38 dim 0 : vector<8x256xf32>, i32 -> vector<8x256xf32>
    %153 = arith.mulf %152, %19 : vector<8x256xf32>
    %154 = vector.broadcast %151 : f32 to vector<8x256xf32>
    %155 = arith.mulf %153, %154 : vector<8x256xf32>
    %156 = arith.addf %150, %155 : vector<8x256xf32>
    %c92 = arith.constant 92 : index
    %157 = memref.load %arg1[%c92] : memref<108xf32, #tpu.memory_space<smem>>
    %c7_i32_39 = arith.constant 7 : i32
    %158 = tpu.dynamic_rotate %31 by %c7_i32_39 dim 0 : vector<8x256xf32>, i32 -> vector<8x256xf32>
    %159 = arith.mulf %158, %19 : vector<8x256xf32>
    %160 = vector.broadcast %157 : f32 to vector<8x256xf32>
    %161 = arith.mulf %159, %160 : vector<8x256xf32>
    %162 = arith.addf %156, %161 : vector<8x256xf32>
    %c96 = arith.constant 96 : index
    %163 = memref.load %arg1[%c96] : memref<108xf32, #tpu.memory_space<smem>>
    %c7_i32_40 = arith.constant 7 : i32
    %164 = tpu.dynamic_rotate %33 by %c7_i32_40 dim 0 : vector<8x256xf32>, i32 -> vector<8x256xf32>
    %165 = arith.mulf %164, %19 : vector<8x256xf32>
    %166 = vector.broadcast %163 : f32 to vector<8x256xf32>
    %167 = arith.mulf %165, %166 : vector<8x256xf32>
    %168 = arith.addf %162, %167 : vector<8x256xf32>
    %c100 = arith.constant 100 : index
    %169 = memref.load %arg1[%c100] : memref<108xf32, #tpu.memory_space<smem>>
    %c7_i32_41 = arith.constant 7 : i32
    %170 = tpu.dynamic_rotate %35 by %c7_i32_41 dim 0 : vector<8x256xf32>, i32 -> vector<8x256xf32>
    %171 = arith.mulf %170, %19 : vector<8x256xf32>
    %172 = vector.broadcast %169 : f32 to vector<8x256xf32>
    %173 = arith.mulf %171, %172 : vector<8x256xf32>
    %174 = arith.addf %168, %173 : vector<8x256xf32>
    %c104 = arith.constant 104 : index
    %175 = memref.load %arg1[%c104] : memref<108xf32, #tpu.memory_space<smem>>
    %c7_i32_42 = arith.constant 7 : i32
    %176 = tpu.dynamic_rotate %37 by %c7_i32_42 dim 0 : vector<8x256xf32>, i32 -> vector<8x256xf32>
    %177 = arith.mulf %176, %19 : vector<8x256xf32>
    %178 = vector.broadcast %175 : f32 to vector<8x256xf32>
    %179 = arith.mulf %177, %178 : vector<8x256xf32>
    %180 = arith.addf %174, %179 : vector<8x256xf32>
    %c0_43 = arith.constant 0 : index
    %181 = memref.load %arg2[%c0_43] : memref<4xf32, #tpu.memory_space<smem>>
    %182 = vector.broadcast %181 : f32 to vector<8x256xf32>
    %183 = arith.addf %180, %182 : vector<8x256xf32>
    %cst = arith.constant dense<0.000000e+00> : vector<256xf32>
    %184 = vector.multi_reduction <add>, %183, %cst [0] : vector<8x256xf32> to vector<256xf32>
    %185 = vector.shape_cast %184 : vector<256xf32> to vector<1x256xf32>
    %cst_44 = arith.constant dense<0.000000e+00> : vector<1xf32>
    %186 = vector.multi_reduction <add>, %185, %cst_44 [1] : vector<1x256xf32> to vector<1xf32>
    %187 = vector.shape_cast %186 : vector<1xf32> to vector<1x1xf32>
    %188 = arith.mulf %183, %183 : vector<8x256xf32>
    %cst_45 = arith.constant dense<0.000000e+00> : vector<256xf32>
    %189 = vector.multi_reduction <add>, %188, %cst_45 [0] : vector<8x256xf32> to vector<256xf32>
    %190 = vector.shape_cast %189 : vector<256xf32> to vector<1x256xf32>
    %cst_46 = arith.constant dense<0.000000e+00> : vector<1xf32>
    %191 = vector.multi_reduction <add>, %190, %cst_46 [1] : vector<1x256xf32> to vector<1xf32>
    %192 = vector.shape_cast %191 : vector<1xf32> to vector<1x1xf32>
    %cst_47 = arith.constant 4.8828125E-4 : f32
    %193 = vector.broadcast %cst_47 : f32 to vector<1x1xf32>
    %194 = arith.mulf %187, %193 : vector<1x1xf32>
    %cst_48 = arith.constant 4.8828125E-4 : f32
    %195 = vector.broadcast %cst_48 : f32 to vector<1x1xf32>
    %196 = arith.mulf %192, %195 : vector<1x1xf32>
    %197 = arith.mulf %194, %194 : vector<1x1xf32>
    %198 = arith.subf %196, %197 : vector<1x1xf32>
    %cst_49 = arith.constant 0.000000e+00 : f32
    %199 = vector.broadcast %cst_49 : f32 to vector<1x1xf32>
    %200 = arith.maximumf %198, %199 : vector<1x1xf32>
    %cst_50 = arith.constant 9.99999974E-6 : f32
    %201 = vector.broadcast %cst_50 : f32 to vector<1x1xf32>
    %202 = arith.addf %200, %201 : vector<1x1xf32>
    %203 = math.rsqrt %202 : vector<1x1xf32>
    %c0_51 = arith.constant 0 : index
    %204 = memref.load %arg3[%c0_51] : memref<4xf32, #tpu.memory_space<smem>>
    %205 = vector.broadcast %204 : f32 to vector<1x1xf32>
    %206 = arith.mulf %203, %205 : vector<1x1xf32>
    %c0_52 = arith.constant 0 : index
    %207 = memref.load %arg4[%c0_52] : memref<4xf32, #tpu.memory_space<smem>>
    %208 = arith.mulf %194, %206 : vector<1x1xf32>
    %209 = vector.broadcast %207 : f32 to vector<1x1xf32>
    %210 = arith.subf %209, %208 : vector<1x1xf32>
    %211 = vector.broadcast %206 : vector<1x1xf32> to vector<8x256xf32>
    %212 = arith.mulf %183, %211 : vector<8x256xf32>
    %213 = vector.broadcast %210 : vector<1x1xf32> to vector<8x256xf32>
    %214 = arith.addf %212, %213 : vector<8x256xf32>
    %cst_53 = arith.constant 0.000000e+00 : f32
    %215 = vector.broadcast %cst_53 : f32 to vector<8x256xf32>
    %216 = arith.maximumf %214, %215 : vector<8x256xf32>
    %c0_54 = arith.constant 0 : index
    %c0_55 = arith.constant 0 : index
    %c0_56 = arith.constant 0 : index
    %217 = vector.load %arg10[%c0_54, %c0_55, %c0_56] : memref<4x8x256xf32, #tpu.memory_space<vmem>>, vector<1x8x256xf32>
    %218 = vector.shape_cast %217 : vector<1x8x256xf32> to vector<8x256xf32>
    %219 = vector.shape_cast %216 : vector<8x256xf32> to vector<1x8x256xf32>
    tpu.vector_store %arg10[%c0_54, %c0_55, %c0_56], %219 {strides = array<i32>} : memref<4x8x256xf32, #tpu.memory_space<vmem>>, vector<1x8x256xf32>,
    %c0_57 = arith.constant 0 : index
    %c1_58 = arith.constant 1 : index
    %c0_59 = arith.constant 0 : index
    %c0_60 = arith.constant 0 : index
    %220 = vector.load %arg8[%c0_57, %c1_58, %c0_59, %c0_60] : memref<1x4x8x256xf32, #tpu.memory_space<vmem>>, vector<1x1x8x256xf32>
    %221 = vector.shape_cast %220 : vector<1x1x8x256xf32> to vector<8x256xf32>
    %c17_i32_61 = arith.constant 17 : i32
    %222 = tpu.dynamic_rotate %221 by %c17_i32_61 dim 1 : vector<8x256xf32>, i32 -> vector<8x256xf32>
    %223 = arith.mulf %222, %1 : vector<8x256xf32>
    %c16_i32_62 = arith.constant 16 : i32
    %224 = tpu.dynamic_rotate %221 by %c16_i32_62 dim 1 : vector<8x256xf32>, i32 -> vector<8x256xf32>
    %225 = arith.mulf %224, %3 : vector<8x256xf32>
    %c15_i32_63 = arith.constant 15 : i32
    %226 = tpu.dynamic_rotate %221 by %c15_i32_63 dim 1 : vector<8x256xf32>, i32 -> vector<8x256xf32>
    %227 = arith.mulf %226, %5 : vector<8x256xf32>
    %c1_i32_64 = arith.constant 1 : i32
    %228 = tpu.dynamic_rotate %221 by %c1_i32_64 dim 1 : vector<8x256xf32>, i32 -> vector<8x256xf32>
    %229 = arith.mulf %228, %7 : vector<8x256xf32>
    %c255_i32_65 = arith.constant 255 : i32
    %230 = tpu.dynamic_rotate %221 by %c255_i32_65 dim 1 : vector<8x256xf32>, i32 -> vector<8x256xf32>
    %231 = arith.mulf %230, %9 : vector<8x256xf32>
    %c241_i32_66 = arith.constant 241 : i32
    %232 = tpu.dynamic_rotate %221 by %c241_i32_66 dim 1 : vector<8x256xf32>, i32 -> vector<8x256xf32>
    %233 = arith.mulf %232, %11 : vector<8x256xf32>
    %c240_i32_67 = arith.constant 240 : i32
    %234 = tpu.dynamic_rotate %221 by %c240_i32_67 dim 1 : vector<8x256xf32>, i32 -> vector<8x256xf32>
    %235 = arith.mulf %234, %13 : vector<8x256xf32>
    %c239_i32_68 = arith.constant 239 : i32
    %236 = tpu.dynamic_rotate %221 by %c239_i32_68 dim 1 : vector<8x256xf32>, i32 -> vector<8x256xf32>
    %237 = arith.mulf %236, %15 : vector<8x256xf32>
    %c1_69 = arith.constant 1 : index
    %238 = memref.load %arg1[%c1_69] : memref<108xf32, #tpu.memory_space<smem>>
    %c1_i32_70 = arith.constant 1 : i32
    %239 = tpu.dynamic_rotate %223 by %c1_i32_70 dim 0 : vector<8x256xf32>, i32 -> vector<8x256xf32>
    %240 = arith.mulf %239, %17 : vector<8x256xf32>
    %241 = vector.broadcast %238 : f32 to vector<8x256xf32>
    %242 = arith.mulf %240, %241 : vector<8x256xf32>
    %c5_71 = arith.constant 5 : index
    %243 = memref.load %arg1[%c5_71] : memref<108xf32, #tpu.memory_space<smem>>
    %c1_i32_72 = arith.constant 1 : i32
    %244 = tpu.dynamic_rotate %225 by %c1_i32_72 dim 0 : vector<8x256xf32>, i32 -> vector<8x256xf32>
    %245 = arith.mulf %244, %17 : vector<8x256xf32>
    %246 = vector.broadcast %243 : f32 to vector<8x256xf32>
    %247 = arith.mulf %245, %246 : vector<8x256xf32>
    %248 = arith.addf %242, %247 : vector<8x256xf32>
    %c9_73 = arith.constant 9 : index
    %249 = memref.load %arg1[%c9_73] : memref<108xf32, #tpu.memory_space<smem>>
    %c1_i32_74 = arith.constant 1 : i32
    %250 = tpu.dynamic_rotate %227 by %c1_i32_74 dim 0 : vector<8x256xf32>, i32 -> vector<8x256xf32>
    %251 = arith.mulf %250, %17 : vector<8x256xf32>
    %252 = vector.broadcast %249 : f32 to vector<8x256xf32>
    %253 = arith.mulf %251, %252 : vector<8x256xf32>
    %254 = arith.addf %248, %253 : vector<8x256xf32>
    %c13 = arith.constant 13 : index
    %255 = memref.load %arg1[%c13] : memref<108xf32, #tpu.memory_space<smem>>
    %c1_i32_75 = arith.constant 1 : i32
    %256 = tpu.dynamic_rotate %229 by %c1_i32_75 dim 0 : vector<8x256xf32>, i32 -> vector<8x256xf32>
    %257 = arith.mulf %256, %17 : vector<8x256xf32>
    %258 = vector.broadcast %255 : f32 to vector<8x256xf32>
    %259 = arith.mulf %257, %258 : vector<8x256xf32>
    %260 = arith.addf %254, %259 : vector<8x256xf32>
    %c17 = arith.constant 17 : index
    %261 = memref.load %arg1[%c17] : memref<108xf32, #tpu.memory_space<smem>>
    %c1_i32_76 = arith.constant 1 : i32
    %262 = tpu.dynamic_rotate %221 by %c1_i32_76 dim 0 : vector<8x256xf32>, i32 -> vector<8x256xf32>
    %263 = arith.mulf %262, %17 : vector<8x256xf32>
    %264 = vector.broadcast %261 : f32 to vector<8x256xf32>
    %265 = arith.mulf %263, %264 : vector<8x256xf32>
    %266 = arith.addf %260, %265 : vector<8x256xf32>
    %c21 = arith.constant 21 : index
    %267 = memref.load %arg1[%c21] : memref<108xf32, #tpu.memory_space<smem>>
    %c1_i32_77 = arith.constant 1 : i32
    %268 = tpu.dynamic_rotate %231 by %c1_i32_77 dim 0 : vector<8x256xf32>, i32 -> vector<8x256xf32>
    %269 = arith.mulf %268, %17 : vector<8x256xf32>
    %270 = vector.broadcast %267 : f32 to vector<8x256xf32>
    %271 = arith.mulf %269, %270 : vector<8x256xf32>
    %272 = arith.addf %266, %271 : vector<8x256xf32>
    %c25 = arith.constant 25 : index
    %273 = memref.load %arg1[%c25] : memref<108xf32, #tpu.memory_space<smem>>
    %c1_i32_78 = arith.constant 1 : i32
    %274 = tpu.dynamic_rotate %233 by %c1_i32_78 dim 0 : vector<8x256xf32>, i32 -> vector<8x256xf32>
    %275 = arith.mulf %274, %17 : vector<8x256xf32>
    %276 = vector.broadcast %273 : f32 to vector<8x256xf32>
    %277 = arith.mulf %275, %276 : vector<8x256xf32>
    %278 = arith.addf %272, %277 : vector<8x256xf32>
    %c29 = arith.constant 29 : index
    %279 = memref.load %arg1[%c29] : memref<108xf32, #tpu.memory_space<smem>>
    %c1_i32_79 = arith.constant 1 : i32
    %280 = tpu.dynamic_rotate %235 by %c1_i32_79 dim 0 : vector<8x256xf32>, i32 -> vector<8x256xf32>
    %281 = arith.mulf %280, %17 : vector<8x256xf32>
    %282 = vector.broadcast %279 : f32 to vector<8x256xf32>
    %283 = arith.mulf %281, %282 : vector<8x256xf32>
    %284 = arith.addf %278, %283 : vector<8x256xf32>
    %c33 = arith.constant 33 : index
    %285 = memref.load %arg1[%c33] : memref<108xf32, #tpu.memory_space<smem>>
    %c1_i32_80 = arith.constant 1 : i32
    %286 = tpu.dynamic_rotate %237 by %c1_i32_80 dim 0 : vector<8x256xf32>, i32 -> vector<8x256xf32>
    %287 = arith.mulf %286, %17 : vector<8x256xf32>
    %288 = vector.broadcast %285 : f32 to vector<8x256xf32>
    %289 = arith.mulf %287, %288 : vector<8x256xf32>
    %290 = arith.addf %284, %289 : vector<8x256xf32>
    %c37 = arith.constant 37 : index
    %291 = memref.load %arg1[%c37] : memref<108xf32, #tpu.memory_space<smem>>
    %292 = vector.broadcast %291 : f32 to vector<8x256xf32>
    %293 = arith.mulf %223, %292 : vector<8x256xf32>
    %294 = arith.addf %290, %293 : vector<8x256xf32>
    %c41 = arith.constant 41 : index
    %295 = memref.load %arg1[%c41] : memref<108xf32, #tpu.memory_space<smem>>
    %296 = vector.broadcast %295 : f32 to vector<8x256xf32>
    %297 = arith.mulf %225, %296 : vector<8x256xf32>
    %298 = arith.addf %294, %297 : vector<8x256xf32>
    %c45 = arith.constant 45 : index
    %299 = memref.load %arg1[%c45] : memref<108xf32, #tpu.memory_space<smem>>
    %300 = vector.broadcast %299 : f32 to vector<8x256xf32>
    %301 = arith.mulf %227, %300 : vector<8x256xf32>
    %302 = arith.addf %298, %301 : vector<8x256xf32>
    %c49 = arith.constant 49 : index
    %303 = memref.load %arg1[%c49] : memref<108xf32, #tpu.memory_space<smem>>
    %304 = vector.broadcast %303 : f32 to vector<8x256xf32>
    %305 = arith.mulf %229, %304 : vector<8x256xf32>
    %306 = arith.addf %302, %305 : vector<8x256xf32>
    %c53 = arith.constant 53 : index
    %307 = memref.load %arg1[%c53] : memref<108xf32, #tpu.memory_space<smem>>
    %308 = vector.broadcast %307 : f32 to vector<8x256xf32>
    %309 = arith.mulf %221, %308 : vector<8x256xf32>
    %310 = arith.addf %306, %309 : vector<8x256xf32>
    %c57 = arith.constant 57 : index
    %311 = memref.load %arg1[%c57] : memref<108xf32, #tpu.memory_space<smem>>
    %312 = vector.broadcast %311 : f32 to vector<8x256xf32>
    %313 = arith.mulf %231, %312 : vector<8x256xf32>
    %314 = arith.addf %310, %313 : vector<8x256xf32>
    %c61 = arith.constant 61 : index
    %315 = memref.load %arg1[%c61] : memref<108xf32, #tpu.memory_space<smem>>
    %316 = vector.broadcast %315 : f32 to vector<8x256xf32>
    %317 = arith.mulf %233, %316 : vector<8x256xf32>
    %318 = arith.addf %314, %317 : vector<8x256xf32>
    %c65 = arith.constant 65 : index
    %319 = memref.load %arg1[%c65] : memref<108xf32, #tpu.memory_space<smem>>
    %320 = vector.broadcast %319 : f32 to vector<8x256xf32>
    %321 = arith.mulf %235, %320 : vector<8x256xf32>
    %322 = arith.addf %318, %321 : vector<8x256xf32>
    %c69 = arith.constant 69 : index
    %323 = memref.load %arg1[%c69] : memref<108xf32, #tpu.memory_space<smem>>
    %324 = vector.broadcast %323 : f32 to vector<8x256xf32>
    %325 = arith.mulf %237, %324 : vector<8x256xf32>
    %326 = arith.addf %322, %325 : vector<8x256xf32>
    %c73 = arith.constant 73 : index
    %327 = memref.load %arg1[%c73] : memref<108xf32, #tpu.memory_space<smem>>
    %c7_i32_81 = arith.constant 7 : i32
    %328 = tpu.dynamic_rotate %223 by %c7_i32_81 dim 0 : vector<8x256xf32>, i32 -> vector<8x256xf32>
    %329 = arith.mulf %328, %19 : vector<8x256xf32>
    %330 = vector.broadcast %327 : f32 to vector<8x256xf32>
    %331 = arith.mulf %329, %330 : vector<8x256xf32>
    %332 = arith.addf %326, %331 : vector<8x256xf32>
    %c77 = arith.constant 77 : index
    %333 = memref.load %arg1[%c77] : memref<108xf32, #tpu.memory_space<smem>>
    %c7_i32_82 = arith.constant 7 : i32
    %334 = tpu.dynamic_rotate %225 by %c7_i32_82 dim 0 : vector<8x256xf32>, i32 -> vector<8x256xf32>
    %335 = arith.mulf %334, %19 : vector<8x256xf32>
    %336 = vector.broadcast %333 : f32 to vector<8x256xf32>
    %337 = arith.mulf %335, %336 : vector<8x256xf32>
    %338 = arith.addf %332, %337 : vector<8x256xf32>
    %c81 = arith.constant 81 : index
    %339 = memref.load %arg1[%c81] : memref<108xf32, #tpu.memory_space<smem>>
    %c7_i32_83 = arith.constant 7 : i32
    %340 = tpu.dynamic_rotate %227 by %c7_i32_83 dim 0 : vector<8x256xf32>, i32 -> vector<8x256xf32>
    %341 = arith.mulf %340, %19 : vector<8x256xf32>
    %342 = vector.broadcast %339 : f32 to vector<8x256xf32>
    %343 = arith.mulf %341, %342 : vector<8x256xf32>
    %344 = arith.addf %338, %343 : vector<8x256xf32>
    %c85 = arith.constant 85 : index
    %345 = memref.load %arg1[%c85] : memref<108xf32, #tpu.memory_space<smem>>
    %c7_i32_84 = arith.constant 7 : i32
    %346 = tpu.dynamic_rotate %229 by %c7_i32_84 dim 0 : vector<8x256xf32>, i32 -> vector<8x256xf32>
    %347 = arith.mulf %346, %19 : vector<8x256xf32>
    %348 = vector.broadcast %345 : f32 to vector<8x256xf32>
    %349 = arith.mulf %347, %348 : vector<8x256xf32>
    %350 = arith.addf %344, %349 : vector<8x256xf32>
    %c89 = arith.constant 89 : index
    %351 = memref.load %arg1[%c89] : memref<108xf32, #tpu.memory_space<smem>>
    %c7_i32_85 = arith.constant 7 : i32
    %352 = tpu.dynamic_rotate %221 by %c7_i32_85 dim 0 : vector<8x256xf32>, i32 -> vector<8x256xf32>
    %353 = arith.mulf %352, %19 : vector<8x256xf32>
    %354 = vector.broadcast %351 : f32 to vector<8x256xf32>
    %355 = arith.mulf %353, %354 : vector<8x256xf32>
    %356 = arith.addf %350, %355 : vector<8x256xf32>
    %c93 = arith.constant 93 : index
    %357 = memref.load %arg1[%c93] : memref<108xf32, #tpu.memory_space<smem>>
    %c7_i32_86 = arith.constant 7 : i32
    %358 = tpu.dynamic_rotate %231 by %c7_i32_86 dim 0 : vector<8x256xf32>, i32 -> vector<8x256xf32>
    %359 = arith.mulf %358, %19 : vector<8x256xf32>
    %360 = vector.broadcast %357 : f32 to vector<8x256xf32>
    %361 = arith.mulf %359, %360 : vector<8x256xf32>
    %362 = arith.addf %356, %361 : vector<8x256xf32>
    %c97 = arith.constant 97 : index
    %363 = memref.load %arg1[%c97] : memref<108xf32, #tpu.memory_space<smem>>
    %c7_i32_87 = arith.constant 7 : i32
    %364 = tpu.dynamic_rotate %233 by %c7_i32_87 dim 0 : vector<8x256xf32>, i32 -> vector<8x256xf32>
    %365 = arith.mulf %364, %19 : vector<8x256xf32>
    %366 = vector.broadcast %363 : f32 to vector<8x256xf32>
    %367 = arith.mulf %365, %366 : vector<8x256xf32>
    %368 = arith.addf %362, %367 : vector<8x256xf32>
    %c101 = arith.constant 101 : index
    %369 = memref.load %arg1[%c101] : memref<108xf32, #tpu.memory_space<smem>>
    %c7_i32_88 = arith.constant 7 : i32
    %370 = tpu.dynamic_rotate %235 by %c7_i32_88 dim 0 : vector<8x256xf32>, i32 -> vector<8x256xf32>
    %371 = arith.mulf %370, %19 : vector<8x256xf32>
    %372 = vector.broadcast %369 : f32 to vector<8x256xf32>
    %373 = arith.mulf %371, %372 : vector<8x256xf32>
    %374 = arith.addf %368, %373 : vector<8x256xf32>
    %c105 = arith.constant 105 : index
    %375 = memref.load %arg1[%c105] : memref<108xf32, #tpu.memory_space<smem>>
    %c7_i32_89 = arith.constant 7 : i32
    %376 = tpu.dynamic_rotate %237 by %c7_i32_89 dim 0 : vector<8x256xf32>, i32 -> vector<8x256xf32>
    %377 = arith.mulf %376, %19 : vector<8x256xf32>
    %378 = vector.broadcast %375 : f32 to vector<8x256xf32>
    %379 = arith.mulf %377, %378 : vector<8x256xf32>
    %380 = arith.addf %374, %379 : vector<8x256xf32>
    %c1_90 = arith.constant 1 : index
    %381 = memref.load %arg2[%c1_90] : memref<4xf32, #tpu.memory_space<smem>>
    %382 = vector.broadcast %381 : f32 to vector<8x256xf32>
    %383 = arith.addf %380, %382 : vector<8x256xf32>
    %cst_91 = arith.constant dense<0.000000e+00> : vector<256xf32>
    %384 = vector.multi_reduction <add>, %383, %cst_91 [0] : vector<8x256xf32> to vector<256xf32>
    %385 = vector.shape_cast %384 : vector<256xf32> to vector<1x256xf32>
    %cst_92 = arith.constant dense<0.000000e+00> : vector<1xf32>
    %386 = vector.multi_reduction <add>, %385, %cst_92 [1] : vector<1x256xf32> to vector<1xf32>
    %387 = vector.shape_cast %386 : vector<1xf32> to vector<1x1xf32>
    %388 = arith.mulf %383, %383 : vector<8x256xf32>
    %cst_93 = arith.constant dense<0.000000e+00> : vector<256xf32>
    %389 = vector.multi_reduction <add>, %388, %cst_93 [0] : vector<8x256xf32> to vector<256xf32>
    %390 = vector.shape_cast %389 : vector<256xf32> to vector<1x256xf32>
    %cst_94 = arith.constant dense<0.000000e+00> : vector<1xf32>
    %391 = vector.multi_reduction <add>, %390, %cst_94 [1] : vector<1x256xf32> to vector<1xf32>
    %392 = vector.shape_cast %391 : vector<1xf32> to vector<1x1xf32>
    %cst_95 = arith.constant 4.8828125E-4 : f32
    %393 = vector.broadcast %cst_95 : f32 to vector<1x1xf32>
    %394 = arith.mulf %387, %393 : vector<1x1xf32>
    %cst_96 = arith.constant 4.8828125E-4 : f32
    %395 = vector.broadcast %cst_96 : f32 to vector<1x1xf32>
    %396 = arith.mulf %392, %395 : vector<1x1xf32>
    %397 = arith.mulf %394, %394 : vector<1x1xf32>
    %398 = arith.subf %396, %397 : vector<1x1xf32>
    %cst_97 = arith.constant 0.000000e+00 : f32
    %399 = vector.broadcast %cst_97 : f32 to vector<1x1xf32>
    %400 = arith.maximumf %398, %399 : vector<1x1xf32>
    %cst_98 = arith.constant 9.99999974E-6 : f32
    %401 = vector.broadcast %cst_98 : f32 to vector<1x1xf32>
    %402 = arith.addf %400, %401 : vector<1x1xf32>
    %403 = math.rsqrt %402 : vector<1x1xf32>
    %c1_99 = arith.constant 1 : index
    %404 = memref.load %arg3[%c1_99] : memref<4xf32, #tpu.memory_space<smem>>
    %405 = vector.broadcast %404 : f32 to vector<1x1xf32>
    %406 = arith.mulf %403, %405 : vector<1x1xf32>
    %c1_100 = arith.constant 1 : index
    %407 = memref.load %arg4[%c1_100] : memref<4xf32, #tpu.memory_space<smem>>
    %408 = arith.mulf %394, %406 : vector<1x1xf32>
    %409 = vector.broadcast %407 : f32 to vector<1x1xf32>
    %410 = arith.subf %409, %408 : vector<1x1xf32>
    %411 = vector.broadcast %406 : vector<1x1xf32> to vector<8x256xf32>
    %412 = arith.mulf %383, %411 : vector<8x256xf32>
    %413 = vector.broadcast %410 : vector<1x1xf32> to vector<8x256xf32>
    %414 = arith.addf %412, %413 : vector<8x256xf32>
    %cst_101 = arith.constant 0.000000e+00 : f32
    %415 = vector.broadcast %cst_101 : f32 to vector<8x256xf32>
    %416 = arith.maximumf %414, %415 : vector<8x256xf32>
    %c1_102 = arith.constant 1 : index
    %c0_103 = arith.constant 0 : index
    %c0_104 = arith.constant 0 : index
    %417 = vector.load %arg10[%c1_102, %c0_103, %c0_104] : memref<4x8x256xf32, #tpu.memory_space<vmem>>, vector<1x8x256xf32>
    %418 = vector.shape_cast %417 : vector<1x8x256xf32> to vector<8x256xf32>
    %419 = vector.shape_cast %416 : vector<8x256xf32> to vector<1x8x256xf32>
    tpu.vector_store %arg10[%c1_102, %c0_103, %c0_104], %419 {strides = array<i32>} : memref<4x8x256xf32, #tpu.memory_space<vmem>>, vector<1x8x256xf32>,
    %c0_105 = arith.constant 0 : index
    %c2_106 = arith.constant 2 : index
    %c0_107 = arith.constant 0 : index
    %c0_108 = arith.constant 0 : index
    %420 = vector.load %arg8[%c0_105, %c2_106, %c0_107, %c0_108] : memref<1x4x8x256xf32, #tpu.memory_space<vmem>>, vector<1x1x8x256xf32>
    %421 = vector.shape_cast %420 : vector<1x1x8x256xf32> to vector<8x256xf32>
    %c17_i32_109 = arith.constant 17 : i32
    %422 = tpu.dynamic_rotate %421 by %c17_i32_109 dim 1 : vector<8x256xf32>, i32 -> vector<8x256xf32>
    %423 = arith.mulf %422, %1 : vector<8x256xf32>
    %c16_i32_110 = arith.constant 16 : i32
    %424 = tpu.dynamic_rotate %421 by %c16_i32_110 dim 1 : vector<8x256xf32>, i32 -> vector<8x256xf32>
    %425 = arith.mulf %424, %3 : vector<8x256xf32>
    %c15_i32_111 = arith.constant 15 : i32
    %426 = tpu.dynamic_rotate %421 by %c15_i32_111 dim 1 : vector<8x256xf32>, i32 -> vector<8x256xf32>
    %427 = arith.mulf %426, %5 : vector<8x256xf32>
    %c1_i32_112 = arith.constant 1 : i32
    %428 = tpu.dynamic_rotate %421 by %c1_i32_112 dim 1 : vector<8x256xf32>, i32 -> vector<8x256xf32>
    %429 = arith.mulf %428, %7 : vector<8x256xf32>
    %c255_i32_113 = arith.constant 255 : i32
    %430 = tpu.dynamic_rotate %421 by %c255_i32_113 dim 1 : vector<8x256xf32>, i32 -> vector<8x256xf32>
    %431 = arith.mulf %430, %9 : vector<8x256xf32>
    %c241_i32_114 = arith.constant 241 : i32
    %432 = tpu.dynamic_rotate %421 by %c241_i32_114 dim 1 : vector<8x256xf32>, i32 -> vector<8x256xf32>
    %433 = arith.mulf %432, %11 : vector<8x256xf32>
    %c240_i32_115 = arith.constant 240 : i32
    %434 = tpu.dynamic_rotate %421 by %c240_i32_115 dim 1 : vector<8x256xf32>, i32 -> vector<8x256xf32>
    %435 = arith.mulf %434, %13 : vector<8x256xf32>
    %c239_i32_116 = arith.constant 239 : i32
    %436 = tpu.dynamic_rotate %421 by %c239_i32_116 dim 1 : vector<8x256xf32>, i32 -> vector<8x256xf32>
    %437 = arith.mulf %436, %15 : vector<8x256xf32>
    %c2_117 = arith.constant 2 : index
    %438 = memref.load %arg1[%c2_117] : memref<108xf32, #tpu.memory_space<smem>>
    %c1_i32_118 = arith.constant 1 : i32
    %439 = tpu.dynamic_rotate %423 by %c1_i32_118 dim 0 : vector<8x256xf32>, i32 -> vector<8x256xf32>
    %440 = arith.mulf %439, %17 : vector<8x256xf32>
    %441 = vector.broadcast %438 : f32 to vector<8x256xf32>
    %442 = arith.mulf %440, %441 : vector<8x256xf32>
    %c6_119 = arith.constant 6 : index
    %443 = memref.load %arg1[%c6_119] : memref<108xf32, #tpu.memory_space<smem>>
    %c1_i32_120 = arith.constant 1 : i32
    %444 = tpu.dynamic_rotate %425 by %c1_i32_120 dim 0 : vector<8x256xf32>, i32 -> vector<8x256xf32>
    %445 = arith.mulf %444, %17 : vector<8x256xf32>
    %446 = vector.broadcast %443 : f32 to vector<8x256xf32>
    %447 = arith.mulf %445, %446 : vector<8x256xf32>
    %448 = arith.addf %442, %447 : vector<8x256xf32>
    %c10 = arith.constant 10 : index
    %449 = memref.load %arg1[%c10] : memref<108xf32, #tpu.memory_space<smem>>
    %c1_i32_121 = arith.constant 1 : i32
    %450 = tpu.dynamic_rotate %427 by %c1_i32_121 dim 0 : vector<8x256xf32>, i32 -> vector<8x256xf32>
    %451 = arith.mulf %450, %17 : vector<8x256xf32>
    %452 = vector.broadcast %449 : f32 to vector<8x256xf32>
    %453 = arith.mulf %451, %452 : vector<8x256xf32>
    %454 = arith.addf %448, %453 : vector<8x256xf32>
    %c14 = arith.constant 14 : index
    %455 = memref.load %arg1[%c14] : memref<108xf32, #tpu.memory_space<smem>>
    %c1_i32_122 = arith.constant 1 : i32
    %456 = tpu.dynamic_rotate %429 by %c1_i32_122 dim 0 : vector<8x256xf32>, i32 -> vector<8x256xf32>
    %457 = arith.mulf %456, %17 : vector<8x256xf32>
    %458 = vector.broadcast %455 : f32 to vector<8x256xf32>
    %459 = arith.mulf %457, %458 : vector<8x256xf32>
    %460 = arith.addf %454, %459 : vector<8x256xf32>
    %c18 = arith.constant 18 : index
    %461 = memref.load %arg1[%c18] : memref<108xf32, #tpu.memory_space<smem>>
    %c1_i32_123 = arith.constant 1 : i32
    %462 = tpu.dynamic_rotate %421 by %c1_i32_123 dim 0 : vector<8x256xf32>, i32 -> vector<8x256xf32>
    %463 = arith.mulf %462, %17 : vector<8x256xf32>
    %464 = vector.broadcast %461 : f32 to vector<8x256xf32>
    %465 = arith.mulf %463, %464 : vector<8x256xf32>
    %466 = arith.addf %460, %465 : vector<8x256xf32>
    %c22 = arith.constant 22 : index
    %467 = memref.load %arg1[%c22] : memref<108xf32, #tpu.memory_space<smem>>
    %c1_i32_124 = arith.constant 1 : i32
    %468 = tpu.dynamic_rotate %431 by %c1_i32_124 dim 0 : vector<8x256xf32>, i32 -> vector<8x256xf32>
    %469 = arith.mulf %468, %17 : vector<8x256xf32>
    %470 = vector.broadcast %467 : f32 to vector<8x256xf32>
    %471 = arith.mulf %469, %470 : vector<8x256xf32>
    %472 = arith.addf %466, %471 : vector<8x256xf32>
    %c26 = arith.constant 26 : index
    %473 = memref.load %arg1[%c26] : memref<108xf32, #tpu.memory_space<smem>>
    %c1_i32_125 = arith.constant 1 : i32
    %474 = tpu.dynamic_rotate %433 by %c1_i32_125 dim 0 : vector<8x256xf32>, i32 -> vector<8x256xf32>
    %475 = arith.mulf %474, %17 : vector<8x256xf32>
    %476 = vector.broadcast %473 : f32 to vector<8x256xf32>
    %477 = arith.mulf %475, %476 : vector<8x256xf32>
    %478 = arith.addf %472, %477 : vector<8x256xf32>
    %c30 = arith.constant 30 : index
    %479 = memref.load %arg1[%c30] : memref<108xf32, #tpu.memory_space<smem>>
    %c1_i32_126 = arith.constant 1 : i32
    %480 = tpu.dynamic_rotate %435 by %c1_i32_126 dim 0 : vector<8x256xf32>, i32 -> vector<8x256xf32>
    %481 = arith.mulf %480, %17 : vector<8x256xf32>
    %482 = vector.broadcast %479 : f32 to vector<8x256xf32>
    %483 = arith.mulf %481, %482 : vector<8x256xf32>
    %484 = arith.addf %478, %483 : vector<8x256xf32>
    %c34 = arith.constant 34 : index
    %485 = memref.load %arg1[%c34] : memref<108xf32, #tpu.memory_space<smem>>
    %c1_i32_127 = arith.constant 1 : i32
    %486 = tpu.dynamic_rotate %437 by %c1_i32_127 dim 0 : vector<8x256xf32>, i32 -> vector<8x256xf32>
    %487 = arith.mulf %486, %17 : vector<8x256xf32>
    %488 = vector.broadcast %485 : f32 to vector<8x256xf32>
    %489 = arith.mulf %487, %488 : vector<8x256xf32>
    %490 = arith.addf %484, %489 : vector<8x256xf32>
    %c38 = arith.constant 38 : index
    %491 = memref.load %arg1[%c38] : memref<108xf32, #tpu.memory_space<smem>>
    %492 = vector.broadcast %491 : f32 to vector<8x256xf32>
    %493 = arith.mulf %423, %492 : vector<8x256xf32>
    %494 = arith.addf %490, %493 : vector<8x256xf32>
    %c42 = arith.constant 42 : index
    %495 = memref.load %arg1[%c42] : memref<108xf32, #tpu.memory_space<smem>>
    %496 = vector.broadcast %495 : f32 to vector<8x256xf32>
    %497 = arith.mulf %425, %496 : vector<8x256xf32>
    %498 = arith.addf %494, %497 : vector<8x256xf32>
    %c46 = arith.constant 46 : index
    %499 = memref.load %arg1[%c46] : memref<108xf32, #tpu.memory_space<smem>>
    %500 = vector.broadcast %499 : f32 to vector<8x256xf32>
    %501 = arith.mulf %427, %500 : vector<8x256xf32>
    %502 = arith.addf %498, %501 : vector<8x256xf32>
    %c50 = arith.constant 50 : index
    %503 = memref.load %arg1[%c50] : memref<108xf32, #tpu.memory_space<smem>>
    %504 = vector.broadcast %503 : f32 to vector<8x256xf32>
    %505 = arith.mulf %429, %504 : vector<8x256xf32>
    %506 = arith.addf %502, %505 : vector<8x256xf32>
    %c54 = arith.constant 54 : index
    %507 = memref.load %arg1[%c54] : memref<108xf32, #tpu.memory_space<smem>>
    %508 = vector.broadcast %507 : f32 to vector<8x256xf32>
    %509 = arith.mulf %421, %508 : vector<8x256xf32>
    %510 = arith.addf %506, %509 : vector<8x256xf32>
    %c58 = arith.constant 58 : index
    %511 = memref.load %arg1[%c58] : memref<108xf32, #tpu.memory_space<smem>>
    %512 = vector.broadcast %511 : f32 to vector<8x256xf32>
    %513 = arith.mulf %431, %512 : vector<8x256xf32>
    %514 = arith.addf %510, %513 : vector<8x256xf32>
    %c62 = arith.constant 62 : index
    %515 = memref.load %arg1[%c62] : memref<108xf32, #tpu.memory_space<smem>>
    %516 = vector.broadcast %515 : f32 to vector<8x256xf32>
    %517 = arith.mulf %433, %516 : vector<8x256xf32>
    %518 = arith.addf %514, %517 : vector<8x256xf32>
    %c66 = arith.constant 66 : index
    %519 = memref.load %arg1[%c66] : memref<108xf32, #tpu.memory_space<smem>>
    %520 = vector.broadcast %519 : f32 to vector<8x256xf32>
    %521 = arith.mulf %435, %520 : vector<8x256xf32>
    %522 = arith.addf %518, %521 : vector<8x256xf32>
    %c70 = arith.constant 70 : index
    %523 = memref.load %arg1[%c70] : memref<108xf32, #tpu.memory_space<smem>>
    %524 = vector.broadcast %523 : f32 to vector<8x256xf32>
    %525 = arith.mulf %437, %524 : vector<8x256xf32>
    %526 = arith.addf %522, %525 : vector<8x256xf32>
    %c74 = arith.constant 74 : index
    %527 = memref.load %arg1[%c74] : memref<108xf32, #tpu.memory_space<smem>>
    %c7_i32_128 = arith.constant 7 : i32
    %528 = tpu.dynamic_rotate %423 by %c7_i32_128 dim 0 : vector<8x256xf32>, i32 -> vector<8x256xf32>
    %529 = arith.mulf %528, %19 : vector<8x256xf32>
    %530 = vector.broadcast %527 : f32 to vector<8x256xf32>
    %531 = arith.mulf %529, %530 : vector<8x256xf32>
    %532 = arith.addf %526, %531 : vector<8x256xf32>
    %c78 = arith.constant 78 : index
    %533 = memref.load %arg1[%c78] : memref<108xf32, #tpu.memory_space<smem>>
    %c7_i32_129 = arith.constant 7 : i32
    %534 = tpu.dynamic_rotate %425 by %c7_i32_129 dim 0 : vector<8x256xf32>, i32 -> vector<8x256xf32>
    %535 = arith.mulf %534, %19 : vector<8x256xf32>
    %536 = vector.broadcast %533 : f32 to vector<8x256xf32>
    %537 = arith.mulf %535, %536 : vector<8x256xf32>
    %538 = arith.addf %532, %537 : vector<8x256xf32>
    %c82 = arith.constant 82 : index
    %539 = memref.load %arg1[%c82] : memref<108xf32, #tpu.memory_space<smem>>
    %c7_i32_130 = arith.constant 7 : i32
    %540 = tpu.dynamic_rotate %427 by %c7_i32_130 dim 0 : vector<8x256xf32>, i32 -> vector<8x256xf32>
    %541 = arith.mulf %540, %19 : vector<8x256xf32>
    %542 = vector.broadcast %539 : f32 to vector<8x256xf32>
    %543 = arith.mulf %541, %542 : vector<8x256xf32>
    %544 = arith.addf %538, %543 : vector<8x256xf32>
    %c86 = arith.constant 86 : index
    %545 = memref.load %arg1[%c86] : memref<108xf32, #tpu.memory_space<smem>>
    %c7_i32_131 = arith.constant 7 : i32
    %546 = tpu.dynamic_rotate %429 by %c7_i32_131 dim 0 : vector<8x256xf32>, i32 -> vector<8x256xf32>
    %547 = arith.mulf %546, %19 : vector<8x256xf32>
    %548 = vector.broadcast %545 : f32 to vector<8x256xf32>
    %549 = arith.mulf %547, %548 : vector<8x256xf32>
    %550 = arith.addf %544, %549 : vector<8x256xf32>
    %c90 = arith.constant 90 : index
    %551 = memref.load %arg1[%c90] : memref<108xf32, #tpu.memory_space<smem>>
    %c7_i32_132 = arith.constant 7 : i32
    %552 = tpu.dynamic_rotate %421 by %c7_i32_132 dim 0 : vector<8x256xf32>, i32 -> vector<8x256xf32>
    %553 = arith.mulf %552, %19 : vector<8x256xf32>
    %554 = vector.broadcast %551 : f32 to vector<8x256xf32>
    %555 = arith.mulf %553, %554 : vector<8x256xf32>
    %556 = arith.addf %550, %555 : vector<8x256xf32>
    %c94 = arith.constant 94 : index
    %557 = memref.load %arg1[%c94] : memref<108xf32, #tpu.memory_space<smem>>
    %c7_i32_133 = arith.constant 7 : i32
    %558 = tpu.dynamic_rotate %431 by %c7_i32_133 dim 0 : vector<8x256xf32>, i32 -> vector<8x256xf32>
    %559 = arith.mulf %558, %19 : vector<8x256xf32>
    %560 = vector.broadcast %557 : f32 to vector<8x256xf32>
    %561 = arith.mulf %559, %560 : vector<8x256xf32>
    %562 = arith.addf %556, %561 : vector<8x256xf32>
    %c98 = arith.constant 98 : index
    %563 = memref.load %arg1[%c98] : memref<108xf32, #tpu.memory_space<smem>>
    %c7_i32_134 = arith.constant 7 : i32
    %564 = tpu.dynamic_rotate %433 by %c7_i32_134 dim 0 : vector<8x256xf32>, i32 -> vector<8x256xf32>
    %565 = arith.mulf %564, %19 : vector<8x256xf32>
    %566 = vector.broadcast %563 : f32 to vector<8x256xf32>
    %567 = arith.mulf %565, %566 : vector<8x256xf32>
    %568 = arith.addf %562, %567 : vector<8x256xf32>
    %c102 = arith.constant 102 : index
    %569 = memref.load %arg1[%c102] : memref<108xf32, #tpu.memory_space<smem>>
    %c7_i32_135 = arith.constant 7 : i32
    %570 = tpu.dynamic_rotate %435 by %c7_i32_135 dim 0 : vector<8x256xf32>, i32 -> vector<8x256xf32>
    %571 = arith.mulf %570, %19 : vector<8x256xf32>
    %572 = vector.broadcast %569 : f32 to vector<8x256xf32>
    %573 = arith.mulf %571, %572 : vector<8x256xf32>
    %574 = arith.addf %568, %573 : vector<8x256xf32>
    %c106 = arith.constant 106 : index
    %575 = memref.load %arg1[%c106] : memref<108xf32, #tpu.memory_space<smem>>
    %c7_i32_136 = arith.constant 7 : i32
    %576 = tpu.dynamic_rotate %437 by %c7_i32_136 dim 0 : vector<8x256xf32>, i32 -> vector<8x256xf32>
    %577 = arith.mulf %576, %19 : vector<8x256xf32>
    %578 = vector.broadcast %575 : f32 to vector<8x256xf32>
    %579 = arith.mulf %577, %578 : vector<8x256xf32>
    %580 = arith.addf %574, %579 : vector<8x256xf32>
    %c2_137 = arith.constant 2 : index
    %581 = memref.load %arg2[%c2_137] : memref<4xf32, #tpu.memory_space<smem>>
    %582 = vector.broadcast %581 : f32 to vector<8x256xf32>
    %583 = arith.addf %580, %582 : vector<8x256xf32>
    %cst_138 = arith.constant dense<0.000000e+00> : vector<256xf32>
    %584 = vector.multi_reduction <add>, %583, %cst_138 [0] : vector<8x256xf32> to vector<256xf32>
    %585 = vector.shape_cast %584 : vector<256xf32> to vector<1x256xf32>
    %cst_139 = arith.constant dense<0.000000e+00> : vector<1xf32>
    %586 = vector.multi_reduction <add>, %585, %cst_139 [1] : vector<1x256xf32> to vector<1xf32>
    %587 = vector.shape_cast %586 : vector<1xf32> to vector<1x1xf32>
    %588 = arith.mulf %583, %583 : vector<8x256xf32>
    %cst_140 = arith.constant dense<0.000000e+00> : vector<256xf32>
    %589 = vector.multi_reduction <add>, %588, %cst_140 [0] : vector<8x256xf32> to vector<256xf32>
    %590 = vector.shape_cast %589 : vector<256xf32> to vector<1x256xf32>
    %cst_141 = arith.constant dense<0.000000e+00> : vector<1xf32>
    %591 = vector.multi_reduction <add>, %590, %cst_141 [1] : vector<1x256xf32> to vector<1xf32>
    %592 = vector.shape_cast %591 : vector<1xf32> to vector<1x1xf32>
    %cst_142 = arith.constant 4.8828125E-4 : f32
    %593 = vector.broadcast %cst_142 : f32 to vector<1x1xf32>
    %594 = arith.mulf %587, %593 : vector<1x1xf32>
    %cst_143 = arith.constant 4.8828125E-4 : f32
    %595 = vector.broadcast %cst_143 : f32 to vector<1x1xf32>
    %596 = arith.mulf %592, %595 : vector<1x1xf32>
    %597 = arith.mulf %594, %594 : vector<1x1xf32>
    %598 = arith.subf %596, %597 : vector<1x1xf32>
    %cst_144 = arith.constant 0.000000e+00 : f32
    %599 = vector.broadcast %cst_144 : f32 to vector<1x1xf32>
    %600 = arith.maximumf %598, %599 : vector<1x1xf32>
    %cst_145 = arith.constant 9.99999974E-6 : f32
    %601 = vector.broadcast %cst_145 : f32 to vector<1x1xf32>
    %602 = arith.addf %600, %601 : vector<1x1xf32>
    %603 = math.rsqrt %602 : vector<1x1xf32>
    %c2_146 = arith.constant 2 : index
    %604 = memref.load %arg3[%c2_146] : memref<4xf32, #tpu.memory_space<smem>>
    %605 = vector.broadcast %604 : f32 to vector<1x1xf32>
    %606 = arith.mulf %603, %605 : vector<1x1xf32>
    %c2_147 = arith.constant 2 : index
    %607 = memref.load %arg4[%c2_147] : memref<4xf32, #tpu.memory_space<smem>>
    %608 = arith.mulf %594, %606 : vector<1x1xf32>
    %609 = vector.broadcast %607 : f32 to vector<1x1xf32>
    %610 = arith.subf %609, %608 : vector<1x1xf32>
    %611 = vector.broadcast %606 : vector<1x1xf32> to vector<8x256xf32>
    %612 = arith.mulf %583, %611 : vector<8x256xf32>
    %613 = vector.broadcast %610 : vector<1x1xf32> to vector<8x256xf32>
    %614 = arith.addf %612, %613 : vector<8x256xf32>
    %cst_148 = arith.constant 0.000000e+00 : f32
    %615 = vector.broadcast %cst_148 : f32 to vector<8x256xf32>
    %616 = arith.maximumf %614, %615 : vector<8x256xf32>
    %c2_149 = arith.constant 2 : index
    %c0_150 = arith.constant 0 : index
    %c0_151 = arith.constant 0 : index
    %617 = vector.load %arg10[%c2_149, %c0_150, %c0_151] : memref<4x8x256xf32, #tpu.memory_space<vmem>>, vector<1x8x256xf32>
    %618 = vector.shape_cast %617 : vector<1x8x256xf32> to vector<8x256xf32>
    %619 = vector.shape_cast %616 : vector<8x256xf32> to vector<1x8x256xf32>
    tpu.vector_store %arg10[%c2_149, %c0_150, %c0_151], %619 {strides = array<i32>} : memref<4x8x256xf32, #tpu.memory_space<vmem>>, vector<1x8x256xf32>,
    %c0_152 = arith.constant 0 : index
    %c3_153 = arith.constant 3 : index
    %c0_154 = arith.constant 0 : index
    %c0_155 = arith.constant 0 : index
    %620 = vector.load %arg8[%c0_152, %c3_153, %c0_154, %c0_155] : memref<1x4x8x256xf32, #tpu.memory_space<vmem>>, vector<1x1x8x256xf32>
    %621 = vector.shape_cast %620 : vector<1x1x8x256xf32> to vector<8x256xf32>
    %c17_i32_156 = arith.constant 17 : i32
    %622 = tpu.dynamic_rotate %621 by %c17_i32_156 dim 1 : vector<8x256xf32>, i32 -> vector<8x256xf32>
    %623 = arith.mulf %622, %1 : vector<8x256xf32>
    %c16_i32_157 = arith.constant 16 : i32
    %624 = tpu.dynamic_rotate %621 by %c16_i32_157 dim 1 : vector<8x256xf32>, i32 -> vector<8x256xf32>
    %625 = arith.mulf %624, %3 : vector<8x256xf32>
    %c15_i32_158 = arith.constant 15 : i32
    %626 = tpu.dynamic_rotate %621 by %c15_i32_158 dim 1 : vector<8x256xf32>, i32 -> vector<8x256xf32>
    %627 = arith.mulf %626, %5 : vector<8x256xf32>
    %c1_i32_159 = arith.constant 1 : i32
    %628 = tpu.dynamic_rotate %621 by %c1_i32_159 dim 1 : vector<8x256xf32>, i32 -> vector<8x256xf32>
    %629 = arith.mulf %628, %7 : vector<8x256xf32>
    %c255_i32_160 = arith.constant 255 : i32
    %630 = tpu.dynamic_rotate %621 by %c255_i32_160 dim 1 : vector<8x256xf32>, i32 -> vector<8x256xf32>
    %631 = arith.mulf %630, %9 : vector<8x256xf32>
    %c241_i32_161 = arith.constant 241 : i32
    %632 = tpu.dynamic_rotate %621 by %c241_i32_161 dim 1 : vector<8x256xf32>, i32 -> vector<8x256xf32>
    %633 = arith.mulf %632, %11 : vector<8x256xf32>
    %c240_i32_162 = arith.constant 240 : i32
    %634 = tpu.dynamic_rotate %621 by %c240_i32_162 dim 1 : vector<8x256xf32>, i32 -> vector<8x256xf32>
    %635 = arith.mulf %634, %13 : vector<8x256xf32>
    %c239_i32_163 = arith.constant 239 : i32
    %636 = tpu.dynamic_rotate %621 by %c239_i32_163 dim 1 : vector<8x256xf32>, i32 -> vector<8x256xf32>
    %637 = arith.mulf %636, %15 : vector<8x256xf32>
    %c3_164 = arith.constant 3 : index
    %638 = memref.load %arg1[%c3_164] : memref<108xf32, #tpu.memory_space<smem>>
    %c1_i32_165 = arith.constant 1 : i32
    %639 = tpu.dynamic_rotate %623 by %c1_i32_165 dim 0 : vector<8x256xf32>, i32 -> vector<8x256xf32>
    %640 = arith.mulf %639, %17 : vector<8x256xf32>
    %641 = vector.broadcast %638 : f32 to vector<8x256xf32>
    %642 = arith.mulf %640, %641 : vector<8x256xf32>
    %c7_166 = arith.constant 7 : index
    %643 = memref.load %arg1[%c7_166] : memref<108xf32, #tpu.memory_space<smem>>
    %c1_i32_167 = arith.constant 1 : i32
    %644 = tpu.dynamic_rotate %625 by %c1_i32_167 dim 0 : vector<8x256xf32>, i32 -> vector<8x256xf32>
    %645 = arith.mulf %644, %17 : vector<8x256xf32>
    %646 = vector.broadcast %643 : f32 to vector<8x256xf32>
    %647 = arith.mulf %645, %646 : vector<8x256xf32>
    %648 = arith.addf %642, %647 : vector<8x256xf32>
    %c11_168 = arith.constant 11 : index
    %649 = memref.load %arg1[%c11_168] : memref<108xf32, #tpu.memory_space<smem>>
    %c1_i32_169 = arith.constant 1 : i32
    %650 = tpu.dynamic_rotate %627 by %c1_i32_169 dim 0 : vector<8x256xf32>, i32 -> vector<8x256xf32>
    %651 = arith.mulf %650, %17 : vector<8x256xf32>
    %652 = vector.broadcast %649 : f32 to vector<8x256xf32>
    %653 = arith.mulf %651, %652 : vector<8x256xf32>
    %654 = arith.addf %648, %653 : vector<8x256xf32>
    %c15 = arith.constant 15 : index
    %655 = memref.load %arg1[%c15] : memref<108xf32, #tpu.memory_space<smem>>
    %c1_i32_170 = arith.constant 1 : i32
    %656 = tpu.dynamic_rotate %629 by %c1_i32_170 dim 0 : vector<8x256xf32>, i32 -> vector<8x256xf32>
    %657 = arith.mulf %656, %17 : vector<8x256xf32>
    %658 = vector.broadcast %655 : f32 to vector<8x256xf32>
    %659 = arith.mulf %657, %658 : vector<8x256xf32>
    %660 = arith.addf %654, %659 : vector<8x256xf32>
    %c19 = arith.constant 19 : index
    %661 = memref.load %arg1[%c19] : memref<108xf32, #tpu.memory_space<smem>>
    %c1_i32_171 = arith.constant 1 : i32
    %662 = tpu.dynamic_rotate %621 by %c1_i32_171 dim 0 : vector<8x256xf32>, i32 -> vector<8x256xf32>
    %663 = arith.mulf %662, %17 : vector<8x256xf32>
    %664 = vector.broadcast %661 : f32 to vector<8x256xf32>
    %665 = arith.mulf %663, %664 : vector<8x256xf32>
    %666 = arith.addf %660, %665 : vector<8x256xf32>
    %c23 = arith.constant 23 : index
    %667 = memref.load %arg1[%c23] : memref<108xf32, #tpu.memory_space<smem>>
    %c1_i32_172 = arith.constant 1 : i32
    %668 = tpu.dynamic_rotate %631 by %c1_i32_172 dim 0 : vector<8x256xf32>, i32 -> vector<8x256xf32>
    %669 = arith.mulf %668, %17 : vector<8x256xf32>
    %670 = vector.broadcast %667 : f32 to vector<8x256xf32>
    %671 = arith.mulf %669, %670 : vector<8x256xf32>
    %672 = arith.addf %666, %671 : vector<8x256xf32>
    %c27 = arith.constant 27 : index
    %673 = memref.load %arg1[%c27] : memref<108xf32, #tpu.memory_space<smem>>
    %c1_i32_173 = arith.constant 1 : i32
    %674 = tpu.dynamic_rotate %633 by %c1_i32_173 dim 0 : vector<8x256xf32>, i32 -> vector<8x256xf32>
    %675 = arith.mulf %674, %17 : vector<8x256xf32>
    %676 = vector.broadcast %673 : f32 to vector<8x256xf32>
    %677 = arith.mulf %675, %676 : vector<8x256xf32>
    %678 = arith.addf %672, %677 : vector<8x256xf32>
    %c31 = arith.constant 31 : index
    %679 = memref.load %arg1[%c31] : memref<108xf32, #tpu.memory_space<smem>>
    %c1_i32_174 = arith.constant 1 : i32
    %680 = tpu.dynamic_rotate %635 by %c1_i32_174 dim 0 : vector<8x256xf32>, i32 -> vector<8x256xf32>
    %681 = arith.mulf %680, %17 : vector<8x256xf32>
    %682 = vector.broadcast %679 : f32 to vector<8x256xf32>
    %683 = arith.mulf %681, %682 : vector<8x256xf32>
    %684 = arith.addf %678, %683 : vector<8x256xf32>
    %c35 = arith.constant 35 : index
    %685 = memref.load %arg1[%c35] : memref<108xf32, #tpu.memory_space<smem>>
    %c1_i32_175 = arith.constant 1 : i32
    %686 = tpu.dynamic_rotate %637 by %c1_i32_175 dim 0 : vector<8x256xf32>, i32 -> vector<8x256xf32>
    %687 = arith.mulf %686, %17 : vector<8x256xf32>
    %688 = vector.broadcast %685 : f32 to vector<8x256xf32>
    %689 = arith.mulf %687, %688 : vector<8x256xf32>
    %690 = arith.addf %684, %689 : vector<8x256xf32>
    %c39 = arith.constant 39 : index
    %691 = memref.load %arg1[%c39] : memref<108xf32, #tpu.memory_space<smem>>
    %692 = vector.broadcast %691 : f32 to vector<8x256xf32>
    %693 = arith.mulf %623, %692 : vector<8x256xf32>
    %694 = arith.addf %690, %693 : vector<8x256xf32>
    %c43 = arith.constant 43 : index
    %695 = memref.load %arg1[%c43] : memref<108xf32, #tpu.memory_space<smem>>
    %696 = vector.broadcast %695 : f32 to vector<8x256xf32>
    %697 = arith.mulf %625, %696 : vector<8x256xf32>
    %698 = arith.addf %694, %697 : vector<8x256xf32>
    %c47 = arith.constant 47 : index
    %699 = memref.load %arg1[%c47] : memref<108xf32, #tpu.memory_space<smem>>
    %700 = vector.broadcast %699 : f32 to vector<8x256xf32>
    %701 = arith.mulf %627, %700 : vector<8x256xf32>
    %702 = arith.addf %698, %701 : vector<8x256xf32>
    %c51 = arith.constant 51 : index
    %703 = memref.load %arg1[%c51] : memref<108xf32, #tpu.memory_space<smem>>
    %704 = vector.broadcast %703 : f32 to vector<8x256xf32>
    %705 = arith.mulf %629, %704 : vector<8x256xf32>
    %706 = arith.addf %702, %705 : vector<8x256xf32>
    %c55 = arith.constant 55 : index
    %707 = memref.load %arg1[%c55] : memref<108xf32, #tpu.memory_space<smem>>
    %708 = vector.broadcast %707 : f32 to vector<8x256xf32>
    %709 = arith.mulf %621, %708 : vector<8x256xf32>
    %710 = arith.addf %706, %709 : vector<8x256xf32>
    %c59 = arith.constant 59 : index
    %711 = memref.load %arg1[%c59] : memref<108xf32, #tpu.memory_space<smem>>
    %712 = vector.broadcast %711 : f32 to vector<8x256xf32>
    %713 = arith.mulf %631, %712 : vector<8x256xf32>
    %714 = arith.addf %710, %713 : vector<8x256xf32>
    %c63 = arith.constant 63 : index
    %715 = memref.load %arg1[%c63] : memref<108xf32, #tpu.memory_space<smem>>
    %716 = vector.broadcast %715 : f32 to vector<8x256xf32>
    %717 = arith.mulf %633, %716 : vector<8x256xf32>
    %718 = arith.addf %714, %717 : vector<8x256xf32>
    %c67 = arith.constant 67 : index
    %719 = memref.load %arg1[%c67] : memref<108xf32, #tpu.memory_space<smem>>
    %720 = vector.broadcast %719 : f32 to vector<8x256xf32>
    %721 = arith.mulf %635, %720 : vector<8x256xf32>
    %722 = arith.addf %718, %721 : vector<8x256xf32>
    %c71 = arith.constant 71 : index
    %723 = memref.load %arg1[%c71] : memref<108xf32, #tpu.memory_space<smem>>
    %724 = vector.broadcast %723 : f32 to vector<8x256xf32>
    %725 = arith.mulf %637, %724 : vector<8x256xf32>
    %726 = arith.addf %722, %725 : vector<8x256xf32>
    %c75 = arith.constant 75 : index
    %727 = memref.load %arg1[%c75] : memref<108xf32, #tpu.memory_space<smem>>
    %c7_i32_176 = arith.constant 7 : i32
    %728 = tpu.dynamic_rotate %623 by %c7_i32_176 dim 0 : vector<8x256xf32>, i32 -> vector<8x256xf32>
    %729 = arith.mulf %728, %19 : vector<8x256xf32>
    %730 = vector.broadcast %727 : f32 to vector<8x256xf32>
    %731 = arith.mulf %729, %730 : vector<8x256xf32>
    %732 = arith.addf %726, %731 : vector<8x256xf32>
    %c79 = arith.constant 79 : index
    %733 = memref.load %arg1[%c79] : memref<108xf32, #tpu.memory_space<smem>>
    %c7_i32_177 = arith.constant 7 : i32
    %734 = tpu.dynamic_rotate %625 by %c7_i32_177 dim 0 : vector<8x256xf32>, i32 -> vector<8x256xf32>
    %735 = arith.mulf %734, %19 : vector<8x256xf32>
    %736 = vector.broadcast %733 : f32 to vector<8x256xf32>
    %737 = arith.mulf %735, %736 : vector<8x256xf32>
    %738 = arith.addf %732, %737 : vector<8x256xf32>
    %c83 = arith.constant 83 : index
    %739 = memref.load %arg1[%c83] : memref<108xf32, #tpu.memory_space<smem>>
    %c7_i32_178 = arith.constant 7 : i32
    %740 = tpu.dynamic_rotate %627 by %c7_i32_178 dim 0 : vector<8x256xf32>, i32 -> vector<8x256xf32>
    %741 = arith.mulf %740, %19 : vector<8x256xf32>
    %742 = vector.broadcast %739 : f32 to vector<8x256xf32>
    %743 = arith.mulf %741, %742 : vector<8x256xf32>
    %744 = arith.addf %738, %743 : vector<8x256xf32>
    %c87 = arith.constant 87 : index
    %745 = memref.load %arg1[%c87] : memref<108xf32, #tpu.memory_space<smem>>
    %c7_i32_179 = arith.constant 7 : i32
    %746 = tpu.dynamic_rotate %629 by %c7_i32_179 dim 0 : vector<8x256xf32>, i32 -> vector<8x256xf32>
    %747 = arith.mulf %746, %19 : vector<8x256xf32>
    %748 = vector.broadcast %745 : f32 to vector<8x256xf32>
    %749 = arith.mulf %747, %748 : vector<8x256xf32>
    %750 = arith.addf %744, %749 : vector<8x256xf32>
    %c91 = arith.constant 91 : index
    %751 = memref.load %arg1[%c91] : memref<108xf32, #tpu.memory_space<smem>>
    %c7_i32_180 = arith.constant 7 : i32
    %752 = tpu.dynamic_rotate %621 by %c7_i32_180 dim 0 : vector<8x256xf32>, i32 -> vector<8x256xf32>
    %753 = arith.mulf %752, %19 : vector<8x256xf32>
    %754 = vector.broadcast %751 : f32 to vector<8x256xf32>
    %755 = arith.mulf %753, %754 : vector<8x256xf32>
    %756 = arith.addf %750, %755 : vector<8x256xf32>
    %c95 = arith.constant 95 : index
    %757 = memref.load %arg1[%c95] : memref<108xf32, #tpu.memory_space<smem>>
    %c7_i32_181 = arith.constant 7 : i32
    %758 = tpu.dynamic_rotate %631 by %c7_i32_181 dim 0 : vector<8x256xf32>, i32 -> vector<8x256xf32>
    %759 = arith.mulf %758, %19 : vector<8x256xf32>
    %760 = vector.broadcast %757 : f32 to vector<8x256xf32>
    %761 = arith.mulf %759, %760 : vector<8x256xf32>
    %762 = arith.addf %756, %761 : vector<8x256xf32>
    %c99 = arith.constant 99 : index
    %763 = memref.load %arg1[%c99] : memref<108xf32, #tpu.memory_space<smem>>
    %c7_i32_182 = arith.constant 7 : i32
    %764 = tpu.dynamic_rotate %633 by %c7_i32_182 dim 0 : vector<8x256xf32>, i32 -> vector<8x256xf32>
    %765 = arith.mulf %764, %19 : vector<8x256xf32>
    %766 = vector.broadcast %763 : f32 to vector<8x256xf32>
    %767 = arith.mulf %765, %766 : vector<8x256xf32>
    %768 = arith.addf %762, %767 : vector<8x256xf32>
    %c103 = arith.constant 103 : index
    %769 = memref.load %arg1[%c103] : memref<108xf32, #tpu.memory_space<smem>>
    %c7_i32_183 = arith.constant 7 : i32
    %770 = tpu.dynamic_rotate %635 by %c7_i32_183 dim 0 : vector<8x256xf32>, i32 -> vector<8x256xf32>
    %771 = arith.mulf %770, %19 : vector<8x256xf32>
    %772 = vector.broadcast %769 : f32 to vector<8x256xf32>
    %773 = arith.mulf %771, %772 : vector<8x256xf32>
    %774 = arith.addf %768, %773 : vector<8x256xf32>
    %c107 = arith.constant 107 : index
    %775 = memref.load %arg1[%c107] : memref<108xf32, #tpu.memory_space<smem>>
    %c7_i32_184 = arith.constant 7 : i32
    %776 = tpu.dynamic_rotate %637 by %c7_i32_184 dim 0 : vector<8x256xf32>, i32 -> vector<8x256xf32>
    %777 = arith.mulf %776, %19 : vector<8x256xf32>
    %778 = vector.broadcast %775 : f32 to vector<8x256xf32>
    %779 = arith.mulf %777, %778 : vector<8x256xf32>
    %780 = arith.addf %774, %779 : vector<8x256xf32>
    %c3_185 = arith.constant 3 : index
    %781 = memref.load %arg2[%c3_185] : memref<4xf32, #tpu.memory_space<smem>>
    %782 = vector.broadcast %781 : f32 to vector<8x256xf32>
    %783 = arith.addf %780, %782 : vector<8x256xf32>
    %cst_186 = arith.constant dense<0.000000e+00> : vector<256xf32>
    %784 = vector.multi_reduction <add>, %783, %cst_186 [0] : vector<8x256xf32> to vector<256xf32>
    %785 = vector.shape_cast %784 : vector<256xf32> to vector<1x256xf32>
    %cst_187 = arith.constant dense<0.000000e+00> : vector<1xf32>
    %786 = vector.multi_reduction <add>, %785, %cst_187 [1] : vector<1x256xf32> to vector<1xf32>
    %787 = vector.shape_cast %786 : vector<1xf32> to vector<1x1xf32>
    %788 = arith.mulf %783, %783 : vector<8x256xf32>
    %cst_188 = arith.constant dense<0.000000e+00> : vector<256xf32>
    %789 = vector.multi_reduction <add>, %788, %cst_188 [0] : vector<8x256xf32> to vector<256xf32>
    %790 = vector.shape_cast %789 : vector<256xf32> to vector<1x256xf32>
    %cst_189 = arith.constant dense<0.000000e+00> : vector<1xf32>
    %791 = vector.multi_reduction <add>, %790, %cst_189 [1] : vector<1x256xf32> to vector<1xf32>
    %792 = vector.shape_cast %791 : vector<1xf32> to vector<1x1xf32>
    %cst_190 = arith.constant 4.8828125E-4 : f32
    %793 = vector.broadcast %cst_190 : f32 to vector<1x1xf32>
    %794 = arith.mulf %787, %793 : vector<1x1xf32>
    %cst_191 = arith.constant 4.8828125E-4 : f32
    %795 = vector.broadcast %cst_191 : f32 to vector<1x1xf32>
    %796 = arith.mulf %792, %795 : vector<1x1xf32>
    %797 = arith.mulf %794, %794 : vector<1x1xf32>
    %798 = arith.subf %796, %797 : vector<1x1xf32>
    %cst_192 = arith.constant 0.000000e+00 : f32
    %799 = vector.broadcast %cst_192 : f32 to vector<1x1xf32>
    %800 = arith.maximumf %798, %799 : vector<1x1xf32>
    %cst_193 = arith.constant 9.99999974E-6 : f32
    %801 = vector.broadcast %cst_193 : f32 to vector<1x1xf32>
    %802 = arith.addf %800, %801 : vector<1x1xf32>
    %803 = math.rsqrt %802 : vector<1x1xf32>
    %c3_194 = arith.constant 3 : index
    %804 = memref.load %arg3[%c3_194] : memref<4xf32, #tpu.memory_space<smem>>
    %805 = vector.broadcast %804 : f32 to vector<1x1xf32>
    %806 = arith.mulf %803, %805 : vector<1x1xf32>
    %c3_195 = arith.constant 3 : index
    %807 = memref.load %arg4[%c3_195] : memref<4xf32, #tpu.memory_space<smem>>
    %808 = arith.mulf %794, %806 : vector<1x1xf32>
    %809 = vector.broadcast %807 : f32 to vector<1x1xf32>
    %810 = arith.subf %809, %808 : vector<1x1xf32>
    %811 = vector.broadcast %806 : vector<1x1xf32> to vector<8x256xf32>
    %812 = arith.mulf %783, %811 : vector<8x256xf32>
    %813 = vector.broadcast %810 : vector<1x1xf32> to vector<8x256xf32>
    %814 = arith.addf %812, %813 : vector<8x256xf32>
    %cst_196 = arith.constant 0.000000e+00 : f32
    %815 = vector.broadcast %cst_196 : f32 to vector<8x256xf32>
    %816 = arith.maximumf %814, %815 : vector<8x256xf32>
    %c3_197 = arith.constant 3 : index
    %c0_198 = arith.constant 0 : index
    %c0_199 = arith.constant 0 : index
    %817 = vector.load %arg10[%c3_197, %c0_198, %c0_199] : memref<4x8x256xf32, #tpu.memory_space<vmem>>, vector<1x8x256xf32>
    %818 = vector.shape_cast %817 : vector<1x8x256xf32> to vector<8x256xf32>
    %819 = vector.shape_cast %816 : vector<8x256xf32> to vector<1x8x256xf32>
    tpu.vector_store %arg10[%c3_197, %c0_198, %c0_199], %819 {strides = array<i32>} : memref<4x8x256xf32, #tpu.memory_space<vmem>>, vector<1x8x256xf32>,
    %c0_200 = arith.constant 0 : index
    %c0_201 = arith.constant 0 : index
    %c0_202 = arith.constant 0 : index
    %820 = vector.load %arg10[%c0_200, %c0_201, %c0_202] : memref<4x8x256xf32, #tpu.memory_space<vmem>>, vector<1x8x256xf32>
    %821 = vector.shape_cast %820 : vector<1x8x256xf32> to vector<8x256xf32>
    %c1_203 = arith.constant 1 : index
    %c0_204 = arith.constant 0 : index
    %c0_205 = arith.constant 0 : index
    %822 = vector.load %arg10[%c1_203, %c0_204, %c0_205] : memref<4x8x256xf32, #tpu.memory_space<vmem>>, vector<1x8x256xf32>
    %823 = vector.shape_cast %822 : vector<1x8x256xf32> to vector<8x256xf32>
    %c2_206 = arith.constant 2 : index
    %c0_207 = arith.constant 0 : index
    %c0_208 = arith.constant 0 : index
    %824 = vector.load %arg10[%c2_206, %c0_207, %c0_208] : memref<4x8x256xf32, #tpu.memory_space<vmem>>, vector<1x8x256xf32>
    %825 = vector.shape_cast %824 : vector<1x8x256xf32> to vector<8x256xf32>
    %c3_209 = arith.constant 3 : index
    %c0_210 = arith.constant 0 : index
    %c0_211 = arith.constant 0 : index
    %826 = vector.load %arg10[%c3_209, %c0_210, %c0_211] : memref<4x8x256xf32, #tpu.memory_space<vmem>>, vector<1x8x256xf32>
    %827 = vector.shape_cast %826 : vector<1x8x256xf32> to vector<8x256xf32>
    %c0_212 = arith.constant 0 : index
    %828 = memref.load %arg5[%c0_212] : memref<16xf32, #tpu.memory_space<smem>>
    %829 = vector.broadcast %828 : f32 to vector<8x256xf32>
    %830 = arith.mulf %821, %829 : vector<8x256xf32>
    %c4_213 = arith.constant 4 : index
    %831 = memref.load %arg5[%c4_213] : memref<16xf32, #tpu.memory_space<smem>>
    %832 = vector.broadcast %831 : f32 to vector<8x256xf32>
    %833 = arith.mulf %823, %832 : vector<8x256xf32>
    %834 = arith.addf %830, %833 : vector<8x256xf32>
    %c8_214 = arith.constant 8 : index
    %835 = memref.load %arg5[%c8_214] : memref<16xf32, #tpu.memory_space<smem>>
    %836 = vector.broadcast %835 : f32 to vector<8x256xf32>
    %837 = arith.mulf %825, %836 : vector<8x256xf32>
    %838 = arith.addf %834, %837 : vector<8x256xf32>
    %c12_215 = arith.constant 12 : index
    %839 = memref.load %arg5[%c12_215] : memref<16xf32, #tpu.memory_space<smem>>
    %840 = vector.broadcast %839 : f32 to vector<8x256xf32>
    %841 = arith.mulf %827, %840 : vector<8x256xf32>
    %842 = arith.addf %838, %841 : vector<8x256xf32>
    %c0_216 = arith.constant 0 : index
    %843 = memref.load %arg6[%c0_216] : memref<4xf32, #tpu.memory_space<smem>>
    %844 = vector.broadcast %843 : f32 to vector<8x256xf32>
    %845 = arith.addf %842, %844 : vector<8x256xf32>
    %cst_217 = arith.constant 0.000000e+00 : f32
    %846 = vector.broadcast %cst_217 : f32 to vector<8x256xf32>
    %847 = arith.subf %846, %845 : vector<8x256xf32>
    %848 = math.exp %847 : vector<8x256xf32>
    %cst_218 = arith.constant 1.000000e+00 : f32
    %849 = vector.broadcast %cst_218 : f32 to vector<8x256xf32>
    %850 = arith.addf %849, %848 : vector<8x256xf32>
    %cst_219 = arith.constant 1.000000e+00 : f32
    %851 = vector.broadcast %cst_219 : f32 to vector<8x256xf32>
    %852 = arith.divf %851, %850 : vector<8x256xf32>
    %c0_220 = arith.constant 0 : index
    %c0_221 = arith.constant 0 : index
    %c0_222 = arith.constant 0 : index
    %c0_223 = arith.constant 0 : index
    %853 = vector.load %arg8[%c0_220, %c0_221, %c0_222, %c0_223] : memref<1x4x8x256xf32, #tpu.memory_space<vmem>>, vector<1x1x8x256xf32>
    %854 = vector.shape_cast %853 : vector<1x1x8x256xf32> to vector<8x256xf32>
    %855 = arith.mulf %854, %852 : vector<8x256xf32>
    %c0_224 = arith.constant 0 : index
    %c0_225 = arith.constant 0 : index
    %c0_226 = arith.constant 0 : index
    %c0_227 = arith.constant 0 : index
    %856 = vector.load %arg9[%c0_224, %c0_225, %c0_226, %c0_227] : memref<1x4x8x256xf32, #tpu.memory_space<vmem>>, vector<1x1x8x256xf32>
    %857 = vector.shape_cast %856 : vector<1x1x8x256xf32> to vector<8x256xf32>
    %858 = vector.shape_cast %855 : vector<8x256xf32> to vector<1x1x8x256xf32>
    tpu.vector_store %arg9[%c0_224, %c0_225, %c0_226, %c0_227], %858 {strides = array<i32>} : memref<1x4x8x256xf32, #tpu.memory_space<vmem>>, vector<1x1x8x256xf32>,
    %c1_228 = arith.constant 1 : index
    %859 = memref.load %arg5[%c1_228] : memref<16xf32, #tpu.memory_space<smem>>
    %860 = vector.broadcast %859 : f32 to vector<8x256xf32>
    %861 = arith.mulf %821, %860 : vector<8x256xf32>
    %c5_229 = arith.constant 5 : index
    %862 = memref.load %arg5[%c5_229] : memref<16xf32, #tpu.memory_space<smem>>
    %863 = vector.broadcast %862 : f32 to vector<8x256xf32>
    %864 = arith.mulf %823, %863 : vector<8x256xf32>
    %865 = arith.addf %861, %864 : vector<8x256xf32>
    %c9_230 = arith.constant 9 : index
    %866 = memref.load %arg5[%c9_230] : memref<16xf32, #tpu.memory_space<smem>>
    %867 = vector.broadcast %866 : f32 to vector<8x256xf32>
    %868 = arith.mulf %825, %867 : vector<8x256xf32>
    %869 = arith.addf %865, %868 : vector<8x256xf32>
    %c13_231 = arith.constant 13 : index
    %870 = memref.load %arg5[%c13_231] : memref<16xf32, #tpu.memory_space<smem>>
    %871 = vector.broadcast %870 : f32 to vector<8x256xf32>
    %872 = arith.mulf %827, %871 : vector<8x256xf32>
    %873 = arith.addf %869, %872 : vector<8x256xf32>
    %c1_232 = arith.constant 1 : index
    %874 = memref.load %arg6[%c1_232] : memref<4xf32, #tpu.memory_space<smem>>
    %875 = vector.broadcast %874 : f32 to vector<8x256xf32>
    %876 = arith.addf %873, %875 : vector<8x256xf32>
    %cst_233 = arith.constant 0.000000e+00 : f32
    %877 = vector.broadcast %cst_233 : f32 to vector<8x256xf32>
    %878 = arith.subf %877, %876 : vector<8x256xf32>
    %879 = math.exp %878 : vector<8x256xf32>
    %cst_234 = arith.constant 1.000000e+00 : f32
    %880 = vector.broadcast %cst_234 : f32 to vector<8x256xf32>
    %881 = arith.addf %880, %879 : vector<8x256xf32>
    %cst_235 = arith.constant 1.000000e+00 : f32
    %882 = vector.broadcast %cst_235 : f32 to vector<8x256xf32>
    %883 = arith.divf %882, %881 : vector<8x256xf32>
    %c0_236 = arith.constant 0 : index
    %c1_237 = arith.constant 1 : index
    %c0_238 = arith.constant 0 : index
    %c0_239 = arith.constant 0 : index
    %884 = vector.load %arg8[%c0_236, %c1_237, %c0_238, %c0_239] : memref<1x4x8x256xf32, #tpu.memory_space<vmem>>, vector<1x1x8x256xf32>
    %885 = vector.shape_cast %884 : vector<1x1x8x256xf32> to vector<8x256xf32>
    %886 = arith.mulf %885, %883 : vector<8x256xf32>
    %c0_240 = arith.constant 0 : index
    %c1_241 = arith.constant 1 : index
    %c0_242 = arith.constant 0 : index
    %c0_243 = arith.constant 0 : index
    %887 = vector.load %arg9[%c0_240, %c1_241, %c0_242, %c0_243] : memref<1x4x8x256xf32, #tpu.memory_space<vmem>>, vector<1x1x8x256xf32>
    %888 = vector.shape_cast %887 : vector<1x1x8x256xf32> to vector<8x256xf32>
    %889 = vector.shape_cast %886 : vector<8x256xf32> to vector<1x1x8x256xf32>
    tpu.vector_store %arg9[%c0_240, %c1_241, %c0_242, %c0_243], %889 {strides = array<i32>} : memref<1x4x8x256xf32, #tpu.memory_space<vmem>>, vector<1x1x8x256xf32>,
    %c2_244 = arith.constant 2 : index
    %890 = memref.load %arg5[%c2_244] : memref<16xf32, #tpu.memory_space<smem>>
    %891 = vector.broadcast %890 : f32 to vector<8x256xf32>
    %892 = arith.mulf %821, %891 : vector<8x256xf32>
    %c6_245 = arith.constant 6 : index
    %893 = memref.load %arg5[%c6_245] : memref<16xf32, #tpu.memory_space<smem>>
    %894 = vector.broadcast %893 : f32 to vector<8x256xf32>
    %895 = arith.mulf %823, %894 : vector<8x256xf32>
    %896 = arith.addf %892, %895 : vector<8x256xf32>
    %c10_246 = arith.constant 10 : index
    %897 = memref.load %arg5[%c10_246] : memref<16xf32, #tpu.memory_space<smem>>
    %898 = vector.broadcast %897 : f32 to vector<8x256xf32>
    %899 = arith.mulf %825, %898 : vector<8x256xf32>
    %900 = arith.addf %896, %899 : vector<8x256xf32>
    %c14_247 = arith.constant 14 : index
    %901 = memref.load %arg5[%c14_247] : memref<16xf32, #tpu.memory_space<smem>>
    %902 = vector.broadcast %901 : f32 to vector<8x256xf32>
    %903 = arith.mulf %827, %902 : vector<8x256xf32>
    %904 = arith.addf %900, %903 : vector<8x256xf32>
    %c2_248 = arith.constant 2 : index
    %905 = memref.load %arg6[%c2_248] : memref<4xf32, #tpu.memory_space<smem>>
    %906 = vector.broadcast %905 : f32 to vector<8x256xf32>
    %907 = arith.addf %904, %906 : vector<8x256xf32>
    %cst_249 = arith.constant 0.000000e+00 : f32
    %908 = vector.broadcast %cst_249 : f32 to vector<8x256xf32>
    %909 = arith.subf %908, %907 : vector<8x256xf32>
    %910 = math.exp %909 : vector<8x256xf32>
    %cst_250 = arith.constant 1.000000e+00 : f32
    %911 = vector.broadcast %cst_250 : f32 to vector<8x256xf32>
    %912 = arith.addf %911, %910 : vector<8x256xf32>
    %cst_251 = arith.constant 1.000000e+00 : f32
    %913 = vector.broadcast %cst_251 : f32 to vector<8x256xf32>
    %914 = arith.divf %913, %912 : vector<8x256xf32>
    %c0_252 = arith.constant 0 : index
    %c2_253 = arith.constant 2 : index
    %c0_254 = arith.constant 0 : index
    %c0_255 = arith.constant 0 : index
    %915 = vector.load %arg8[%c0_252, %c2_253, %c0_254, %c0_255] : memref<1x4x8x256xf32, #tpu.memory_space<vmem>>, vector<1x1x8x256xf32>
    %916 = vector.shape_cast %915 : vector<1x1x8x256xf32> to vector<8x256xf32>
    %917 = arith.mulf %916, %914 : vector<8x256xf32>
    %c0_256 = arith.constant 0 : index
    %c2_257 = arith.constant 2 : index
    %c0_258 = arith.constant 0 : index
    %c0_259 = arith.constant 0 : index
    %918 = vector.load %arg9[%c0_256, %c2_257, %c0_258, %c0_259] : memref<1x4x8x256xf32, #tpu.memory_space<vmem>>, vector<1x1x8x256xf32>
    %919 = vector.shape_cast %918 : vector<1x1x8x256xf32> to vector<8x256xf32>
    %920 = vector.shape_cast %917 : vector<8x256xf32> to vector<1x1x8x256xf32>
    tpu.vector_store %arg9[%c0_256, %c2_257, %c0_258, %c0_259], %920 {strides = array<i32>} : memref<1x4x8x256xf32, #tpu.memory_space<vmem>>, vector<1x1x8x256xf32>,
    %c3_260 = arith.constant 3 : index
    %921 = memref.load %arg5[%c3_260] : memref<16xf32, #tpu.memory_space<smem>>
    %922 = vector.broadcast %921 : f32 to vector<8x256xf32>
    %923 = arith.mulf %821, %922 : vector<8x256xf32>
    %c7_261 = arith.constant 7 : index
    %924 = memref.load %arg5[%c7_261] : memref<16xf32, #tpu.memory_space<smem>>
    %925 = vector.broadcast %924 : f32 to vector<8x256xf32>
    %926 = arith.mulf %823, %925 : vector<8x256xf32>
    %927 = arith.addf %923, %926 : vector<8x256xf32>
    %c11_262 = arith.constant 11 : index
    %928 = memref.load %arg5[%c11_262] : memref<16xf32, #tpu.memory_space<smem>>
    %929 = vector.broadcast %928 : f32 to vector<8x256xf32>
    %930 = arith.mulf %825, %929 : vector<8x256xf32>
    %931 = arith.addf %927, %930 : vector<8x256xf32>
    %c15_263 = arith.constant 15 : index
    %932 = memref.load %arg5[%c15_263] : memref<16xf32, #tpu.memory_space<smem>>
    %933 = vector.broadcast %932 : f32 to vector<8x256xf32>
    %934 = arith.mulf %827, %933 : vector<8x256xf32>
    %935 = arith.addf %931, %934 : vector<8x256xf32>
    %c3_264 = arith.constant 3 : index
    %936 = memref.load %arg6[%c3_264] : memref<4xf32, #tpu.memory_space<smem>>
    %937 = vector.broadcast %936 : f32 to vector<8x256xf32>
    %938 = arith.addf %935, %937 : vector<8x256xf32>
    %cst_265 = arith.constant 0.000000e+00 : f32
    %939 = vector.broadcast %cst_265 : f32 to vector<8x256xf32>
    %940 = arith.subf %939, %938 : vector<8x256xf32>
    %941 = math.exp %940 : vector<8x256xf32>
    %cst_266 = arith.constant 1.000000e+00 : f32
    %942 = vector.broadcast %cst_266 : f32 to vector<8x256xf32>
    %943 = arith.addf %942, %941 : vector<8x256xf32>
    %cst_267 = arith.constant 1.000000e+00 : f32
    %944 = vector.broadcast %cst_267 : f32 to vector<8x256xf32>
    %945 = arith.divf %944, %943 : vector<8x256xf32>
    %c0_268 = arith.constant 0 : index
    %c3_269 = arith.constant 3 : index
    %c0_270 = arith.constant 0 : index
    %c0_271 = arith.constant 0 : index
    %946 = vector.load %arg8[%c0_268, %c3_269, %c0_270, %c0_271] : memref<1x4x8x256xf32, #tpu.memory_space<vmem>>, vector<1x1x8x256xf32>
    %947 = vector.shape_cast %946 : vector<1x1x8x256xf32> to vector<8x256xf32>
    %948 = arith.mulf %947, %945 : vector<8x256xf32>
    %c0_272 = arith.constant 0 : index
    %c3_273 = arith.constant 3 : index
    %c0_274 = arith.constant 0 : index
    %c0_275 = arith.constant 0 : index
    %949 = vector.load %arg9[%c0_272, %c3_273, %c0_274, %c0_275] : memref<1x4x8x256xf32, #tpu.memory_space<vmem>>, vector<1x1x8x256xf32>
    %950 = vector.shape_cast %949 : vector<1x1x8x256xf32> to vector<8x256xf32>
    %951 = vector.shape_cast %948 : vector<8x256xf32> to vector<1x1x8x256xf32>
    tpu.vector_store %arg9[%c0_272, %c3_273, %c0_274, %c0_275], %951 {strides = array<i32>} : memref<1x4x8x256xf32, #tpu.memory_space<vmem>>, vector<1x1x8x256xf32>,
    return
  }
  func.func @transform_0(%arg0: i32) -> i32 {
    %c0_i32 = arith.constant 0 : i32
    %c0_i32_0 = arith.constant 0 : i32
    return %c0_i32 : i32
  }
  func.func @transform_1(%arg0: i32) -> i32 {
    %c0_i32 = arith.constant 0 : i32
    %c0_i32_0 = arith.constant 0 : i32
    return %c0_i32 : i32
  }
  func.func @transform_2(%arg0: i32) -> i32 {
    %c0_i32 = arith.constant 0 : i32
    %c0_i32_0 = arith.constant 0 : i32
    return %c0_i32 : i32
  }
  func.func @transform_3(%arg0: i32) -> i32 {
    %c0_i32 = arith.constant 0 : i32
    %c0_i32_0 = arith.constant 0 : i32
    return %c0_i32 : i32
  }
  func.func @transform_4(%arg0: i32) -> i32 {
    %c0_i32 = arith.constant 0 : i32
    %c0_i32_0 = arith.constant 0 : i32
    return %c0_i32 : i32
  }
  func.func @transform_5(%arg0: i32) -> i32 {
    %c0_i32 = arith.constant 0 : i32
    %c0_i32_0 = arith.constant 0 : i32
    return %c0_i32 : i32
  }
  func.func @transform_6(%arg0: i32) -> (i32, i32, i32) {
    %c0_i32 = arith.constant 0 : i32
    %c0_i32_0 = arith.constant 0 : i32
    %c0_i32_1 = arith.constant 0 : i32
    %c0_i32_2 = arith.constant 0 : i32
    return %c0_i32, %c0_i32_0, %c0_i32_1 : i32, i32, i32
  }
  func.func @transform_7(%arg0: i32) -> (i32, i32, i32, i32) {
    %c0_i32 = arith.constant 0 : i32
    %c0_i32_0 = arith.constant 0 : i32
    %c0_i32_1 = arith.constant 0 : i32
    %c0_i32_2 = arith.constant 0 : i32
    return %arg0, %c0_i32, %c0_i32_0, %c0_i32_1 : i32, i32, i32, i32
  }
  func.func @transform_8(%arg0: i32) -> (i32, i32, i32, i32) {
    %c0_i32 = arith.constant 0 : i32
    %c0_i32_0 = arith.constant 0 : i32
    %c0_i32_1 = arith.constant 0 : i32
    %c0_i32_2 = arith.constant 0 : i32
    return %arg0, %c0_i32, %c0_i32_0, %c0_i32_1 : i32, i32, i32, i32
  }
}

</mosaic_0001>

<llo_original>
// kernel: hf_refinement_res.1
$region0: #{hf_refinement_res.1}
  #allocation0 [shape = 'u32[]', space=smem, size = 0x4, offset = 0x4, fixed_abs, tag = 'smem constant byte address 0x4 - core index']
  #allocation1 [shape = 'u32[144,128]{1,0:T(1,128)}', space=vmem, size = 0x12000, scoped, tag = 'internal scratch']
  #allocation2 [shape = 'f32[4,8,256]{2,1,0:T(8,128)}', space=vmem, size = 0x8000, scoped, tag = 'scratch operand']
  %s0 = inlined_call_operand.vmem [shape: f32[108], index: 0, kind: input, shape index: {}]
  %s1 = inlined_call_operand.vmem [shape: f32[4], index: 1, kind: input, shape index: {}]
  %s2 = inlined_call_operand.vmem [shape: f32[4], index: 2, kind: input, shape index: {}]
  %s3 = inlined_call_operand.vmem [shape: f32[4], index: 3, kind: input, shape index: {}]
  %s4 = inlined_call_operand.vmem [shape: f32[16], index: 4, kind: input, shape index: {}]
  %s5 = inlined_call_operand.vmem [shape: f32[4], index: 5, kind: input, shape index: {}]
  %s6 = inlined_call_operand.vmem [shape: f32[12,8,256], index: 6, kind: input, shape index: {}]
  %s7 = inlined_call_operand.vmem [shape: f32[2,4,8,256], index: 7, kind: input, shape index: {}]
  %s8 = inlined_call_operand.vmem [shape: f32[2,4,8,256], index: 8, kind: output, shape index: {}]
  %s9 = sld [smem:[#allocation0]]
  $region89: #{hf_refinement_res.1} parent=0
    _
  %s11 = ssub.s32 1, %s9
  %s12 = scalar_select 0, %s11, %s9
  $region1: #{hf_refinement_res.1} parent=0
    #allocation3 [shape = 'u8[512]{0}', space=smem, size = 0x200, scoped, tag = 'input window, operand 0, single buffered']
    #allocation4 [shape = 's32[2]{0}', space=sflag, size = 0x8, scoped, tag = 'scoped memory for hf_refinement_res.1']
    #allocation5 [shape = 'u8[512]{0}', space=smem, size = 0x200, scoped, tag = 'input window, operand 1, single buffered']
    #allocation6 [shape = 's32[1]{0}', space=sflag, size = 0x4, scoped, tag = 'scoped memory for hf_refinement_res.1']
    #allocation7 [shape = 'u8[512]{0}', space=smem, size = 0x200, scoped, tag = 'input window, operand 2, single buffered']
    #allocation8 [shape = 'u8[512]{0}', space=smem, size = 0x200, scoped, tag = 'input window, operand 3, single buffered']
    #allocation9 [shape = 's32[1]{0}', space=sflag, size = 0x4, scoped, tag = 'scoped memory for hf_refinement_res.1']
    #allocation10 [shape = 'u8[512]{0}', space=smem, size = 0x200, scoped, tag = 'input window, operand 4, single buffered']
    #allocation11 [shape = 'u8[512]{0}', space=smem, size = 0x200, scoped, tag = 'input window, operand 5, single buffered']
    #allocation12 [shape = 's32[1]{0}', space=sflag, size = 0x4, scoped, tag = 'scoped memory for hf_refinement_res.1']
    %13 = vsyncpa [#allocation4], 0
    %14 = vsyncpa [#allocation6], 0
    %15 = vsyncpa [#allocation9], 0
    %16 = vsyncpa [#allocation12], 0
    loop: start=0, step=1, limit=4
    $region2: #{hf_refinement_res.1} parent=1 // loop_pre_header
      _
    $region3: #{hf_refinement_res.1} parent=1 // loop_header
      %s18 = sphi 0, %s22
      %p19 = scmp.ge.s32.totalorder %s18, 4
      %s26 = sphi 0, %s26
      %s28 = sphi 0, %s26
      %s29 = sphi 0, %s28
      %s43 = sphi 0, %s29
      %s47 = sphi 0, %s47
      %s49 = sphi 0, %s47
      %s50 = sphi 0, %s49
      %s64 = sphi 0, %s50
      %s68 = sphi 0, %s68
      %s70 = sphi 0, %s68
      %s71 = sphi 0, %s70
      %s85 = sphi 0, %s71
      %s89 = sphi 0, %s89
      %s91 = sphi 0, %s89
      %s92 = sphi 0, %s91
      %s106 = sphi 0, %s92
      %s110 = sphi 0, %s110
      %s112 = sphi 0, %s110
      %s113 = sphi 0, %s112
      %s127 = sphi 0, %s113
      %s131 = sphi 0, %s131
      %s133 = sphi 0, %s131
      %s134 = sphi 0, %s133
      %s148 = sphi 0, %s134
      %s152 = sphi 0, %s152
      %s154 = sphi 0, %s152
      %s155 = sphi 0, %s154
      %s169 = sphi 0, %s155
      %s175 = sphi 0, %s177
      %s178 = sphi 0, %s175
      %s179 = sphi 0, %s178
      %s195 = sphi 0, %s179
      %s201 = sphi 0, %s203
      %s204 = sphi 0, %s201
      %s205 = sphi 0, %s204
      %s221 = sphi 0, %s205
    $region4: #{hf_refinement_res.1} parent=1 // loop_header_branch
      %21 = sbr.rel (%p19) target = $region8
    $region5: #{hf_refinement_res.1} parent=1 // loop_body
      %s23 = ssub.s32 %s18, 1
      %s24 = ssub.s32 %s18, 2
      %s25 = sadd.s32 %s18, 1
      %s27 = sadd.s32 %s26, 1
      %p30 = scmp.eq.s32.totalorder %s18, 1
      %p31 = scmp.ne.s32.totalorder %s26, %s28
      %p32 = scmp.eq.s32.totalorder %s18, 0
      %p33 = por %p31, %p32
      %p34 = scmp.ne.s32.totalorder %s26, %s28
      %p35 = scmp.eq.s32.totalorder %s23, 1
      %p36 = por %p34, %p35
      %p37 = scmp.ne.s32.totalorder %s28, %s29
      %p38 = scmp.eq.s32.totalorder %s23, 0
      %p39 = por %p37, %p38
      %p40 = scmp.ne.s32.totalorder %s28, %s29
      %p41 = scmp.eq.s32.totalorder %s24, 1
      %p42 = por %p40, %p41
      %p44 = scmp.ne.s32.totalorder %s29, %s43
      %p45 = scmp.eq.s32.totalorder %s24, 0
      %p46 = por %p44, %p45
      %s48 = sadd.s32 %s47, 1
      %p51 = scmp.eq.s32.totalorder %s18, 1
      %p52 = scmp.ne.s32.totalorder %s47, %s49
      %p53 = scmp.eq.s32.totalorder %s18, 0
      %p54 = por %p52, %p53
      %p55 = scmp.ne.s32.totalorder %s47, %s49
      %p56 = scmp.eq.s32.totalorder %s23, 1
      %p57 = por %p55, %p56
      %p58 = scmp.ne.s32.totalorder %s49, %s50
      %p59 = scmp.eq.s32.totalorder %s23, 0
      %p60 = por %p58, %p59
      %p61 = scmp.ne.s32.totalorder %s49, %s50
      %p62 = scmp.eq.s32.totalorder %s24, 1
      %p63 = por %p61, %p62
      %p65 = scmp.ne.s32.totalorder %s50, %s64
      %p66 = scmp.eq.s32.totalorder %s24, 0
      %p67 = por %p65, %p66
      %s69 = sadd.s32 %s68, 1
      %p72 = scmp.eq.s32.totalorder %s18, 1
      %p73 = scmp.ne.s32.totalorder %s68, %s70
      %p74 = scmp.eq.s32.totalorder %s18, 0
      %p75 = por %p73, %p74
      %p76 = scmp.ne.s32.totalorder %s68, %s70
      %p77 = scmp.eq.s32.totalorder %s23, 1
      %p78 = por %p76, %p77
      %p79 = scmp.ne.s32.totalorder %s70, %s71
      %p80 = scmp.eq.s32.totalorder %s23, 0
      %p81 = por %p79, %p80
      %p82 = scmp.ne.s32.totalorder %s70, %s71
      %p83 = scmp.eq.s32.totalorder %s24, 1
      %p84 = por %p82, %p83
      %p86 = scmp.ne.s32.totalorder %s71, %s85
      %p87 = scmp.eq.s32.totalorder %s24, 0
      %p88 = por %p86, %p87
      %s90 = sadd.s32 %s89, 1
      %p93 = scmp.eq.s32.totalorder %s18, 1
      %p94 = scmp.ne.s32.totalorder %s89, %s91
      %p95 = scmp.eq.s32.totalorder %s18, 0
      %p96 = por %p94, %p95
      %p97 = scmp.ne.s32.totalorder %s89, %s91
      %p98 = scmp.eq.s32.totalorder %s23, 1
      %p99 = por %p97, %p98
      %p100 = scmp.ne.s32.totalorder %s91, %s92
      %p101 = scmp.eq.s32.totalorder %s23, 0
      %p102 = por %p100, %p101
      %p103 = scmp.ne.s32.totalorder %s91, %s92
      %p104 = scmp.eq.s32.totalorder %s24, 1
      %p105 = por %p103, %p104
      %p107 = scmp.ne.s32.totalorder %s92, %s106
      %p108 = scmp.eq.s32.totalorder %s24, 0
      %p109 = por %p107, %p108
      %s111 = sadd.s32 %s110, 1
      %p114 = scmp.eq.s32.totalorder %s18, 1
      %p115 = scmp.ne.s32.totalorder %s110, %s112
      %p116 = scmp.eq.s32.totalorder %s18, 0
      %p117 = por %p115, %p116
      %p118 = scmp.ne.s32.totalorder %s110, %s112
      %p119 = scmp.eq.s32.totalorder %s23, 1
      %p120 = por %p118, %p119
      %p121 = scmp.ne.s32.totalorder %s112, %s113
      %p122 = scmp.eq.s32.totalorder %s23, 0
      %p123 = por %p121, %p122
      %p124 = scmp.ne.s32.totalorder %s112, %s113
      %p125 = scmp.eq.s32.totalorder %s24, 1
      %p126 = por %p124, %p125
      %p128 = scmp.ne.s32.totalorder %s113, %s127
      %p129 = scmp.eq.s32.totalorder %s24, 0
      %p130 = por %p128, %p129
      %s132 = sadd.s32 %s131, 1
      %p135 = scmp.eq.s32.totalorder %s18, 1
      %p136 = scmp.ne.s32.totalorder %s131, %s133
      %p137 = scmp.eq.s32.totalorder %s18, 0
      %p138 = por %p136, %p137
      %p139 = scmp.ne.s32.totalorder %s131, %s133
      %p140 = scmp.eq.s32.totalorder %s23, 1
      %p141 = por %p139, %p140
      %p142 = scmp.ne.s32.totalorder %s133, %s134
      %p143 = scmp.eq.s32.totalorder %s23, 0
      %p144 = por %p142, %p143
      %p145 = scmp.ne.s32.totalorder %s133, %s134
      %p146 = scmp.eq.s32.totalorder %s24, 1
      %p147 = por %p145, %p146
      %p149 = scmp.ne.s32.totalorder %s134, %s148
      %p150 = scmp.eq.s32.totalorder %s24, 0
      %p151 = por %p149, %p150
      %s153 = sadd.s32 %s152, 1
      %p156 = scmp.eq.s32.totalorder %s18, 1
      %p157 = scmp.ne.s32.totalorder %s152, %s154
      %p158 = scmp.eq.s32.totalorder %s18, 0
      %p159 = por %p157, %p158
      %p160 = scmp.ne.s32.totalorder %s152, %s154
      %p161 = scmp.eq.s32.totalorder %s23, 1
      %p162 = por %p160, %p161
      %p163 = scmp.ne.s32.totalorder %s154, %s155
      %p164 = scmp.eq.s32.totalorder %s23, 0
      %p165 = por %p163, %p164
      %p166 = scmp.ne.s32.totalorder %s154, %s155
      %p167 = scmp.eq.s32.totalorder %s24, 1
      %p168 = por %p166, %p167
      %p170 = scmp.ne.s32.totalorder %s155, %s169
      %p171 = scmp.eq.s32.totalorder %s24, 0
      %p172 = por %p170, %p171
      %s173 = ssub.s32 %s18, %s25
      %p174 = scmp.eq.s32.totalorder %s173, 0
      %s176 = sadd.s32 %s175, 1
      %s177 = scalar_select %p174, %s175, %s176
      %p180 = pneg %p174
      %p181 = scmp.eq.s32.totalorder %s18, 1
      %p182 = por %p180, %p181
      %p183 = scmp.ne.s32.totalorder %s175, %s178
      %p184 = scmp.eq.s32.totalorder %s18, 0
      %p185 = por %p183, %p184
      %p186 = scmp.ne.s32.totalorder %s175, %s178
      %p187 = scmp.eq.s32.totalorder %s23, 1
      %p188 = por %p186, %p187
      %p189 = scmp.ne.s32.totalorder %s178, %s179
      %p190 = scmp.eq.s32.totalorder %s23, 0
      %p191 = por %p189, %p190
      %p192 = scmp.ne.s32.totalorder %s178, %s179
      %p193 = scmp.eq.s32.totalorder %s24, 1
      %p194 = por %p192, %p193
      %p196 = scmp.ne.s32.totalorder %s179, %s195
      %p197 = scmp.eq.s32.totalorder %s24, 0
      %p198 = por %p196, %p197
      %s199 = ssub.s32 %s18, %s25
      %p200 = scmp.eq.s32.totalorder %s199, 0
      %s202 = sadd.s32 %s201, 1
      %s203 = scalar_select %p200, %s201, %s202
      %p206 = pneg %p200
      %p207 = scmp.eq.s32.totalorder %s18, 1
      %p208 = por %p206, %p207
      %p209 = scmp.ne.s32.totalorder %s201, %s204
      %p210 = scmp.eq.s32.totalorder %s18, 0
      %p211 = por %p209, %p210
      %p212 = scmp.ne.s32.totalorder %s201, %s204
      %p213 = scmp.eq.s32.totalorder %s23, 1
      %p214 = por %p212, %p213
      %p215 = scmp.ne.s32.totalorder %s204, %s205
      %p216 = scmp.eq.s32.totalorder %s23, 0
      %p217 = por %p215, %p216
      %p218 = scmp.ne.s32.totalorder %s204, %s205
      %p219 = scmp.eq.s32.totalorder %s24, 1
      %p220 = por %p218, %p219
      %p222 = scmp.ne.s32.totalorder %s205, %s221
      %p223 = scmp.eq.s32.totalorder %s24, 0
      %p224 = por %p222, %p223
      %p225 = scmp.le.s32.totalorder 1, %s18
      %p226 = scmp.lt.s32.totalorder %s18, 3
      %p227 = pnand %p225, %p226
      %p228 = pneg %p227
      // Predicated region
      $region9: #{hf_refinement_res.1} parent=5 // pred_check
        _
      $region10: #{hf_refinement_res.1} parent=5 // pred_check_branch
        %230 = sbr.rel (%p227) target = $region12
      $region11: #{hf_refinement_res.1} parent=5 // pred_region
        %s231 = ssub.s32 %s18, 1
        // Predicated region
        $region13: #{hf_refinement_res.1} parent=11 // pred_check
          %p232 = pneg %p39
        $region14: #{hf_refinement_res.1} parent=11 // pred_check_branch
          %234 = sbr.rel (%p232) target = $region16
        $region15: #{hf_refinement_res.1} parent=11 // pred_region
          %s236 = ssub.s32 16, 16
          %237 = vsyncadd [#allocation4], %s236
          %s239 = sshll.u32 %s0, 4
          %s240 = int_to_ptr.vmem [resolvable:$true] %s239
          %242 = dma.vmem_to_smem %s240, 16, [#allocation3], [#allocation4]
        $region16: #{hf_refinement_res.1} parent=11 // pred_fallthru
          _
        // Predicated region
        $region17: #{hf_refinement_res.1} parent=11 // pred_check
          %p243 = pneg %p60
        $region18: #{hf_refinement_res.1} parent=11 // pred_check_branch
          %245 = sbr.rel (%p243) target = $region20
        $region19: #{hf_refinement_res.1} parent=11 // pred_region
          %s247 = ssub.s32 16, 16
          %248 = vsyncadd [#allocation6], %s247
          %s250 = sshll.u32 %s1, 4
          %s251 = int_to_ptr.vmem [resolvable:$true] %s250
          %253 = dma.vmem_to_smem %s251, 16, [#allocation5], [#allocation6]
        $region20: #{hf_refinement_res.1} parent=11 // pred_fallthru
          _
        // Predicated region
        $region21: #{hf_refinement_res.1} parent=11 // pred_check
          %p254 = pneg %p81
        $region22: #{hf_refinement_res.1} parent=11 // pred_check_branch
          %256 = sbr.rel (%p254) target = $region24
        $region23: #{hf_refinement_res.1} parent=11 // pred_region
          %s258 = ssub.s32 16, 16
          %259 = vsyncadd [#allocation6], %s258
          %s261 = sshll.u32 %s2, 4
          %s262 = int_to_ptr.vmem [resolvable:$true] %s261
          %264 = dma.vmem_to_smem %s262, 16, [#allocation7], [#allocation6]
        $region24: #{hf_refinement_res.1} parent=11 // pred_fallthru
          _
        // Predicated region
        $region25: #{hf_refinement_res.1} parent=11 // pred_check
          %p265 = pneg %p102
        $region26: #{hf_refinement_res.1} parent=11 // pred_check_branch
          %267 = sbr.rel (%p265) target = $region28
        $region27: #{hf_refinement_res.1} parent=11 // pred_region
          %s269 = ssub.s32 16, 16
          %270 = vsyncadd [#allocation9], %s269
          %s272 = sshll.u32 %s3, 4
          %s273 = int_to_ptr.vmem [resolvable:$true] %s272
          %275 = dma.vmem_to_smem %s273, 16, [#allocation8], [#allocation9]
        $region28: #{hf_refinement_res.1} parent=11 // pred_fallthru
          _
        // Predicated region
        $region29: #{hf_refinement_res.1} parent=11 // pred_check
          %p276 = pneg %p123
        $region30: #{hf_refinement_res.1} parent=11 // pred_check_branch
          %278 = sbr.rel (%p276) target = $region32
        $region31: #{hf_refinement_res.1} parent=11 // pred_region
          %s280 = ssub.s32 16, 16
          %281 = vsyncadd [#allocation9], %s280
          %s283 = sshll.u32 %s4, 4
          %s284 = int_to_ptr.vmem [resolvable:$true] %s283
          %286 = dma.vmem_to_smem %s284, 16, [#allocation10], [#allocation9]
        $region32: #{hf_refinement_res.1} parent=11 // pred_fallthru
          _
        // Predicated region
        $region33: #{hf_refinement_res.1} parent=11 // pred_check
          %p287 = pneg %p144
        $region34: #{hf_refinement_res.1} parent=11 // pred_check_branch
          %289 = sbr.rel (%p287) target = $region36
        $region35: #{hf_refinement_res.1} parent=11 // pred_region
          %s291 = ssub.s32 16, 16
          %292 = vsyncadd [#allocation12], %s291
          %s294 = sshll.u32 %s5, 4
          %s295 = int_to_ptr.vmem [resolvable:$true] %s294
          %297 = dma.vmem_to_smem %s295, 16, [#allocation11], [#allocation12]
        $region36: #{hf_refinement_res.1} parent=11 // pred_fallthru
          _
        // Predicated region
        $region37: #{hf_refinement_res.1} parent=11 // pred_check
          %p298 = pneg %p165
        $region38: #{hf_refinement_res.1} parent=11 // pred_check_branch
          %300 = sbr.rel (%p298) target = $region40
        $region39: #{hf_refinement_res.1} parent=11 // pred_region
          _
        $region40: #{hf_refinement_res.1} parent=11 // pred_fallthru
          _
      $region12: #{hf_refinement_res.1} parent=5 // pred_fallthru
        _
      %p301 = scmp.lt.s32.totalorder %s18, 2
      // Predicated region
      $region41: #{hf_refinement_res.1} parent=5 // pred_check
        %p302 = pneg %p301
      $region42: #{hf_refinement_res.1} parent=5 // pred_check_branch
        %304 = sbr.rel (%p302) target = $region44
      $region43: #{hf_refinement_res.1} parent=5 // pred_region
        // Predicated region
        $region45: #{hf_refinement_res.1} parent=43 // pred_check
          %p305 = pneg %p185
        $region46: #{hf_refinement_res.1} parent=43 // pred_check_branch
          %307 = sbr.rel (%p305) target = $region48
        $region47: #{hf_refinement_res.1} parent=43 // pred_region
          %p308 = scmp.lt.s32.totalorder %s18, 1
          %s309 = scalar_select %p308, %s18, 1
          %s310 = smul.addr %s309, 8
          %s311 = smul.addr %s310, 8
          %s312 = scalar_lea.vmem %s7, %s311
        $region48: #{hf_refinement_res.1} parent=43 // pred_fallthru
          _
      $region44: #{hf_refinement_res.1} parent=5 // pred_fallthru
        _
      %p313 = scmp.le.s32.totalorder 1, %s18
      %p314 = scmp.lt.s32.totalorder %s18, 3
      %p315 = pnand %p313, %p314
      %p316 = pneg %p315
      // Predicated region
      $region49: #{hf_refinement_res.1} parent=5 // pred_check
        _
      $region50: #{hf_refinement_res.1} parent=5 // pred_check_branch
        %318 = sbr.rel (%p315) target = $region52
      $region51: #{hf_refinement_res.1} parent=5 // pred_region
        %s319 = ssub.s32 %s18, 1
        // Predicated region
        $region53: #{hf_refinement_res.1} parent=51 // pred_check
          %p320 = pneg %p39
        $region54: #{hf_refinement_res.1} parent=51 // pred_check_branch
          %322 = sbr.rel (%p320) target = $region56
        $region55: #{hf_refinement_res.1} parent=51 // pred_region
          %323 = dma.done [#allocation4], 16
        $region56: #{hf_refinement_res.1} parent=51 // pred_fallthru
          _
        // Predicated region
        $region57: #{hf_refinement_res.1} parent=51 // pred_check
          %p324 = pneg %p60
        $region58: #{hf_refinement_res.1} parent=51 // pred_check_branch
          %326 = sbr.rel (%p324) target = $region60
        $region59: #{hf_refinement_res.1} parent=51 // pred_region
          %327 = dma.done [#allocation6], 16
        $region60: #{hf_refinement_res.1} parent=51 // pred_fallthru
          _
        // Predicated region
        $region61: #{hf_refinement_res.1} parent=51 // pred_check
          %p328 = pneg %p81
        $region62: #{hf_refinement_res.1} parent=51 // pred_check_branch
          %330 = sbr.rel (%p328) target = $region64
        $region63: #{hf_refinement_res.1} parent=51 // pred_region
          %331 = dma.done [#allocation6], 16
        $region64: #{hf_refinement_res.1} parent=51 // pred_fallthru
          _
        // Predicated region
        $region65: #{hf_refinement_res.1} parent=51 // pred_check
          %p332 = pneg %p102
        $region66: #{hf_refinement_res.1} parent=51 // pred_check_branch
          %334 = sbr.rel (%p332) target = $region68
        $region67: #{hf_refinement_res.1} parent=51 // pred_region
          %335 = dma.done [#allocation9], 16
        $region68: #{hf_refinement_res.1} parent=51 // pred_fallthru
          _
        // Predicated region
        $region69: #{hf_refinement_res.1} parent=51 // pred_check
          %p336 = pneg %p123
        $region70: #{hf_refinement_res.1} parent=51 // pred_check_branch
          %338 = sbr.rel (%p336) target = $region72
        $region71: #{hf_refinement_res.1} parent=51 // pred_region
          %339 = dma.done [#allocation9], 16
        $region72: #{hf_refinement_res.1} parent=51 // pred_fallthru
          _
        // Predicated region
        $region73: #{hf_refinement_res.1} parent=51 // pred_check
          %p340 = pneg %p144
        $region74: #{hf_refinement_res.1} parent=51 // pred_check_branch
          %342 = sbr.rel (%p340) target = $region76
        $region75: #{hf_refinement_res.1} parent=51 // pred_region
          %343 = dma.done [#allocation12], 16
        $region76: #{hf_refinement_res.1} parent=51 // pred_fallthru
          _
        %344 = sfence
        %p345 = pneg %p39
        %p346 = pneg %p36
        %p347 = pneg %p60
        %p348 = pneg %p57
        %p349 = pneg %p81
        %p350 = pneg %p78
        %p351 = pneg %p102
        %p352 = pneg %p99
        %p353 = pneg %p123
        %p354 = pneg %p120
        %p355 = pneg %p144
        %p356 = pneg %p141
        %p357 = pneg %p165
        %p358 = pneg %p162
        %p359 = scmp.lt.s32.totalorder %s23, 1
        %s360 = scalar_select %p359, %s23, 1
        %s361 = smul.addr %s360, 8
        %s362 = smul.addr %s361, 8
        %s363 = scalar_lea.vmem %s7, %s362
        %p364 = pneg %p191
        %p365 = pneg %p188
        %p366 = pneg %p217
        %p367 = pneg %p214
        %p368 = scmp.lt.s32.totalorder %s23, 1
        %s369 = scalar_select %p368, %s23, 1
        %s370 = smul.addr %s369, 8
        %s371 = smul.addr %s370, 8
        %s372 = scalar_lea.vmem %s8, %s371
        %p373 = scmp.lt.s32.totalorder %s23, 1
        %s374 = scalar_select %p373, %s23, 1
        %s375 = smul.addr %s374, 8
        %s376 = smul.addr %s375, 8
        %s377 = scalar_lea.vmem %s7, %s376
        %p378 = scmp.lt.s32.totalorder %s23, 1
        %s379 = scalar_select %p378, %s23, 1
        %s380 = smul.addr %s379, 8
        %s381 = smul.addr %s380, 8
        %s382 = scalar_lea.vmem %s8, %s381
        %v383 = vld [vmem:[%s6] sm:$0xff]
        %v384 = vld [vmem:[%s6 + $0x8] sm:$0xff]
        %s385 = scalar_lea.vmem %s6, 16
        %v386 = vld [vmem:[%s385] sm:$0xff]
        %v387 = vld [vmem:[%s385 + $0x8] sm:$0xff]
        %s388 = scalar_lea.vmem %s6, 32
        %v389 = vld [vmem:[%s388] sm:$0xff]
        %v390 = vld [vmem:[%s388 + $0x8] sm:$0xff]
        %s391 = scalar_lea.vmem %s6, 48
        %v392 = vld [vmem:[%s391] sm:$0xff]
        %v393 = vld [vmem:[%s391 + $0x8] sm:$0xff]
        %s394 = scalar_lea.vmem %s6, 80
        %v395 = vld [vmem:[%s394] sm:$0xff]
        %v396 = vld [vmem:[%s394 + $0x8] sm:$0xff]
        %s397 = scalar_lea.vmem %s6, 96
        %v398 = vld [vmem:[%s397] sm:$0xff]
        %v399 = vld [vmem:[%s397 + $0x8] sm:$0xff]
        %s400 = scalar_lea.vmem %s6, 112
        %v401 = vld [vmem:[%s400] sm:$0xff]
        %v402 = vld [vmem:[%s400 + $0x8] sm:$0xff]
        %s403 = scalar_lea.vmem %s6, 128
        %v404 = vld [vmem:[%s403] sm:$0xff]
        %v405 = vld [vmem:[%s403 + $0x8] sm:$0xff]
        %s406 = scalar_lea.vmem %s6, 144
        %v407 = vld [vmem:[%s406] sm:$0xff]
        %v408 = vld [vmem:[%s406 + $0x8] sm:$0xff]
        %s409 = scalar_lea.vmem %s6, 176
        %v410 = vld [vmem:[%s409] sm:$0xff]
        %v411 = vld [vmem:[%s409 + $0x8] sm:$0xff]
        %v412 = vld [vmem:[%s377] sm:$0xff]
        %v413 = vld [vmem:[%s377 + $0x8] sm:$0xff]
        %414 = vrot.lane.b32.xlu0 %v412, 17
        %v415 = vpop.permute.xlu0 %414
        %416 = vrot.lane.b32.xlu0 %v413, 17
        %v417 = vpop.permute.xlu0 %416
        %v418 = vlaneseq
        %v419 = vand.u32 %v418, 127
        %vm420 = vcmp.lt.s32.totalorder %v419, 17
        %v421 = vsel %vm420, %v415, %v417
        %v422 = vsel %vm420, %v417, %v415
        %v423 = vmul.f32 %v422, %v383
        %v424 = vmul.f32 %v421, %v384
        %425 = vrot.lane.b32.xlu0 %v412, 16
        %v426 = vpop.permute.xlu0 %425
        %427 = vrot.lane.b32.xlu0 %v413, 16
        %v428 = vpop.permute.xlu0 %427
        %vm429 = vcmp.lt.s32.totalorder %v419, 16
        %v430 = vsel %vm429, %v426, %v428
        %v431 = vsel %vm429, %v428, %v426
        %v432 = vmul.f32 %v431, %v386
        %v433 = vmul.f32 %v430, %v387
        %434 = vrot.lane.b32.xlu0 %v412, 15
        %v435 = vpop.permute.xlu0 %434
        %436 = vrot.lane.b32.xlu0 %v413, 15
        %v437 = vpop.permute.xlu0 %436
        %vm438 = vcmp.lt.s32.totalorder %v419, 15
        %v439 = vsel %vm438, %v435, %v437
        %v440 = vsel %vm438, %v437, %v435
        %v441 = vmul.f32 %v440, %v389
        %v442 = vmul.f32 %v439, %v390
        %443 = vrot.lane.b32.xlu0 %v412, 1
        %v444 = vpop.permute.xlu0 %443
        %445 = vrot.lane.b32.xlu0 %v413, 1
        %v446 = vpop.permute.xlu0 %445
        %vm447 = vcmp.lt.s32.totalorder %v419, 1
        %v448 = vsel %vm447, %v444, %v446
        %v449 = vsel %vm447, %v446, %v444
        %v450 = vmul.f32 %v449, %v392
        %v451 = vmul.f32 %v448, %v393
        %452 = vrot.lane.b32.xlu0 %v412, 127
        %v453 = vpop.permute.xlu0 %452
        %454 = vrot.lane.b32.xlu0 %v413, 127
        %v455 = vpop.permute.xlu0 %454
        %vm456 = vcmp.lt.s32.totalorder %v419, 127
        %v457 = vsel %vm456, %v453, %v455
        %v458 = vsel %vm456, %v455, %v453
        %v459 = vmul.f32 %v457, %v395
        %v460 = vmul.f32 %v458, %v396
        %461 = vrot.lane.b32.xlu0 %v412, 113
        %v462 = vpop.permute.xlu0 %461
        %463 = vrot.lane.b32.xlu0 %v413, 113
        %v464 = vpop.permute.xlu0 %463
        %vm465 = vcmp.lt.s32.totalorder %v419, 113
        %v466 = vsel %vm465, %v462, %v464
        %v467 = vsel %vm465, %v464, %v462
        %v468 = vmul.f32 %v466, %v398
        %v469 = vmul.f32 %v467, %v399
        %470 = vrot.lane.b32.xlu0 %v412, 112
        %v471 = vpop.permute.xlu0 %470
        %472 = vrot.lane.b32.xlu0 %v413, 112
        %v473 = vpop.permute.xlu0 %472
        %vm474 = vcmp.lt.s32.totalorder %v419, 112
        %v475 = vsel %vm474, %v471, %v473
        %v476 = vsel %vm474, %v473, %v471
        %v477 = vmul.f32 %v475, %v401
        %v478 = vmul.f32 %v476, %v402
        %479 = vrot.lane.b32.xlu0 %v412, 111
        %v480 = vpop.permute.xlu0 %479
        %481 = vrot.lane.b32.xlu0 %v413, 111
        %v482 = vpop.permute.xlu0 %481
        %vm483 = vcmp.lt.s32.totalorder %v419, 111
        %v484 = vsel %vm483, %v480, %v482
        %v485 = vsel %vm483, %v482, %v480
        %v486 = vmul.f32 %v484, %v404
        %v487 = vmul.f32 %v485, %v405
        %s488 = sld [smem:[#allocation3]]
        %v489 = vrot.slane %v423, 7
        %v490 = vrot.slane %v424, 7
        %v491 = vmul.f32 %v489, %v407
        %v492 = vmul.f32 %v490, %v408
        %v493 = vstv %s488
        %v494 = vmul.f32 %v491, %v493
        %v495 = vmul.f32 %v492, %v493
        %s496 = sld [smem:[#allocation3 + $0x4]]
        %v497 = vrot.slane %v432, 7
        %v498 = vrot.slane %v433, 7
        %v499 = vmul.f32 %v497, %v407
        %v500 = vmul.f32 %v498, %v408
        %v501 = vstv %s496
        %v502 = vmul.f32 %v499, %v501
        %v503 = vmul.f32 %v500, %v501
        %v504 = vadd.f32 %v494, %v502
        %v505 = vadd.f32 %v495, %v503
        %s506 = sld [smem:[#allocation3 + $0x8]]
        %v507 = vrot.slane %v441, 7
        %v508 = vrot.slane %v442, 7
        %v509 = vmul.f32 %v507, %v407
        %v510 = vmul.f32 %v508, %v408
        %v511 = vstv %s506
        %v512 = vmul.f32 %v509, %v511
        %v513 = vmul.f32 %v510, %v511
        %v514 = vadd.f32 %v504, %v512
        %v515 = vadd.f32 %v505, %v513
        %s516 = sld [smem:[#allocation3 + $0xc]]
        %v517 = vrot.slane %v450, 7
        %v518 = vrot.slane %v451, 7
        %v519 = vmul.f32 %v517, %v407
        %v520 = vmul.f32 %v518, %v408
        %v521 = vstv %s516
        %v522 = vmul.f32 %v519, %v521
        %v523 = vmul.f32 %v520, %v521
        %v524 = vadd.f32 %v514, %v522
        %v525 = vadd.f32 %v515, %v523
        %s526 = sld [smem:[#allocation3 + $0x10]]
        %v527 = vrot.slane %v412, 7
        %v528 = vrot.slane %v413, 7
        %v529 = vmul.f32 %v527, %v407
        %v530 = vmul.f32 %v528, %v408
        %v531 = vstv %s526
        %v532 = vmul.f32 %v529, %v531
        %v533 = vmul.f32 %v530, %v531
        %v534 = vadd.f32 %v524, %v532
        %v535 = vadd.f32 %v525, %v533
        %s536 = sld [smem:[#allocation3 + $0x14]]
        %v537 = vrot.slane %v459, 7
        %v538 = vrot.slane %v460, 7
        %v539 = vmul.f32 %v537, %v407
        %v540 = vmul.f32 %v538, %v408
        %v541 = vstv %s536
        %v542 = vmul.f32 %v539, %v541
        %v543 = vmul.f32 %v540, %v541
        %v544 = vadd.f32 %v534, %v542
        %v545 = vadd.f32 %v535, %v543
        %s546 = sld [smem:[#allocation3 + $0x18]]
        %v547 = vrot.slane %v468, 7
        %v548 = vrot.slane %v469, 7
        %v549 = vmul.f32 %v547, %v407
        %v550 = vmul.f32 %v548, %v408
        %v551 = vstv %s546
        %v552 = vmul.f32 %v549, %v551
        %v553 = vmul.f32 %v550, %v551
        %v554 = vadd.f32 %v544, %v552
        %v555 = vadd.f32 %v545, %v553
        %s556 = sld [smem:[#allocation3 + $0x1c]]
        %v557 = vrot.slane %v477, 7
        %v558 = vrot.slane %v478, 7
        %v559 = vmul.f32 %v557, %v407
        %v560 = vmul.f32 %v558, %v408
        %v561 = vstv %s556
        %v562 = vmul.f32 %v559, %v561
        %v563 = vmul.f32 %v560, %v561
        %v564 = vadd.f32 %v554, %v562
        %v565 = vadd.f32 %v555, %v563
        %s566 = sld [smem:[#allocation3 + $0x20]]
        %v567 = vrot.slane %v486, 7
        %v568 = vrot.slane %v487, 7
        %v569 = vmul.f32 %v567, %v407
        %v570 = vmul.f32 %v568, %v408
        %v571 = vstv %s566
        %v572 = vmul.f32 %v569, %v571
        %v573 = vmul.f32 %v570, %v571
        %v574 = vadd.f32 %v564, %v572
        %v575 = vadd.f32 %v565, %v573
        %s576 = sld [smem:[#allocation3 + $0x24]]
        %v577 = vstv %s576
        %v578 = vmul.f32 %v423, %v577
        %v579 = vmul.f32 %v424, %v577
        %v580 = vadd.f32 %v574, %v578
        %v581 = vadd.f32 %v575, %v579
        %s582 = sld [smem:[#allocation3 + $0x28]]
        %v583 = vstv %s582
        %v584 = vmul.f32 %v432, %v583
        %v585 = vmul.f32 %v433, %v583
        %v586 = vadd.f32 %v580, %v584
        %v587 = vadd.f32 %v581, %v585
        %s588 = sld [smem:[#allocation3 + $0x2c]]
        %v589 = vstv %s588
        %v590 = vmul.f32 %v441, %v589
        %v591 = vmul.f32 %v442, %v589
        %v592 = vadd.f32 %v586, %v590
        %v593 = vadd.f32 %v587, %v591
        %s594 = sld [smem:[#allocation3 + $0x30]]
        %v595 = vstv %s594
        %v596 = vmul.f32 %v450, %v595
        %v597 = vmul.f32 %v451, %v595
        %v598 = vadd.f32 %v592, %v596
        %v599 = vadd.f32 %v593, %v597
        %s600 = sld [smem:[#allocation3 + $0x34]]
        %v601 = vstv %s600
        %v602 = vmul.f32 %v412, %v601
        %v603 = vmul.f32 %v413, %v601
        %v604 = vadd.f32 %v598, %v602
        %v605 = vadd.f32 %v599, %v603
        %s606 = sld [smem:[#allocation3 + $0x38]]
        %v607 = vstv %s606
        %v608 = vmul.f32 %v459, %v607
        %v609 = vmul.f32 %v460, %v607
        %v610 = vadd.f32 %v604, %v608
        %v611 = vadd.f32 %v605, %v609
        %s612 = sld [smem:[#allocation3 + $0x3c]]
        %v613 = vstv %s612
        %v614 = vmul.f32 %v468, %v613
        %v615 = vmul.f32 %v469, %v613
        %v616 = vadd.f32 %v610, %v614
        %v617 = vadd.f32 %v611, %v615
        %s618 = sld [smem:[#allocation3 + $0x40]]
        %v619 = vstv %s618
        %v620 = vmul.f32 %v477, %v619
        %v621 = vmul.f32 %v478, %v619
        %v622 = vadd.f32 %v616, %v620
        %v623 = vadd.f32 %v617, %v621
        %s624 = sld [smem:[#allocation3 + $0x44]]
        %v625 = vstv %s624
        %v626 = vmul.f32 %v486, %v625
        %v627 = vmul.f32 %v487, %v625
        %v628 = vadd.f32 %v622, %v626
        %v629 = vadd.f32 %v623, %v627
        %s630 = sld [smem:[#allocation3 + $0x48]]
        %v631 = vrot.slane %v423, 1
        %v632 = vrot.slane %v424, 1
        %v633 = vmul.f32 %v631, %v410
        %v634 = vmul.f32 %v632, %v411
        %v635 = vstv %s630
        %v636 = vmul.f32 %v633, %v635
        %v637 = vmul.f32 %v634, %v635
        %v638 = vadd.f32 %v628, %v636
        %v639 = vadd.f32 %v629, %v637
        %s640 = sld [smem:[#allocation3 + $0x4c]]
        %v641 = vrot.slane %v432, 1
        %v642 = vrot.slane %v433, 1
        %v643 = vmul.f32 %v641, %v410
        %v644 = vmul.f32 %v642, %v411
        %v645 = vstv %s640
        %v646 = vmul.f32 %v643, %v645
        %v647 = vmul.f32 %v644, %v645
        %v648 = vadd.f32 %v638, %v646
        %v649 = vadd.f32 %v639, %v647
        %s650 = sld [smem:[#allocation3 + $0x50]]
        %v651 = vrot.slane %v441, 1
        %v652 = vrot.slane %v442, 1
        %v653 = vmul.f32 %v651, %v410
        %v654 = vmul.f32 %v652, %v411
        %v655 = vstv %s650
        %v656 = vmul.f32 %v653, %v655
        %v657 = vmul.f32 %v654, %v655
        %v658 = vadd.f32 %v648, %v656
        %v659 = vadd.f32 %v649, %v657
        %s660 = sld [smem:[#allocation3 + $0x54]]
        %v661 = vrot.slane %v450, 1
        %v662 = vrot.slane %v451, 1
        %v663 = vmul.f32 %v661, %v410
        %v664 = vmul.f32 %v662, %v411
        %v665 = vstv %s660
        %v666 = vmul.f32 %v663, %v665
        %v667 = vmul.f32 %v664, %v665
        %v668 = vadd.f32 %v658, %v666
        %v669 = vadd.f32 %v659, %v667
        %s670 = sld [smem:[#allocation3 + $0x58]]
        %v671 = vrot.slane %v412, 1
        %v672 = vrot.slane %v413, 1
        %v673 = vmul.f32 %v671, %v410
        %v674 = vmul.f32 %v672, %v411
        %v675 = vstv %s670
        %v676 = vmul.f32 %v673, %v675
        %v677 = vmul.f32 %v674, %v675
        %v678 = vadd.f32 %v668, %v676
        %v679 = vadd.f32 %v669, %v677
        %s680 = sld [smem:[#allocation3 + $0x5c]]
        %v681 = vrot.slane %v459, 1
        %v682 = vrot.slane %v460, 1
        %v683 = vmul.f32 %v681, %v410
        %v684 = vmul.f32 %v682, %v411
        %v685 = vstv %s680
        %v686 = vmul.f32 %v683, %v685
        %v687 = vmul.f32 %v684, %v685
        %v688 = vadd.f32 %v678, %v686
        %v689 = vadd.f32 %v679, %v687
        %s690 = sld [smem:[#allocation3 + $0x60]]
        %v691 = vrot.slane %v468, 1
        %v692 = vrot.slane %v469, 1
        %v693 = vmul.f32 %v691, %v410
        %v694 = vmul.f32 %v692, %v411
        %v695 = vstv %s690
        %v696 = vmul.f32 %v693, %v695
        %v697 = vmul.f32 %v694, %v695
        %v698 = vadd.f32 %v688, %v696
        %v699 = vadd.f32 %v689, %v697
        %s700 = sld [smem:[#allocation3 + $0x64]]
        %v701 = vrot.slane %v477, 1
        %v702 = vrot.slane %v478, 1
        %v703 = vmul.f32 %v701, %v410
        %v704 = vmul.f32 %v702, %v411
        %v705 = vstv %s700
        %v706 = vmul.f32 %v703, %v705
        %v707 = vmul.f32 %v704, %v705
        %v708 = vadd.f32 %v698, %v706
        %v709 = vadd.f32 %v699, %v707
        %s710 = sld [smem:[#allocation3 + $0x68]]
        %v711 = vrot.slane %v486, 1
        %v712 = vrot.slane %v487, 1
        %v713 = vmul.f32 %v711, %v410
        %v714 = vmul.f32 %v712, %v411
        %v715 = vstv %s710
        %v716 = vmul.f32 %v713, %v715
        %v717 = vmul.f32 %v714, %v715
        %v718 = vadd.f32 %v708, %v716
        %v719 = vadd.f32 %v709, %v717
        %s720 = sld [smem:[#allocation5]]
        %v721 = vstv %s720
        %v722 = vadd.f32 %v718, %v721
        %v723 = vadd.f32 %v719, %v721
        %v724 = vrot.slane %v722, 4
        %v725 = vadd.f32 %v722, %v724
        %v726 = vrot.slane %v725, 2
        %v727 = vadd.f32 %v725, %v726
        %v728 = vrot.slane %v727, 1
        %v729 = vadd.f32 %v727, %v728
        %v730 = vrot.slane %v723, 4
        %v731 = vadd.f32 %v723, %v730
        %v732 = vrot.slane %v731, 2
        %v733 = vadd.f32 %v731, %v732
        %v734 = vrot.slane %v733, 1
        %v735 = vadd.f32 %v733, %v734
        %v736 = vadd.f32 %v729, %v735
        %737 = vadd.xlane.f32.xlu0 %v736
        %v738 = vpop.xlane.xlu0 %737
        %v739 = vmul.f32 %v722, %v722
        %v740 = vmul.f32 %v723, %v723
        %v741 = vrot.slane %v739, 4
        %v742 = vadd.f32 %v739, %v741
        %v743 = vrot.slane %v742, 2
        %v744 = vadd.f32 %v742, %v743
        %v745 = vrot.slane %v744, 1
        %v746 = vadd.f32 %v744, %v745
        %v747 = vrot.slane %v740, 4
        %v748 = vadd.f32 %v740, %v747
        %v749 = vrot.slane %v748, 2
        %v750 = vadd.f32 %v748, %v749
        %v751 = vrot.slane %v750, 1
        %v752 = vadd.f32 %v750, %v751
        %v753 = vadd.f32 %v746, %v752
        %754 = vadd.xlane.f32.xlu0 %v753
        %v755 = vpop.xlane.xlu0 %754
        %v756 = vmul.f32 %v738, 0.00048828125
        %v757 = vmul.f32 %v755, 0.00048828125
        %v758 = vmul.f32 %v756, %v756
        %v759 = vsub.f32 %v757, %v758
        %v760 = vmax.f32 %v759, 0.0
        %v761 = vadd.f32 %v760, 1e-05
        %v762 = vrsqrt.pop %v761
        %s763 = sld [smem:[#allocation7]]
        %v764 = vstv %s763
        %v765 = vmul.f32 %v762, %v764
        %s766 = sld [smem:[#allocation8]]
        %v767 = vmul.f32 %v756, %v765
        %v768 = vstv %s766
        %v769 = vsub.f32 %v768, %v767
        %v770 = vmul.f32 %v722, %v765
        %v771 = vmul.f32 %v723, %v765
        %v772 = vadd.f32 %v770, %v769
        %v773 = vadd.f32 %v771, %v769
        %v774 = vmax.f32 %v772, 0.0
        %v775 = vmax.f32 %v773, 0.0
        %776 = vst [vmem:[#allocation2] sm:$0xff] %v774
        %777 = vst [vmem:[#allocation2 + $0x8] sm:$0xff] %v775
        %s778 = scalar_lea.vmem %s377, 16
        %v779 = vld [vmem:[%s778] sm:$0xff]
        %v780 = vld [vmem:[%s778 + $0x8] sm:$0xff]
        %781 = vrot.lane.b32.xlu0 %v779, 17
        %v782 = vpop.permute.xlu0 %781
        %783 = vrot.lane.b32.xlu0 %v780, 17
        %v784 = vpop.permute.xlu0 %783
        %v785 = vsel %vm420, %v782, %v784
        %v786 = vsel %vm420, %v784, %v782
        %v787 = vmul.f32 %v786, %v383
        %v788 = vmul.f32 %v785, %v384
        %789 = vrot.lane.b32.xlu0 %v779, 16
        %v790 = vpop.permute.xlu0 %789
        %791 = vrot.lane.b32.xlu0 %v780, 16
        %v792 = vpop.permute.xlu0 %791
        %v793 = vsel %vm429, %v790, %v792
        %v794 = vsel %vm429, %v792, %v790
        %v795 = vmul.f32 %v794, %v386
        %v796 = vmul.f32 %v793, %v387
        %797 = vrot.lane.b32.xlu0 %v779, 15
        %v798 = vpop.permute.xlu0 %797
        %799 = vrot.lane.b32.xlu0 %v780, 15
        %v800 = vpop.permute.xlu0 %799
        %v801 = vsel %vm438, %v798, %v800
        %v802 = vsel %vm438, %v800, %v798
        %v803 = vmul.f32 %v802, %v389
        %v804 = vmul.f32 %v801, %v390
        %805 = vrot.lane.b32.xlu0 %v779, 1
        %v806 = vpop.permute.xlu0 %805
        %807 = vrot.lane.b32.xlu0 %v780, 1
        %v808 = vpop.permute.xlu0 %807
        %v809 = vsel %vm447, %v806, %v808
        %v810 = vsel %vm447, %v808, %v806
        %v811 = vmul.f32 %v810, %v392
        %v812 = vmul.f32 %v809, %v393
        %813 = vrot.lane.b32.xlu0 %v779, 127
        %v814 = vpop.permute.xlu0 %813
        %815 = vrot.lane.b32.xlu0 %v780, 127
        %v816 = vpop.permute.xlu0 %815
        %v817 = vsel %vm456, %v814, %v816
        %v818 = vsel %vm456, %v816, %v814
        %v819 = vmul.f32 %v817, %v395
        %v820 = vmul.f32 %v818, %v396
        %821 = vrot.lane.b32.xlu0 %v779, 113
        %v822 = vpop.permute.xlu0 %821
        %823 = vrot.lane.b32.xlu0 %v780, 113
        %v824 = vpop.permute.xlu0 %823
        %v825 = vsel %vm465, %v822, %v824
        %v826 = vsel %vm465, %v824, %v822
        %v827 = vmul.f32 %v825, %v398
        %v828 = vmul.f32 %v826, %v399
        %829 = vrot.lane.b32.xlu0 %v779, 112
        %v830 = vpop.permute.xlu0 %829
        %831 = vrot.lane.b32.xlu0 %v780, 112
        %v832 = vpop.permute.xlu0 %831
        %v833 = vsel %vm474, %v830, %v832
        %v834 = vsel %vm474, %v832, %v830
        %v835 = vmul.f32 %v833, %v401
        %v836 = vmul.f32 %v834, %v402
        %837 = vrot.lane.b32.xlu0 %v779, 111
        %v838 = vpop.permute.xlu0 %837
        %839 = vrot.lane.b32.xlu0 %v780, 111
        %v840 = vpop.permute.xlu0 %839
        %v841 = vsel %vm483, %v838, %v840
        %v842 = vsel %vm483, %v840, %v838
        %v843 = vmul.f32 %v841, %v404
        %v844 = vmul.f32 %v842, %v405
        %s845 = sld [smem:[#allocation3 + $0x1]]
        %v846 = vrot.slane %v787, 7
        %v847 = vrot.slane %v788, 7
        %v848 = vmul.f32 %v846, %v407
        %v849 = vmul.f32 %v847, %v408
        %v850 = vstv %s845
        %v851 = vmul.f32 %v848, %v850
        %v852 = vmul.f32 %v849, %v850
        %s853 = sld [smem:[#allocation3 + $0x5]]
        %v854 = vrot.slane %v795, 7
        %v855 = vrot.slane %v796, 7
        %v856 = vmul.f32 %v854, %v407
        %v857 = vmul.f32 %v855, %v408
        %v858 = vstv %s853
        %v859 = vmul.f32 %v856, %v858
        %v860 = vmul.f32 %v857, %v858
        %v861 = vadd.f32 %v851, %v859
        %v862 = vadd.f32 %v852, %v860
        %s863 = sld [smem:[#allocation3 + $0x9]]
        %v864 = vrot.slane %v803, 7
        %v865 = vrot.slane %v804, 7
        %v866 = vmul.f32 %v864, %v407
        %v867 = vmul.f32 %v865, %v408
        %v868 = vstv %s863
        %v869 = vmul.f32 %v866, %v868
        %v870 = vmul.f32 %v867, %v868
        %v871 = vadd.f32 %v861, %v869
        %v872 = vadd.f32 %v862, %v870
        %s873 = sld [smem:[#allocation3 + $0xd]]
        %v874 = vrot.slane %v811, 7
        %v875 = vrot.slane %v812, 7
        %v876 = vmul.f32 %v874, %v407
        %v877 = vmul.f32 %v875, %v408
        %v878 = vstv %s873
        %v879 = vmul.f32 %v876, %v878
        %v880 = vmul.f32 %v877, %v878
        %v881 = vadd.f32 %v871, %v879
        %v882 = vadd.f32 %v872, %v880
        %s883 = sld [smem:[#allocation3 + $0x11]]
        %v884 = vrot.slane %v779, 7
        %v885 = vrot.slane %v780, 7
        %v886 = vmul.f32 %v884, %v407
        %v887 = vmul.f32 %v885, %v408
        %v888 = vstv %s883
        %v889 = vmul.f32 %v886, %v888
        %v890 = vmul.f32 %v887, %v888
        %v891 = vadd.f32 %v881, %v889
        %v892 = vadd.f32 %v882, %v890
        %s893 = sld [smem:[#allocation3 + $0x15]]
        %v894 = vrot.slane %v819, 7
        %v895 = vrot.slane %v820, 7
        %v896 = vmul.f32 %v894, %v407
        %v897 = vmul.f32 %v895, %v408
        %v898 = vstv %s893
        %v899 = vmul.f32 %v896, %v898
        %v900 = vmul.f32 %v897, %v898
        %v901 = vadd.f32 %v891, %v899
        %v902 = vadd.f32 %v892, %v900
        %s903 = sld [smem:[#allocation3 + $0x19]]
        %v904 = vrot.slane %v827, 7
        %v905 = vrot.slane %v828, 7
        %v906 = vmul.f32 %v904, %v407
        %v907 = vmul.f32 %v905, %v408
        %v908 = vstv %s903
        %v909 = vmul.f32 %v906, %v908
        %v910 = vmul.f32 %v907, %v908
        %v911 = vadd.f32 %v901, %v909
        %v912 = vadd.f32 %v902, %v910
        %s913 = sld [smem:[#allocation3 + $0x1d]]
        %v914 = vrot.slane %v835, 7
        %v915 = vrot.slane %v836, 7
        %v916 = vmul.f32 %v914, %v407
        %v917 = vmul.f32 %v915, %v408
        %v918 = vstv %s913
        %v919 = vmul.f32 %v916, %v918
        %v920 = vmul.f32 %v917, %v918
        %v921 = vadd.f32 %v911, %v919
        %v922 = vadd.f32 %v912, %v920
        %s923 = sld [smem:[#allocation3 + $0x21]]
        %v924 = vrot.slane %v843, 7
        %v925 = vrot.slane %v844, 7
        %v926 = vmul.f32 %v924, %v407
        %v927 = vmul.f32 %v925, %v408
        %v928 = vstv %s923
        %v929 = vmul.f32 %v926, %v928
        %v930 = vmul.f32 %v927, %v928
        %v931 = vadd.f32 %v921, %v929
        %v932 = vadd.f32 %v922, %v930
        %s933 = sld [smem:[#allocation3 + $0x25]]
        %v934 = vstv %s933
        %v935 = vmul.f32 %v787, %v934
        %v936 = vmul.f32 %v788, %v934
        %v937 = vadd.f32 %v931, %v935
        %v938 = vadd.f32 %v932, %v936
        %s939 = sld [smem:[#allocation3 + $0x29]]
        %v940 = vstv %s939
        %v941 = vmul.f32 %v795, %v940
        %v942 = vmul.f32 %v796, %v940
        %v943 = vadd.f32 %v937, %v941
        %v944 = vadd.f32 %v938, %v942
        %s945 = sld [smem:[#allocation3 + $0x2d]]
        %v946 = vstv %s945
        %v947 = vmul.f32 %v803, %v946
        %v948 = vmul.f32 %v804, %v946
        %v949 = vadd.f32 %v943, %v947
        %v950 = vadd.f32 %v944, %v948
        %s951 = sld [smem:[#allocation3 + $0x31]]
        %v952 = vstv %s951
        %v953 = vmul.f32 %v811, %v952
        %v954 = vmul.f32 %v812, %v952
        %v955 = vadd.f32 %v949, %v953
        %v956 = vadd.f32 %v950, %v954
        %s957 = sld [smem:[#allocation3 + $0x35]]
        %v958 = vstv %s957
        %v959 = vmul.f32 %v779, %v958
        %v960 = vmul.f32 %v780, %v958
        %v961 = vadd.f32 %v955, %v959
        %v962 = vadd.f32 %v956, %v960
        %s963 = sld [smem:[#allocation3 + $0x39]]
        %v964 = vstv %s963
        %v965 = vmul.f32 %v819, %v964
        %v966 = vmul.f32 %v820, %v964
        %v967 = vadd.f32 %v961, %v965
        %v968 = vadd.f32 %v962, %v966
        %s969 = sld [smem:[#allocation3 + $0x3d]]
        %v970 = vstv %s969
        %v971 = vmul.f32 %v827, %v970
        %v972 = vmul.f32 %v828, %v970
        %v973 = vadd.f32 %v967, %v971
        %v974 = vadd.f32 %v968, %v972
        %s975 = sld [smem:[#allocation3 + $0x41]]
        %v976 = vstv %s975
        %v977 = vmul.f32 %v835, %v976
        %v978 = vmul.f32 %v836, %v976
        %v979 = vadd.f32 %v973, %v977
        %v980 = vadd.f32 %v974, %v978
        %s981 = sld [smem:[#allocation3 + $0x45]]
        %v982 = vstv %s981
        %v983 = vmul.f32 %v843, %v982
        %v984 = vmul.f32 %v844, %v982
        %v985 = vadd.f32 %v979, %v983
        %v986 = vadd.f32 %v980, %v984
        %s987 = sld [smem:[#allocation3 + $0x49]]
        %v988 = vrot.slane %v787, 1
        %v989 = vrot.slane %v788, 1
        %v990 = vmul.f32 %v988, %v410
        %v991 = vmul.f32 %v989, %v411
        %v992 = vstv %s987
        %v993 = vmul.f32 %v990, %v992
        %v994 = vmul.f32 %v991, %v992
        %v995 = vadd.f32 %v985, %v993
        %v996 = vadd.f32 %v986, %v994
        %s997 = sld [smem:[#allocation3 + $0x4d]]
        %v998 = vrot.slane %v795, 1
        %v999 = vrot.slane %v796, 1
        %v1000 = vmul.f32 %v998, %v410
        %v1001 = vmul.f32 %v999, %v411
        %v1002 = vstv %s997
        %v1003 = vmul.f32 %v1000, %v1002
        %v1004 = vmul.f32 %v1001, %v1002
        %v1005 = vadd.f32 %v995, %v1003
        %v1006 = vadd.f32 %v996, %v1004
        %s1007 = sld [smem:[#allocation3 + $0x51]]
        %v1008 = vrot.slane %v803, 1
        %v1009 = vrot.slane %v804, 1
        %v1010 = vmul.f32 %v1008, %v410
        %v1011 = vmul.f32 %v1009, %v411
        %v1012 = vstv %s1007
        %v1013 = vmul.f32 %v1010, %v1012
        %v1014 = vmul.f32 %v1011, %v1012
        %v1015 = vadd.f32 %v1005, %v1013
        %v1016 = vadd.f32 %v1006, %v1014
        %s1017 = sld [smem:[#allocation3 + $0x55]]
        %v1018 = vrot.slane %v811, 1
        %v1019 = vrot.slane %v812, 1
        %v1020 = vmul.f32 %v1018, %v410
        %v1021 = vmul.f32 %v1019, %v411
        %v1022 = vstv %s1017
        %v1023 = vmul.f32 %v1020, %v1022
        %v1024 = vmul.f32 %v1021, %v1022
        %v1025 = vadd.f32 %v1015, %v1023
        %v1026 = vadd.f32 %v1016, %v1024
        %s1027 = sld [smem:[#allocation3 + $0x59]]
        %v1028 = vrot.slane %v779, 1
        %v1029 = vrot.slane %v780, 1
        %v1030 = vmul.f32 %v1028, %v410
        %v1031 = vmul.f32 %v1029, %v411
        %v1032 = vstv %s1027
        %v1033 = vmul.f32 %v1030, %v1032
        %v1034 = vmul.f32 %v1031, %v1032
        %v1035 = vadd.f32 %v1025, %v1033
        %v1036 = vadd.f32 %v1026, %v1034
        %s1037 = sld [smem:[#allocation3 + $0x5d]]
        %v1038 = vrot.slane %v819, 1
        %v1039 = vrot.slane %v820, 1
        %v1040 = vmul.f32 %v1038, %v410
        %v1041 = vmul.f32 %v1039, %v411
        %v1042 = vstv %s1037
        %v1043 = vmul.f32 %v1040, %v1042
        %v1044 = vmul.f32 %v1041, %v1042
        %v1045 = vadd.f32 %v1035, %v1043
        %v1046 = vadd.f32 %v1036, %v1044
        %s1047 = sld [smem:[#allocation3 + $0x61]]
        %v1048 = vrot.slane %v827, 1
        %v1049 = vrot.slane %v828, 1
        %v1050 = vmul.f32 %v1048, %v410
        %v1051 = vmul.f32 %v1049, %v411
        %v1052 = vstv %s1047
        %v1053 = vmul.f32 %v1050, %v1052
        %v1054 = vmul.f32 %v1051, %v1052
        %v1055 = vadd.f32 %v1045, %v1053
        %v1056 = vadd.f32 %v1046, %v1054
        %s1057 = sld [smem:[#allocation3 + $0x65]]
        %v1058 = vrot.slane %v835, 1
        %v1059 = vrot.slane %v836, 1
        %v1060 = vmul.f32 %v1058, %v410
        %v1061 = vmul.f32 %v1059, %v411
        %v1062 = vstv %s1057
        %v1063 = vmul.f32 %v1060, %v1062
        %v1064 = vmul.f32 %v1061, %v1062
        %v1065 = vadd.f32 %v1055, %v1063
        %v1066 = vadd.f32 %v1056, %v1064
        %s1067 = sld [smem:[#allocation3 + $0x69]]
        %v1068 = vrot.slane %v843, 1
        %v1069 = vrot.slane %v844, 1
        %v1070 = vmul.f32 %v1068, %v410
        %v1071 = vmul.f32 %v1069, %v411
        %v1072 = vstv %s1067
        %v1073 = vmul.f32 %v1070, %v1072
        %v1074 = vmul.f32 %v1071, %v1072
        %v1075 = vadd.f32 %v1065, %v1073
        %v1076 = vadd.f32 %v1066, %v1074
        %s1077 = sld [smem:[#allocation5 + $0x1]]
        %v1078 = vstv %s1077
        %v1079 = vadd.f32 %v1075, %v1078
        %v1080 = vadd.f32 %v1076, %v1078
        %v1081 = vrot.slane %v1079, 4
        %v1082 = vadd.f32 %v1079, %v1081
        %v1083 = vrot.slane %v1082, 2
        %v1084 = vadd.f32 %v1082, %v1083
        %v1085 = vrot.slane %v1084, 1
        %v1086 = vadd.f32 %v1084, %v1085
        %v1087 = vrot.slane %v1080, 4
        %v1088 = vadd.f32 %v1080, %v1087
        %v1089 = vrot.slane %v1088, 2
        %v1090 = vadd.f32 %v1088, %v1089
        %v1091 = vrot.slane %v1090, 1
        %v1092 = vadd.f32 %v1090, %v1091
        %v1093 = vadd.f32 %v1086, %v1092
        %1094 = vadd.xlane.f32.xlu0 %v1093
        %v1095 = vpop.xlane.xlu0 %1094
        %v1096 = vmul.f32 %v1079, %v1079
        %v1097 = vmul.f32 %v1080, %v1080
        %v1098 = vrot.slane %v1096, 4
        %v1099 = vadd.f32 %v1096, %v1098
        %v1100 = vrot.slane %v1099, 2
        %v1101 = vadd.f32 %v1099, %v1100
        %v1102 = vrot.slane %v1101, 1
        %v1103 = vadd.f32 %v1101, %v1102
        %v1104 = vrot.slane %v1097, 4
        %v1105 = vadd.f32 %v1097, %v1104
        %v1106 = vrot.slane %v1105, 2
        %v1107 = vadd.f32 %v1105, %v1106
        %v1108 = vrot.slane %v1107, 1
        %v1109 = vadd.f32 %v1107, %v1108
        %v1110 = vadd.f32 %v1103, %v1109
        %1111 = vadd.xlane.f32.xlu0 %v1110
        %v1112 = vpop.xlane.xlu0 %1111
        %v1113 = vmul.f32 %v1095, 0.00048828125
        %v1114 = vmul.f32 %v1112, 0.00048828125
        %v1115 = vmul.f32 %v1113, %v1113
        %v1116 = vsub.f32 %v1114, %v1115
        %v1117 = vmax.f32 %v1116, 0.0
        %v1118 = vadd.f32 %v1117, 1e-05
        %v1119 = vrsqrt.pop %v1118
        %s1120 = sld [smem:[#allocation7 + $0x1]]
        %v1121 = vstv %s1120
        %v1122 = vmul.f32 %v1119, %v1121
        %s1123 = sld [smem:[#allocation8 + $0x1]]
        %v1124 = vmul.f32 %v1113, %v1122
        %v1125 = vstv %s1123
        %v1126 = vsub.f32 %v1125, %v1124
        %v1127 = vmul.f32 %v1079, %v1122
        %v1128 = vmul.f32 %v1080, %v1122
        %v1129 = vadd.f32 %v1127, %v1126
        %v1130 = vadd.f32 %v1128, %v1126
        %v1131 = vmax.f32 %v1129, 0.0
        %v1132 = vmax.f32 %v1130, 0.0
        %s1133 = scalar_lea.vmem [#allocation2], 16
        %1134 = vst [vmem:[%s1133] sm:$0xff] %v1131
        %1135 = vst [vmem:[%s1133 + $0x8] sm:$0xff] %v1132
        %s1136 = scalar_lea.vmem %s377, 32
        %v1137 = vld [vmem:[%s1136] sm:$0xff]
        %v1138 = vld [vmem:[%s1136 + $0x8] sm:$0xff]
        %1139 = vrot.lane.b32.xlu0 %v1137, 17
        %v1140 = vpop.permute.xlu0 %1139
        %1141 = vrot.lane.b32.xlu0 %v1138, 17
        %v1142 = vpop.permute.xlu0 %1141
        %v1143 = vsel %vm420, %v1140, %v1142
        %v1144 = vsel %vm420, %v1142, %v1140
        %v1145 = vmul.f32 %v1144, %v383
        %v1146 = vmul.f32 %v1143, %v384
        %1147 = vrot.lane.b32.xlu0 %v1137, 16
        %v1148 = vpop.permute.xlu0 %1147
        %1149 = vrot.lane.b32.xlu0 %v1138, 16
        %v1150 = vpop.permute.xlu0 %1149
        %v1151 = vsel %vm429, %v1148, %v1150
        %v1152 = vsel %vm429, %v1150, %v1148
        %v1153 = vmul.f32 %v1152, %v386
        %v1154 = vmul.f32 %v1151, %v387
        %1155 = vrot.lane.b32.xlu0 %v1137, 15
        %v1156 = vpop.permute.xlu0 %1155
        %1157 = vrot.lane.b32.xlu0 %v1138, 15
        %v1158 = vpop.permute.xlu0 %1157
        %v1159 = vsel %vm438, %v1156, %v1158
        %v1160 = vsel %vm438, %v1158, %v1156
        %v1161 = vmul.f32 %v1160, %v389
        %v1162 = vmul.f32 %v1159, %v390
        %1163 = vrot.lane.b32.xlu0 %v1137, 1
        %v1164 = vpop.permute.xlu0 %1163
        %1165 = vrot.lane.b32.xlu0 %v1138, 1
        %v1166 = vpop.permute.xlu0 %1165
        %v1167 = vsel %vm447, %v1164, %v1166
        %v1168 = vsel %vm447, %v1166, %v1164
        %v1169 = vmul.f32 %v1168, %v392
        %v1170 = vmul.f32 %v1167, %v393
        %1171 = vrot.lane.b32.xlu0 %v1137, 127
        %v1172 = vpop.permute.xlu0 %1171
        %1173 = vrot.lane.b32.xlu0 %v1138, 127
        %v1174 = vpop.permute.xlu0 %1173
        %v1175 = vsel %vm456, %v1172, %v1174
        %v1176 = vsel %vm456, %v1174, %v1172
        %v1177 = vmul.f32 %v1175, %v395
        %v1178 = vmul.f32 %v1176, %v396
        %1179 = vrot.lane.b32.xlu0 %v1137, 113
        %v1180 = vpop.permute.xlu0 %1179
        %1181 = vrot.lane.b32.xlu0 %v1138, 113
        %v1182 = vpop.permute.xlu0 %1181
        %v1183 = vsel %vm465, %v1180, %v1182
        %v1184 = vsel %vm465, %v1182, %v1180
        %v1185 = vmul.f32 %v1183, %v398
        %v1186 = vmul.f32 %v1184, %v399
        %1187 = vrot.lane.b32.xlu0 %v1137, 112
        %v1188 = vpop.permute.xlu0 %1187
        %1189 = vrot.lane.b32.xlu0 %v1138, 112
        %v1190 = vpop.permute.xlu0 %1189
        %v1191 = vsel %vm474, %v1188, %v1190
        %v1192 = vsel %vm474, %v1190, %v1188
        %v1193 = vmul.f32 %v1191, %v401
        %v1194 = vmul.f32 %v1192, %v402
        %1195 = vrot.lane.b32.xlu0 %v1137, 111
        %v1196 = vpop.permute.xlu0 %1195
        %1197 = vrot.lane.b32.xlu0 %v1138, 111
        %v1198 = vpop.permute.xlu0 %1197
        %v1199 = vsel %vm483, %v1196, %v1198
        %v1200 = vsel %vm483, %v1198, %v1196
        %v1201 = vmul.f32 %v1199, %v404
        %v1202 = vmul.f32 %v1200, %v405
        %s1203 = sld [smem:[#allocation3 + $0x2]]
        %v1204 = vrot.slane %v1145, 7
        %v1205 = vrot.slane %v1146, 7
        %v1206 = vmul.f32 %v1204, %v407
        %v1207 = vmul.f32 %v1205, %v408
        %v1208 = vstv %s1203
        %v1209 = vmul.f32 %v1206, %v1208
        %v1210 = vmul.f32 %v1207, %v1208
        %s1211 = sld [smem:[#allocation3 + $0x6]]
        %v1212 = vrot.slane %v1153, 7
        %v1213 = vrot.slane %v1154, 7
        %v1214 = vmul.f32 %v1212, %v407
        %v1215 = vmul.f32 %v1213, %v408
        %v1216 = vstv %s1211
        %v1217 = vmul.f32 %v1214, %v1216
        %v1218 = vmul.f32 %v1215, %v1216
        %v1219 = vadd.f32 %v1209, %v1217
        %v1220 = vadd.f32 %v1210, %v1218
        %s1221 = sld [smem:[#allocation3 + $0xa]]
        %v1222 = vrot.slane %v1161, 7
        %v1223 = vrot.slane %v1162, 7
        %v1224 = vmul.f32 %v1222, %v407
        %v1225 = vmul.f32 %v1223, %v408
        %v1226 = vstv %s1221
        %v1227 = vmul.f32 %v1224, %v1226
        %v1228 = vmul.f32 %v1225, %v1226
        %v1229 = vadd.f32 %v1219, %v1227
        %v1230 = vadd.f32 %v1220, %v1228
        %s1231 = sld [smem:[#allocation3 + $0xe]]
        %v1232 = vrot.slane %v1169, 7
        %v1233 = vrot.slane %v1170, 7
        %v1234 = vmul.f32 %v1232, %v407
        %v1235 = vmul.f32 %v1233, %v408
        %v1236 = vstv %s1231
        %v1237 = vmul.f32 %v1234, %v1236
        %v1238 = vmul.f32 %v1235, %v1236
        %v1239 = vadd.f32 %v1229, %v1237
        %v1240 = vadd.f32 %v1230, %v1238
        %s1241 = sld [smem:[#allocation3 + $0x12]]
        %v1242 = vrot.slane %v1137, 7
        %v1243 = vrot.slane %v1138, 7
        %v1244 = vmul.f32 %v1242, %v407
        %v1245 = vmul.f32 %v1243, %v408
        %v1246 = vstv %s1241
        %v1247 = vmul.f32 %v1244, %v1246
        %v1248 = vmul.f32 %v1245, %v1246
        %v1249 = vadd.f32 %v1239, %v1247
        %v1250 = vadd.f32 %v1240, %v1248
        %s1251 = sld [smem:[#allocation3 + $0x16]]
        %v1252 = vrot.slane %v1177, 7
        %v1253 = vrot.slane %v1178, 7
        %v1254 = vmul.f32 %v1252, %v407
        %v1255 = vmul.f32 %v1253, %v408
        %v1256 = vstv %s1251
        %v1257 = vmul.f32 %v1254, %v1256
        %v1258 = vmul.f32 %v1255, %v1256
        %v1259 = vadd.f32 %v1249, %v1257
        %v1260 = vadd.f32 %v1250, %v1258
        %s1261 = sld [smem:[#allocation3 + $0x1a]]
        %v1262 = vrot.slane %v1185, 7
        %v1263 = vrot.slane %v1186, 7
        %v1264 = vmul.f32 %v1262, %v407
        %v1265 = vmul.f32 %v1263, %v408
        %v1266 = vstv %s1261
        %v1267 = vmul.f32 %v1264, %v1266
        %v1268 = vmul.f32 %v1265, %v1266
        %v1269 = vadd.f32 %v1259, %v1267
        %v1270 = vadd.f32 %v1260, %v1268
        %s1271 = sld [smem:[#allocation3 + $0x1e]]
        %v1272 = vrot.slane %v1193, 7
        %v1273 = vrot.slane %v1194, 7
        %v1274 = vmul.f32 %v1272, %v407
        %v1275 = vmul.f32 %v1273, %v408
        %v1276 = vstv %s1271
        %v1277 = vmul.f32 %v1274, %v1276
        %v1278 = vmul.f32 %v1275, %v1276
        %v1279 = vadd.f32 %v1269, %v1277
        %v1280 = vadd.f32 %v1270, %v1278
        %s1281 = sld [smem:[#allocation3 + $0x22]]
        %v1282 = vrot.slane %v1201, 7
        %v1283 = vrot.slane %v1202, 7
        %v1284 = vmul.f32 %v1282, %v407
        %v1285 = vmul.f32 %v1283, %v408
        %v1286 = vstv %s1281
        %v1287 = vmul.f32 %v1284, %v1286
        %v1288 = vmul.f32 %v1285, %v1286
        %v1289 = vadd.f32 %v1279, %v1287
        %v1290 = vadd.f32 %v1280, %v1288
        %s1291 = sld [smem:[#allocation3 + $0x26]]
        %v1292 = vstv %s1291
        %v1293 = vmul.f32 %v1145, %v1292
        %v1294 = vmul.f32 %v1146, %v1292
        %v1295 = vadd.f32 %v1289, %v1293
        %v1296 = vadd.f32 %v1290, %v1294
        %s1297 = sld [smem:[#allocation3 + $0x2a]]
        %v1298 = vstv %s1297
        %v1299 = vmul.f32 %v1153, %v1298
        %v1300 = vmul.f32 %v1154, %v1298
        %v1301 = vadd.f32 %v1295, %v1299
        %v1302 = vadd.f32 %v1296, %v1300
        %s1303 = sld [smem:[#allocation3 + $0x2e]]
        %v1304 = vstv %s1303
        %v1305 = vmul.f32 %v1161, %v1304
        %v1306 = vmul.f32 %v1162, %v1304
        %v1307 = vadd.f32 %v1301, %v1305
        %v1308 = vadd.f32 %v1302, %v1306
        %s1309 = sld [smem:[#allocation3 + $0x32]]
        %v1310 = vstv %s1309
        %v1311 = vmul.f32 %v1169, %v1310
        %v1312 = vmul.f32 %v1170, %v1310
        %v1313 = vadd.f32 %v1307, %v1311
        %v1314 = vadd.f32 %v1308, %v1312
        %s1315 = sld [smem:[#allocation3 + $0x36]]
        %v1316 = vstv %s1315
        %v1317 = vmul.f32 %v1137, %v1316
        %v1318 = vmul.f32 %v1138, %v1316
        %v1319 = vadd.f32 %v1313, %v1317
        %v1320 = vadd.f32 %v1314, %v1318
        %s1321 = sld [smem:[#allocation3 + $0x3a]]
        %v1322 = vstv %s1321
        %v1323 = vmul.f32 %v1177, %v1322
        %v1324 = vmul.f32 %v1178, %v1322
        %v1325 = vadd.f32 %v1319, %v1323
        %v1326 = vadd.f32 %v1320, %v1324
        %s1327 = sld [smem:[#allocation3 + $0x3e]]
        %v1328 = vstv %s1327
        %v1329 = vmul.f32 %v1185, %v1328
        %v1330 = vmul.f32 %v1186, %v1328
        %v1331 = vadd.f32 %v1325, %v1329
        %v1332 = vadd.f32 %v1326, %v1330
        %s1333 = sld [smem:[#allocation3 + $0x42]]
        %v1334 = vstv %s1333
        %v1335 = vmul.f32 %v1193, %v1334
        %v1336 = vmul.f32 %v1194, %v1334
        %v1337 = vadd.f32 %v1331, %v1335
        %v1338 = vadd.f32 %v1332, %v1336
        %s1339 = sld [smem:[#allocation3 + $0x46]]
        %v1340 = vstv %s1339
        %v1341 = vmul.f32 %v1201, %v1340
        %v1342 = vmul.f32 %v1202, %v1340
        %v1343 = vadd.f32 %v1337, %v1341
        %v1344 = vadd.f32 %v1338, %v1342
        %s1345 = sld [smem:[#allocation3 + $0x4a]]
        %v1346 = vrot.slane %v1145, 1
        %v1347 = vrot.slane %v1146, 1
        %v1348 = vmul.f32 %v1346, %v410
        %v1349 = vmul.f32 %v1347, %v411
        %v1350 = vstv %s1345
        %v1351 = vmul.f32 %v1348, %v1350
        %v1352 = vmul.f32 %v1349, %v1350
        %v1353 = vadd.f32 %v1343, %v1351
        %v1354 = vadd.f32 %v1344, %v1352
        %s1355 = sld [smem:[#allocation3 + $0x4e]]
        %v1356 = vrot.slane %v1153, 1
        %v1357 = vrot.slane %v1154, 1
        %v1358 = vmul.f32 %v1356, %v410
        %v1359 = vmul.f32 %v1357, %v411
        %v1360 = vstv %s1355
        %v1361 = vmul.f32 %v1358, %v1360
        %v1362 = vmul.f32 %v1359, %v1360
        %v1363 = vadd.f32 %v1353, %v1361
        %v1364 = vadd.f32 %v1354, %v1362
        %s1365 = sld [smem:[#allocation3 + $0x52]]
        %v1366 = vrot.slane %v1161, 1
        %v1367 = vrot.slane %v1162, 1
        %v1368 = vmul.f32 %v1366, %v410
        %v1369 = vmul.f32 %v1367, %v411
        %v1370 = vstv %s1365
        %v1371 = vmul.f32 %v1368, %v1370
        %v1372 = vmul.f32 %v1369, %v1370
        %v1373 = vadd.f32 %v1363, %v1371
        %v1374 = vadd.f32 %v1364, %v1372
        %s1375 = sld [smem:[#allocation3 + $0x56]]
        %v1376 = vrot.slane %v1169, 1
        %v1377 = vrot.slane %v1170, 1
        %v1378 = vmul.f32 %v1376, %v410
        %v1379 = vmul.f32 %v1377, %v411
        %v1380 = vstv %s1375
        %v1381 = vmul.f32 %v1378, %v1380
        %v1382 = vmul.f32 %v1379, %v1380
        %v1383 = vadd.f32 %v1373, %v1381
        %v1384 = vadd.f32 %v1374, %v1382
        %s1385 = sld [smem:[#allocation3 + $0x5a]]
        %v1386 = vrot.slane %v1137, 1
        %v1387 = vrot.slane %v1138, 1
        %v1388 = vmul.f32 %v1386, %v410
        %v1389 = vmul.f32 %v1387, %v411
        %v1390 = vstv %s1385
        %v1391 = vmul.f32 %v1388, %v1390
        %v1392 = vmul.f32 %v1389, %v1390
        %v1393 = vadd.f32 %v1383, %v1391
        %v1394 = vadd.f32 %v1384, %v1392
        %s1395 = sld [smem:[#allocation3 + $0x5e]]
        %v1396 = vrot.slane %v1177, 1
        %v1397 = vrot.slane %v1178, 1
        %v1398 = vmul.f32 %v1396, %v410
        %v1399 = vmul.f32 %v1397, %v411
        %v1400 = vstv %s1395
        %v1401 = vmul.f32 %v1398, %v1400
        %v1402 = vmul.f32 %v1399, %v1400
        %v1403 = vadd.f32 %v1393, %v1401
        %v1404 = vadd.f32 %v1394, %v1402
        %s1405 = sld [smem:[#allocation3 + $0x62]]
        %v1406 = vrot.slane %v1185, 1
        %v1407 = vrot.slane %v1186, 1
        %v1408 = vmul.f32 %v1406, %v410
        %v1409 = vmul.f32 %v1407, %v411
        %v1410 = vstv %s1405
        %v1411 = vmul.f32 %v1408, %v1410
        %v1412 = vmul.f32 %v1409, %v1410
        %v1413 = vadd.f32 %v1403, %v1411
        %v1414 = vadd.f32 %v1404, %v1412
        %s1415 = sld [smem:[#allocation3 + $0x66]]
        %v1416 = vrot.slane %v1193, 1
        %v1417 = vrot.slane %v1194, 1
        %v1418 = vmul.f32 %v1416, %v410
        %v1419 = vmul.f32 %v1417, %v411
        %v1420 = vstv %s1415
        %v1421 = vmul.f32 %v1418, %v1420
        %v1422 = vmul.f32 %v1419, %v1420
        %v1423 = vadd.f32 %v1413, %v1421
        %v1424 = vadd.f32 %v1414, %v1422
        %s1425 = sld [smem:[#allocation3 + $0x6a]]
        %v1426 = vrot.slane %v1201, 1
        %v1427 = vrot.slane %v1202, 1
        %v1428 = vmul.f32 %v1426, %v410
        %v1429 = vmul.f32 %v1427, %v411
        %v1430 = vstv %s1425
        %v1431 = vmul.f32 %v1428, %v1430
        %v1432 = vmul.f32 %v1429, %v1430
        %v1433 = vadd.f32 %v1423, %v1431
        %v1434 = vadd.f32 %v1424, %v1432
        %s1435 = sld [smem:[#allocation5 + $0x2]]
        %v1436 = vstv %s1435
        %v1437 = vadd.f32 %v1433, %v1436
        %v1438 = vadd.f32 %v1434, %v1436
        %v1439 = vrot.slane %v1437, 4
        %v1440 = vadd.f32 %v1437, %v1439
        %v1441 = vrot.slane %v1440, 2
        %v1442 = vadd.f32 %v1440, %v1441
        %v1443 = vrot.slane %v1442, 1
        %v1444 = vadd.f32 %v1442, %v1443
        %v1445 = vrot.slane %v1438, 4
        %v1446 = vadd.f32 %v1438, %v1445
        %v1447 = vrot.slane %v1446, 2
        %v1448 = vadd.f32 %v1446, %v1447
        %v1449 = vrot.slane %v1448, 1
        %v1450 = vadd.f32 %v1448, %v1449
        %v1451 = vadd.f32 %v1444, %v1450
        %1452 = vadd.xlane.f32.xlu0 %v1451
        %v1453 = vpop.xlane.xlu0 %1452
        %v1454 = vmul.f32 %v1437, %v1437
        %v1455 = vmul.f32 %v1438, %v1438
        %v1456 = vrot.slane %v1454, 4
        %v1457 = vadd.f32 %v1454, %v1456
        %v1458 = vrot.slane %v1457, 2
        %v1459 = vadd.f32 %v1457, %v1458
        %v1460 = vrot.slane %v1459, 1
        %v1461 = vadd.f32 %v1459, %v1460
        %v1462 = vrot.slane %v1455, 4
        %v1463 = vadd.f32 %v1455, %v1462
        %v1464 = vrot.slane %v1463, 2
        %v1465 = vadd.f32 %v1463, %v1464
        %v1466 = vrot.slane %v1465, 1
        %v1467 = vadd.f32 %v1465, %v1466
        %v1468 = vadd.f32 %v1461, %v1467
        %1469 = vadd.xlane.f32.xlu0 %v1468
        %v1470 = vpop.xlane.xlu0 %1469
        %v1471 = vmul.f32 %v1453, 0.00048828125
        %v1472 = vmul.f32 %v1470, 0.00048828125
        %v1473 = vmul.f32 %v1471, %v1471
        %v1474 = vsub.f32 %v1472, %v1473
        %v1475 = vmax.f32 %v1474, 0.0
        %v1476 = vadd.f32 %v1475, 1e-05
        %v1477 = vrsqrt.pop %v1476
        %s1478 = sld [smem:[#allocation7 + $0x2]]
        %v1479 = vstv %s1478
        %v1480 = vmul.f32 %v1477, %v1479
        %s1481 = sld [smem:[#allocation8 + $0x2]]
        %v1482 = vmul.f32 %v1471, %v1480
        %v1483 = vstv %s1481
        %v1484 = vsub.f32 %v1483, %v1482
        %v1485 = vmul.f32 %v1437, %v1480
        %v1486 = vmul.f32 %v1438, %v1480
        %v1487 = vadd.f32 %v1485, %v1484
        %v1488 = vadd.f32 %v1486, %v1484
        %v1489 = vmax.f32 %v1487, 0.0
        %v1490 = vmax.f32 %v1488, 0.0
        %s1491 = scalar_lea.vmem [#allocation2], 32
        %1492 = vst [vmem:[%s1491] sm:$0xff] %v1489
        %1493 = vst [vmem:[%s1491 + $0x8] sm:$0xff] %v1490
        %s1494 = scalar_lea.vmem %s377, 48
        %v1495 = vld [vmem:[%s1494] sm:$0xff]
        %v1496 = vld [vmem:[%s1494 + $0x8] sm:$0xff]
        %1497 = vrot.lane.b32.xlu0 %v1495, 17
        %v1498 = vpop.permute.xlu0 %1497
        %1499 = vrot.lane.b32.xlu0 %v1496, 17
        %v1500 = vpop.permute.xlu0 %1499
        %v1501 = vsel %vm420, %v1498, %v1500
        %v1502 = vsel %vm420, %v1500, %v1498
        %v1503 = vmul.f32 %v1502, %v383
        %v1504 = vmul.f32 %v1501, %v384
        %1505 = vrot.lane.b32.xlu0 %v1495, 16
        %v1506 = vpop.permute.xlu0 %1505
        %1507 = vrot.lane.b32.xlu0 %v1496, 16
        %v1508 = vpop.permute.xlu0 %1507
        %v1509 = vsel %vm429, %v1506, %v1508
        %v1510 = vsel %vm429, %v1508, %v1506
        %v1511 = vmul.f32 %v1510, %v386
        %v1512 = vmul.f32 %v1509, %v387
        %1513 = vrot.lane.b32.xlu0 %v1495, 15
        %v1514 = vpop.permute.xlu0 %1513
        %1515 = vrot.lane.b32.xlu0 %v1496, 15
        %v1516 = vpop.permute.xlu0 %1515
        %v1517 = vsel %vm438, %v1514, %v1516
        %v1518 = vsel %vm438, %v1516, %v1514
        %v1519 = vmul.f32 %v1518, %v389
        %v1520 = vmul.f32 %v1517, %v390
        %1521 = vrot.lane.b32.xlu0 %v1495, 1
        %v1522 = vpop.permute.xlu0 %1521
        %1523 = vrot.lane.b32.xlu0 %v1496, 1
        %v1524 = vpop.permute.xlu0 %1523
        %v1525 = vsel %vm447, %v1522, %v1524
        %v1526 = vsel %vm447, %v1524, %v1522
        %v1527 = vmul.f32 %v1526, %v392
        %v1528 = vmul.f32 %v1525, %v393
        %1529 = vrot.lane.b32.xlu0 %v1495, 127
        %v1530 = vpop.permute.xlu0 %1529
        %1531 = vrot.lane.b32.xlu0 %v1496, 127
        %v1532 = vpop.permute.xlu0 %1531
        %v1533 = vsel %vm456, %v1530, %v1532
        %v1534 = vsel %vm456, %v1532, %v1530
        %v1535 = vmul.f32 %v1533, %v395
        %v1536 = vmul.f32 %v1534, %v396
        %1537 = vrot.lane.b32.xlu0 %v1495, 113
        %v1538 = vpop.permute.xlu0 %1537
        %1539 = vrot.lane.b32.xlu0 %v1496, 113
        %v1540 = vpop.permute.xlu0 %1539
        %v1541 = vsel %vm465, %v1538, %v1540
        %v1542 = vsel %vm465, %v1540, %v1538
        %v1543 = vmul.f32 %v1541, %v398
        %v1544 = vmul.f32 %v1542, %v399
        %1545 = vrot.lane.b32.xlu0 %v1495, 112
        %v1546 = vpop.permute.xlu0 %1545
        %1547 = vrot.lane.b32.xlu0 %v1496, 112
        %v1548 = vpop.permute.xlu0 %1547
        %v1549 = vsel %vm474, %v1546, %v1548
        %v1550 = vsel %vm474, %v1548, %v1546
        %v1551 = vmul.f32 %v1549, %v401
        %v1552 = vmul.f32 %v1550, %v402
        %1553 = vrot.lane.b32.xlu0 %v1495, 111
        %v1554 = vpop.permute.xlu0 %1553
        %1555 = vrot.lane.b32.xlu0 %v1496, 111
        %v1556 = vpop.permute.xlu0 %1555
        %v1557 = vsel %vm483, %v1554, %v1556
        %v1558 = vsel %vm483, %v1556, %v1554
        %v1559 = vmul.f32 %v1557, %v404
        %v1560 = vmul.f32 %v1558, %v405
        %s1561 = sld [smem:[#allocation3 + $0x3]]
        %v1562 = vrot.slane %v1503, 7
        %v1563 = vrot.slane %v1504, 7
        %v1564 = vmul.f32 %v1562, %v407
        %v1565 = vmul.f32 %v1563, %v408
        %v1566 = vstv %s1561
        %v1567 = vmul.f32 %v1564, %v1566
        %v1568 = vmul.f32 %v1565, %v1566
        %s1569 = sld [smem:[#allocation3 + $0x7]]
        %v1570 = vrot.slane %v1511, 7
        %v1571 = vrot.slane %v1512, 7
        %v1572 = vmul.f32 %v1570, %v407
        %v1573 = vmul.f32 %v1571, %v408
        %v1574 = vstv %s1569
        %v1575 = vmul.f32 %v1572, %v1574
        %v1576 = vmul.f32 %v1573, %v1574
        %v1577 = vadd.f32 %v1567, %v1575
        %v1578 = vadd.f32 %v1568, %v1576
        %s1579 = sld [smem:[#allocation3 + $0xb]]
        %v1580 = vrot.slane %v1519, 7
        %v1581 = vrot.slane %v1520, 7
        %v1582 = vmul.f32 %v1580, %v407
        %v1583 = vmul.f32 %v1581, %v408
        %v1584 = vstv %s1579
        %v1585 = vmul.f32 %v1582, %v1584
        %v1586 = vmul.f32 %v1583, %v1584
        %v1587 = vadd.f32 %v1577, %v1585
        %v1588 = vadd.f32 %v1578, %v1586
        %s1589 = sld [smem:[#allocation3 + $0xf]]
        %v1590 = vrot.slane %v1527, 7
        %v1591 = vrot.slane %v1528, 7
        %v1592 = vmul.f32 %v1590, %v407
        %v1593 = vmul.f32 %v1591, %v408
        %v1594 = vstv %s1589
        %v1595 = vmul.f32 %v1592, %v1594
        %v1596 = vmul.f32 %v1593, %v1594
        %v1597 = vadd.f32 %v1587, %v1595
        %v1598 = vadd.f32 %v1588, %v1596
        %s1599 = sld [smem:[#allocation3 + $0x13]]
        %v1600 = vrot.slane %v1495, 7
        %v1601 = vrot.slane %v1496, 7
        %v1602 = vmul.f32 %v1600, %v407
        %v1603 = vmul.f32 %v1601, %v408
        %v1604 = vstv %s1599
        %v1605 = vmul.f32 %v1602, %v1604
        %v1606 = vmul.f32 %v1603, %v1604
        %v1607 = vadd.f32 %v1597, %v1605
        %v1608 = vadd.f32 %v1598, %v1606
        %s1609 = sld [smem:[#allocation3 + $0x17]]
        %v1610 = vrot.slane %v1535, 7
        %v1611 = vrot.slane %v1536, 7
        %v1612 = vmul.f32 %v1610, %v407
        %v1613 = vmul.f32 %v1611, %v408
        %v1614 = vstv %s1609
        %v1615 = vmul.f32 %v1612, %v1614
        %v1616 = vmul.f32 %v1613, %v1614
        %v1617 = vadd.f32 %v1607, %v1615
        %v1618 = vadd.f32 %v1608, %v1616
        %s1619 = sld [smem:[#allocation3 + $0x1b]]
        %v1620 = vrot.slane %v1543, 7
        %v1621 = vrot.slane %v1544, 7
        %v1622 = vmul.f32 %v1620, %v407
        %v1623 = vmul.f32 %v1621, %v408
        %v1624 = vstv %s1619
        %v1625 = vmul.f32 %v1622, %v1624
        %v1626 = vmul.f32 %v1623, %v1624
        %v1627 = vadd.f32 %v1617, %v1625
        %v1628 = vadd.f32 %v1618, %v1626
        %s1629 = sld [smem:[#allocation3 + $0x1f]]
        %v1630 = vrot.slane %v1551, 7
        %v1631 = vrot.slane %v1552, 7
        %v1632 = vmul.f32 %v1630, %v407
        %v1633 = vmul.f32 %v1631, %v408
        %v1634 = vstv %s1629
        %v1635 = vmul.f32 %v1632, %v1634
        %v1636 = vmul.f32 %v1633, %v1634
        %v1637 = vadd.f32 %v1627, %v1635
        %v1638 = vadd.f32 %v1628, %v1636
        %s1639 = sld [smem:[#allocation3 + $0x23]]
        %v1640 = vrot.slane %v1559, 7
        %v1641 = vrot.slane %v1560, 7
        %v1642 = vmul.f32 %v1640, %v407
        %v1643 = vmul.f32 %v1641, %v408
        %v1644 = vstv %s1639
        %v1645 = vmul.f32 %v1642, %v1644
        %v1646 = vmul.f32 %v1643, %v1644
        %v1647 = vadd.f32 %v1637, %v1645
        %v1648 = vadd.f32 %v1638, %v1646
        %s1649 = sld [smem:[#allocation3 + $0x27]]
        %v1650 = vstv %s1649
        %v1651 = vmul.f32 %v1503, %v1650
        %v1652 = vmul.f32 %v1504, %v1650
        %v1653 = vadd.f32 %v1647, %v1651
        %v1654 = vadd.f32 %v1648, %v1652
        %s1655 = sld [smem:[#allocation3 + $0x2b]]
        %v1656 = vstv %s1655
        %v1657 = vmul.f32 %v1511, %v1656
        %v1658 = vmul.f32 %v1512, %v1656
        %v1659 = vadd.f32 %v1653, %v1657
        %v1660 = vadd.f32 %v1654, %v1658
        %s1661 = sld [smem:[#allocation3 + $0x2f]]
        %v1662 = vstv %s1661
        %v1663 = vmul.f32 %v1519, %v1662
        %v1664 = vmul.f32 %v1520, %v1662
        %v1665 = vadd.f32 %v1659, %v1663
        %v1666 = vadd.f32 %v1660, %v1664
        %s1667 = sld [smem:[#allocation3 + $0x33]]
        %v1668 = vstv %s1667
        %v1669 = vmul.f32 %v1527, %v1668
        %v1670 = vmul.f32 %v1528, %v1668
        %v1671 = vadd.f32 %v1665, %v1669
        %v1672 = vadd.f32 %v1666, %v1670
        %s1673 = sld [smem:[#allocation3 + $0x37]]
        %v1674 = vstv %s1673
        %v1675 = vmul.f32 %v1495, %v1674
        %v1676 = vmul.f32 %v1496, %v1674
        %v1677 = vadd.f32 %v1671, %v1675
        %v1678 = vadd.f32 %v1672, %v1676
        %s1679 = sld [smem:[#allocation3 + $0x3b]]
        %v1680 = vstv %s1679
        %v1681 = vmul.f32 %v1535, %v1680
        %v1682 = vmul.f32 %v1536, %v1680
        %v1683 = vadd.f32 %v1677, %v1681
        %v1684 = vadd.f32 %v1678, %v1682
        %s1685 = sld [smem:[#allocation3 + $0x3f]]
        %v1686 = vstv %s1685
        %v1687 = vmul.f32 %v1543, %v1686
        %v1688 = vmul.f32 %v1544, %v1686
        %v1689 = vadd.f32 %v1683, %v1687
        %v1690 = vadd.f32 %v1684, %v1688
        %s1691 = sld [smem:[#allocation3 + $0x43]]
        %v1692 = vstv %s1691
        %v1693 = vmul.f32 %v1551, %v1692
        %v1694 = vmul.f32 %v1552, %v1692
        %v1695 = vadd.f32 %v1689, %v1693
        %v1696 = vadd.f32 %v1690, %v1694
        %s1697 = sld [smem:[#allocation3 + $0x47]]
        %v1698 = vstv %s1697
        %v1699 = vmul.f32 %v1559, %v1698
        %v1700 = vmul.f32 %v1560, %v1698
        %v1701 = vadd.f32 %v1695, %v1699
        %v1702 = vadd.f32 %v1696, %v1700
        %s1703 = sld [smem:[#allocation3 + $0x4b]]
        %v1704 = vrot.slane %v1503, 1
        %v1705 = vrot.slane %v1504, 1
        %v1706 = vmul.f32 %v1704, %v410
        %v1707 = vmul.f32 %v1705, %v411
        %v1708 = vstv %s1703
        %v1709 = vmul.f32 %v1706, %v1708
        %v1710 = vmul.f32 %v1707, %v1708
        %v1711 = vadd.f32 %v1701, %v1709
        %v1712 = vadd.f32 %v1702, %v1710
        %s1713 = sld [smem:[#allocation3 + $0x4f]]
        %v1714 = vrot.slane %v1511, 1
        %v1715 = vrot.slane %v1512, 1
        %v1716 = vmul.f32 %v1714, %v410
        %v1717 = vmul.f32 %v1715, %v411
        %v1718 = vstv %s1713
        %v1719 = vmul.f32 %v1716, %v1718
        %v1720 = vmul.f32 %v1717, %v1718
        %v1721 = vadd.f32 %v1711, %v1719
        %v1722 = vadd.f32 %v1712, %v1720
        %s1723 = sld [smem:[#allocation3 + $0x53]]
        %v1724 = vrot.slane %v1519, 1
        %v1725 = vrot.slane %v1520, 1
        %v1726 = vmul.f32 %v1724, %v410
        %v1727 = vmul.f32 %v1725, %v411
        %v1728 = vstv %s1723
        %v1729 = vmul.f32 %v1726, %v1728
        %v1730 = vmul.f32 %v1727, %v1728
        %v1731 = vadd.f32 %v1721, %v1729
        %v1732 = vadd.f32 %v1722, %v1730
        %s1733 = sld [smem:[#allocation3 + $0x57]]
        %v1734 = vrot.slane %v1527, 1
        %v1735 = vrot.slane %v1528, 1
        %v1736 = vmul.f32 %v1734, %v410
        %v1737 = vmul.f32 %v1735, %v411
        %v1738 = vstv %s1733
        %v1739 = vmul.f32 %v1736, %v1738
        %v1740 = vmul.f32 %v1737, %v1738
        %v1741 = vadd.f32 %v1731, %v1739
        %v1742 = vadd.f32 %v1732, %v1740
        %s1743 = sld [smem:[#allocation3 + $0x5b]]
        %v1744 = vrot.slane %v1495, 1
        %v1745 = vrot.slane %v1496, 1
        %v1746 = vmul.f32 %v1744, %v410
        %v1747 = vmul.f32 %v1745, %v411
        %v1748 = vstv %s1743
        %v1749 = vmul.f32 %v1746, %v1748
        %v1750 = vmul.f32 %v1747, %v1748
        %v1751 = vadd.f32 %v1741, %v1749
        %v1752 = vadd.f32 %v1742, %v1750
        %s1753 = sld [smem:[#allocation3 + $0x5f]]
        %v1754 = vrot.slane %v1535, 1
        %v1755 = vrot.slane %v1536, 1
        %v1756 = vmul.f32 %v1754, %v410
        %v1757 = vmul.f32 %v1755, %v411
        %v1758 = vstv %s1753
        %v1759 = vmul.f32 %v1756, %v1758
        %v1760 = vmul.f32 %v1757, %v1758
        %v1761 = vadd.f32 %v1751, %v1759
        %v1762 = vadd.f32 %v1752, %v1760
        %s1763 = sld [smem:[#allocation3 + $0x63]]
        %v1764 = vrot.slane %v1543, 1
        %v1765 = vrot.slane %v1544, 1
        %v1766 = vmul.f32 %v1764, %v410
        %v1767 = vmul.f32 %v1765, %v411
        %v1768 = vstv %s1763
        %v1769 = vmul.f32 %v1766, %v1768
        %v1770 = vmul.f32 %v1767, %v1768
        %v1771 = vadd.f32 %v1761, %v1769
        %v1772 = vadd.f32 %v1762, %v1770
        %s1773 = sld [smem:[#allocation3 + $0x67]]
        %v1774 = vrot.slane %v1551, 1
        %v1775 = vrot.slane %v1552, 1
        %v1776 = vmul.f32 %v1774, %v410
        %v1777 = vmul.f32 %v1775, %v411
        %v1778 = vstv %s1773
        %v1779 = vmul.f32 %v1776, %v1778
        %v1780 = vmul.f32 %v1777, %v1778
        %v1781 = vadd.f32 %v1771, %v1779
        %v1782 = vadd.f32 %v1772, %v1780
        %s1783 = sld [smem:[#allocation3 + $0x6b]]
        %v1784 = vrot.slane %v1559, 1
        %v1785 = vrot.slane %v1560, 1
        %v1786 = vmul.f32 %v1784, %v410
        %v1787 = vmul.f32 %v1785, %v411
        %v1788 = vstv %s1783
        %v1789 = vmul.f32 %v1786, %v1788
        %v1790 = vmul.f32 %v1787, %v1788
        %v1791 = vadd.f32 %v1781, %v1789
        %v1792 = vadd.f32 %v1782, %v1790
        %s1793 = sld [smem:[#allocation5 + $0x3]]
        %v1794 = vstv %s1793
        %v1795 = vadd.f32 %v1791, %v1794
        %v1796 = vadd.f32 %v1792, %v1794
        %v1797 = vrot.slane %v1795, 4
        %v1798 = vadd.f32 %v1795, %v1797
        %v1799 = vrot.slane %v1798, 2
        %v1800 = vadd.f32 %v1798, %v1799
        %v1801 = vrot.slane %v1800, 1
        %v1802 = vadd.f32 %v1800, %v1801
        %v1803 = vrot.slane %v1796, 4
        %v1804 = vadd.f32 %v1796, %v1803
        %v1805 = vrot.slane %v1804, 2
        %v1806 = vadd.f32 %v1804, %v1805
        %v1807 = vrot.slane %v1806, 1
        %v1808 = vadd.f32 %v1806, %v1807
        %v1809 = vadd.f32 %v1802, %v1808
        %1810 = vadd.xlane.f32.xlu0 %v1809
        %v1811 = vpop.xlane.xlu0 %1810
        %v1812 = vmul.f32 %v1795, %v1795
        %v1813 = vmul.f32 %v1796, %v1796
        %v1814 = vrot.slane %v1812, 4
        %v1815 = vadd.f32 %v1812, %v1814
        %v1816 = vrot.slane %v1815, 2
        %v1817 = vadd.f32 %v1815, %v1816
        %v1818 = vrot.slane %v1817, 1
        %v1819 = vadd.f32 %v1817, %v1818
        %v1820 = vrot.slane %v1813, 4
        %v1821 = vadd.f32 %v1813, %v1820
        %v1822 = vrot.slane %v1821, 2
        %v1823 = vadd.f32 %v1821, %v1822
        %v1824 = vrot.slane %v1823, 1
        %v1825 = vadd.f32 %v1823, %v1824
        %v1826 = vadd.f32 %v1819, %v1825
        %1827 = vadd.xlane.f32.xlu0 %v1826
        %v1828 = vpop.xlane.xlu0 %1827
        %v1829 = vmul.f32 %v1811, 0.00048828125
        %v1830 = vmul.f32 %v1828, 0.00048828125
        %v1831 = vmul.f32 %v1829, %v1829
        %v1832 = vsub.f32 %v1830, %v1831
        %v1833 = vmax.f32 %v1832, 0.0
        %v1834 = vadd.f32 %v1833, 1e-05
        %v1835 = vrsqrt.pop %v1834
        %s1836 = sld [smem:[#allocation7 + $0x3]]
        %v1837 = vstv %s1836
        %v1838 = vmul.f32 %v1835, %v1837
        %s1839 = sld [smem:[#allocation8 + $0x3]]
        %v1840 = vmul.f32 %v1829, %v1838
        %v1841 = vstv %s1839
        %v1842 = vsub.f32 %v1841, %v1840
        %v1843 = vmul.f32 %v1795, %v1838
        %v1844 = vmul.f32 %v1796, %v1838
        %v1845 = vadd.f32 %v1843, %v1842
        %v1846 = vadd.f32 %v1844, %v1842
        %v1847 = vmax.f32 %v1845, 0.0
        %v1848 = vmax.f32 %v1846, 0.0
        %s1849 = scalar_lea.vmem [#allocation2], 48
        %1850 = vst [vmem:[%s1849] sm:$0xff] %v1847
        %1851 = vst [vmem:[%s1849 + $0x8] sm:$0xff] %v1848
        %v1852 = vld [vmem:[#allocation2] sm:$0xff]
        %v1853 = vld [vmem:[#allocation2 + $0x8] sm:$0xff]
        %v1854 = vld [vmem:[%s1133] sm:$0xff]
        %v1855 = vld [vmem:[%s1133 + $0x8] sm:$0xff]
        %v1856 = vld [vmem:[%s1491] sm:$0xff]
        %v1857 = vld [vmem:[%s1491 + $0x8] sm:$0xff]
        %v1858 = vld [vmem:[%s1849] sm:$0xff]
        %v1859 = vld [vmem:[%s1849 + $0x8] sm:$0xff]
        %s1860 = sld [smem:[#allocation10]]
        %v1861 = vstv %s1860
        %v1862 = vmul.f32 %v1852, %v1861
        %v1863 = vmul.f32 %v1853, %v1861
        %s1864 = sld [smem:[#allocation10 + $0x4]]
        %v1865 = vstv %s1864
        %v1866 = vmul.f32 %v1854, %v1865
        %v1867 = vmul.f32 %v1855, %v1865
        %v1868 = vadd.f32 %v1862, %v1866
        %v1869 = vadd.f32 %v1863, %v1867
        %s1870 = sld [smem:[#allocation10 + $0x8]]
        %v1871 = vstv %s1870
        %v1872 = vmul.f32 %v1856, %v1871
        %v1873 = vmul.f32 %v1857, %v1871
        %v1874 = vadd.f32 %v1868, %v1872
        %v1875 = vadd.f32 %v1869, %v1873
        %s1876 = sld [smem:[#allocation10 + $0xc]]
        %v1877 = vstv %s1876
        %v1878 = vmul.f32 %v1858, %v1877
        %v1879 = vmul.f32 %v1859, %v1877
        %v1880 = vadd.f32 %v1874, %v1878
        %v1881 = vadd.f32 %v1875, %v1879
        %s1882 = sld [smem:[#allocation11]]
        %v1883 = vstv %s1882
        %v1884 = vadd.f32 %v1880, %v1883
        %v1885 = vadd.f32 %v1881, %v1883
        %v1886 = vsub.f32 0.0, %v1884
        %v1887 = vsub.f32 0.0, %v1885
        %v1888 = vmul.f32 %v1886, 1.442695
        %v1889 = vpow.pop %v1888
        %v1890 = vmul.f32 %v1887, 1.442695
        %v1891 = vpow.pop %v1890
        %v1892 = vadd.f32 %v1889, 1.0
        %v1893 = vadd.f32 %v1891, 1.0
        %v1894 = vrcp.pop %v1892
        %v1895 = vmul.f32 1.0, %v1894
        %v1896 = vrcp.pop %v1893
        %v1897 = vmul.f32 1.0, %v1896
        %v1898 = vld [vmem:[%s377] sm:$0xff]
        %v1899 = vld [vmem:[%s377 + $0x8] sm:$0xff]
        %v1900 = vmul.f32 %v1898, %v1895
        %v1901 = vmul.f32 %v1899, %v1897
        %1902 = vst [vmem:[%s382] sm:$0xff] %v1900
        %1903 = vst [vmem:[%s382 + $0x8] sm:$0xff] %v1901
        %s1904 = sld [smem:[#allocation10 + $0x1]]
        %v1905 = vstv %s1904
        %v1906 = vmul.f32 %v1852, %v1905
        %v1907 = vmul.f32 %v1853, %v1905
        %s1908 = sld [smem:[#allocation10 + $0x5]]
        %v1909 = vstv %s1908
        %v1910 = vmul.f32 %v1854, %v1909
        %v1911 = vmul.f32 %v1855, %v1909
        %v1912 = vadd.f32 %v1906, %v1910
        %v1913 = vadd.f32 %v1907, %v1911
        %s1914 = sld [smem:[#allocation10 + $0x9]]
        %v1915 = vstv %s1914
        %v1916 = vmul.f32 %v1856, %v1915
        %v1917 = vmul.f32 %v1857, %v1915
        %v1918 = vadd.f32 %v1912, %v1916
        %v1919 = vadd.f32 %v1913, %v1917
        %s1920 = sld [smem:[#allocation10 + $0xd]]
        %v1921 = vstv %s1920
        %v1922 = vmul.f32 %v1858, %v1921
        %v1923 = vmul.f32 %v1859, %v1921
        %v1924 = vadd.f32 %v1918, %v1922
        %v1925 = vadd.f32 %v1919, %v1923
        %s1926 = sld [smem:[#allocation11 + $0x1]]
        %v1927 = vstv %s1926
        %v1928 = vadd.f32 %v1924, %v1927
        %v1929 = vadd.f32 %v1925, %v1927
        %v1930 = vsub.f32 0.0, %v1928
        %v1931 = vsub.f32 0.0, %v1929
        %v1932 = vmul.f32 %v1930, 1.442695
        %v1933 = vpow.pop %v1932
        %v1934 = vmul.f32 %v1931, 1.442695
        %v1935 = vpow.pop %v1934
        %v1936 = vadd.f32 %v1933, 1.0
        %v1937 = vadd.f32 %v1935, 1.0
        %v1938 = vrcp.pop %v1936
        %v1939 = vmul.f32 1.0, %v1938
        %v1940 = vrcp.pop %v1937
        %v1941 = vmul.f32 1.0, %v1940
        %v1942 = vld [vmem:[%s778] sm:$0xff]
        %v1943 = vld [vmem:[%s778 + $0x8] sm:$0xff]
        %v1944 = vmul.f32 %v1942, %v1939
        %v1945 = vmul.f32 %v1943, %v1941
        %s1946 = scalar_lea.vmem %s382, 16
        %1947 = vst [vmem:[%s1946] sm:$0xff] %v1944
        %1948 = vst [vmem:[%s1946 + $0x8] sm:$0xff] %v1945
        %s1949 = sld [smem:[#allocation10 + $0x2]]
        %v1950 = vstv %s1949
        %v1951 = vmul.f32 %v1852, %v1950
        %v1952 = vmul.f32 %v1853, %v1950
        %s1953 = sld [smem:[#allocation10 + $0x6]]
        %v1954 = vstv %s1953
        %v1955 = vmul.f32 %v1854, %v1954
        %v1956 = vmul.f32 %v1855, %v1954
        %v1957 = vadd.f32 %v1951, %v1955
        %v1958 = vadd.f32 %v1952, %v1956
        %s1959 = sld [smem:[#allocation10 + $0xa]]
        %v1960 = vstv %s1959
        %v1961 = vmul.f32 %v1856, %v1960
        %v1962 = vmul.f32 %v1857, %v1960
        %v1963 = vadd.f32 %v1957, %v1961
        %v1964 = vadd.f32 %v1958, %v1962
        %s1965 = sld [smem:[#allocation10 + $0xe]]
        %v1966 = vstv %s1965
        %v1967 = vmul.f32 %v1858, %v1966
        %v1968 = vmul.f32 %v1859, %v1966
        %v1969 = vadd.f32 %v1963, %v1967
        %v1970 = vadd.f32 %v1964, %v1968
        %s1971 = sld [smem:[#allocation11 + $0x2]]
        %v1972 = vstv %s1971
        %v1973 = vadd.f32 %v1969, %v1972
        %v1974 = vadd.f32 %v1970, %v1972
        %v1975 = vsub.f32 0.0, %v1973
        %v1976 = vsub.f32 0.0, %v1974
        %v1977 = vmul.f32 %v1975, 1.442695
        %v1978 = vpow.pop %v1977
        %v1979 = vmul.f32 %v1976, 1.442695
        %v1980 = vpow.pop %v1979
        %v1981 = vadd.f32 %v1978, 1.0
        %v1982 = vadd.f32 %v1980, 1.0
        %v1983 = vrcp.pop %v1981
        %v1984 = vmul.f32 1.0, %v1983
        %v1985 = vrcp.pop %v1982
        %v1986 = vmul.f32 1.0, %v1985
        %v1987 = vld [vmem:[%s1136] sm:$0xff]
        %v1988 = vld [vmem:[%s1136 + $0x8] sm:$0xff]
        %v1989 = vmul.f32 %v1987, %v1984
        %v1990 = vmul.f32 %v1988, %v1986
        %s1991 = scalar_lea.vmem %s382, 32
        %1992 = vst [vmem:[%s1991] sm:$0xff] %v1989
        %1993 = vst [vmem:[%s1991 + $0x8] sm:$0xff] %v1990
        %s1994 = sld [smem:[#allocation10 + $0x3]]
        %v1995 = vstv %s1994
        %v1996 = vmul.f32 %v1852, %v1995
        %v1997 = vmul.f32 %v1853, %v1995
        %s1998 = sld [smem:[#allocation10 + $0x7]]
        %v1999 = vstv %s1998
        %v2000 = vmul.f32 %v1854, %v1999
        %v2001 = vmul.f32 %v1855, %v1999
        %v2002 = vadd.f32 %v1996, %v2000
        %v2003 = vadd.f32 %v1997, %v2001
        %s2004 = sld [smem:[#allocation10 + $0xb]]
        %v2005 = vstv %s2004
        %v2006 = vmul.f32 %v1856, %v2005
        %v2007 = vmul.f32 %v1857, %v2005
        %v2008 = vadd.f32 %v2002, %v2006
        %v2009 = vadd.f32 %v2003, %v2007
        %s2010 = sld [smem:[#allocation10 + $0xf]]
        %v2011 = vstv %s2010
        %v2012 = vmul.f32 %v1858, %v2011
        %v2013 = vmul.f32 %v1859, %v2011
        %v2014 = vadd.f32 %v2008, %v2012
        %v2015 = vadd.f32 %v2009, %v2013
        %s2016 = sld [smem:[#allocation11 + $0x3]]
        %v2017 = vstv %s2016
        %v2018 = vadd.f32 %v2014, %v2017
        %v2019 = vadd.f32 %v2015, %v2017
        %v2020 = vsub.f32 0.0, %v2018
        %v2021 = vsub.f32 0.0, %v2019
        %v2022 = vmul.f32 %v2020, 1.442695
        %v2023 = vpow.pop %v2022
        %v2024 = vmul.f32 %v2021, 1.442695
        %v2025 = vpow.pop %v2024
        %v2026 = vadd.f32 %v2023, 1.0
        %v2027 = vadd.f32 %v2025, 1.0
        %v2028 = vrcp.pop %v2026
        %v2029 = vmul.f32 1.0, %v2028
        %v2030 = vrcp.pop %v2027
        %v2031 = vmul.f32 1.0, %v2030
        %v2032 = vld [vmem:[%s1494] sm:$0xff]
        %v2033 = vld [vmem:[%s1494 + $0x8] sm:$0xff]
        %v2034 = vmul.f32 %v2032, %v2029
        %v2035 = vmul.f32 %v2033, %v2031
        %s2036 = scalar_lea.vmem %s382, 48
        %2037 = vst [vmem:[%s2036] sm:$0xff] %v2034
        %2038 = vst [vmem:[%s2036 + $0x8] sm:$0xff] %v2035
        %p2039 = scmp.lt.s32.totalorder %s23, 1
        %s2040 = scalar_select %p2039, %s23, 1
        %s2041 = smul.addr %s2040, 8
        %s2042 = smul.addr %s2041, 8
        %s2043 = scalar_lea.vmem %s8, %s2042
        // Predicated region
        $region77: #{hf_refinement_res.1} parent=51 // pred_check
          %p2044 = pneg %p214
        $region78: #{hf_refinement_res.1} parent=51 // pred_check_branch
          %2046 = sbr.rel (%p2044) target = $region80
        $region79: #{hf_refinement_res.1} parent=51 // pred_region
          _
        $region80: #{hf_refinement_res.1} parent=51 // pred_fallthru
          _
      $region52: #{hf_refinement_res.1} parent=5 // pred_fallthru
        _
      %p2047 = scmp.le.s32.totalorder 2, %s18
      // Predicated region
      $region81: #{hf_refinement_res.1} parent=5 // pred_check
        %p2048 = pneg %p2047
      $region82: #{hf_refinement_res.1} parent=5 // pred_check_branch
        %2050 = sbr.rel (%p2048) target = $region84
      $region83: #{hf_refinement_res.1} parent=5 // pred_region
        %s2051 = ssub.s32 %s18, 2
        // Predicated region
        $region85: #{hf_refinement_res.1} parent=83 // pred_check
          %p2052 = pneg %p220
        $region86: #{hf_refinement_res.1} parent=83 // pred_check_branch
          %2054 = sbr.rel (%p2052) target = $region88
        $region87: #{hf_refinement_res.1} parent=83 // pred_region
          %p2055 = scmp.lt.s32.totalorder %s24, 1
          %s2056 = scalar_select %p2055, %s24, 1
          %s2057 = smul.addr %s2056, 8
          %s2058 = smul.addr %s2057, 8
          %s2059 = scalar_lea.vmem %s8, %s2058
        $region88: #{hf_refinement_res.1} parent=83 // pred_fallthru
          _
      $region84: #{hf_refinement_res.1} parent=5 // pred_fallthru
        _
    $region6: #{hf_refinement_res.1} parent=1 // loop_footer
      %s22 = sadd.s32 1, %s18
    $region7: #{hf_refinement_res.1} parent=1 // loop_footer_branch
      %17 = sbr.rel target = $region3
    $region8: #{hf_refinement_res.1} parent=1 // loop_exit
      _
    %2060 = vsyncpa [#allocation4], 1
    %s2061 = scalar_lea.sflag [#allocation4], 1
    %2062 = vsyncpa %s2061, 1
    %2063 = vsyncpa [#allocation6], 1
    %2064 = vsyncpa [#allocation9], 1
    %2065 = vsyncpa [#allocation12], 1

</llo_original>
